<compile_context>
chip_gen: v5e
topology: v5e:2x2
jax: 0.10.0
libtpu: 0.0.40
codegen_flags: <defaults>
</compile_context>

<pallas_src>
import jax
import jax.numpy as jnp
import numpy as np
from jax import lax
from jax.experimental import pallas as pl
from jax.experimental.pallas import tpu as pltpu


# ----------------------------- geometry helpers -----------------------------

def _geom(H, W):
    """Padded-flat layout sizes for the three stages."""
    assert H % 4 == 0 and W % 4 == 0, "spatial dims must be divisible by 4"
    H1, W1 = H, W
    H2, W2 = H // 2, W // 2
    H3, W3 = H // 4, W // 4
    WR1, WR2, WR3 = W1 + 2, W2 + 2, W3 + 2          # padded row widths
    M1, M2, M3 = H1 * WR1, H2 * WR2, H3 * WR3       # conv-output rows (incl. junk cols)

    def slot(Hk, WRk):                               # per-image padded-flat slot size
        need = (Hk + 2) * WRk + 2                    # padded grid + tap-slice slack
        return ((need + 7) // 8) * 8

    return dict(H1=H1, W1=W1, H2=H2, W2=W2, H3=H3, W3=W3,
                WR1=WR1, WR2=WR2, WR3=WR3,
                M1=M1, M2=M2, M3=M3,
                P1=slot(H1, WR1), P2=slot(H2, WR2), P3=slot(H3, WR3))


# ----------------------------- fused Pallas kernel -----------------------------

def _make_kernel(g, bt):
    WR1, WR2, WR3 = g["WR1"], g["WR2"], g["WR3"]
    P1, P2, P3 = g["P1"], g["P2"], g["P3"]
    M2, M3 = g["M2"], g["M3"]
    H2, W2, H3, W3 = g["H2"], g["W2"], g["H3"], g["W3"]
    L1 = bt * P1                       # conv1 rows  (junk tails included)
    L2 = (bt - 1) * P2 + M2            # conv2 rows
    L3 = (bt - 1) * P3 + M3            # conv3 rows
    f32, bf16 = jnp.float32, jnp.bfloat16

    def kernel(x_ref, w1_ref, b1_ref, w2_ref, b2_ref, w3_ref, b3_ref,
               avg_ref, fcw_ref, fcb_ref, out_ref,
               xp2_scr, xp3_scr, tmp1_scr, tmp2_scr):

        def pool_compact(y, wr_in, p_in, wr_out, p_out, h_out, w_out,
                         tmp_scr, dst_scr):
            """2x2 max-pool of padded-flat conv output + zero re-padding.

            Vertical/horizontal 2-maxes are shifted VPU maxes; the stride-2
            compaction into the next stage's zero-padded scratch uses static
            strided reads (no selection matmuls)."""
            rows = y.shape[0]
            lv = rows - wr_in
            vmax = jnp.maximum(y[:lv], y[wr_in:wr_in + lv])
            lh = lv - 1
            hmax = jnp.maximum(vmax[:lh], vmax[1:1 + lh])
            tmp_scr[0:lh, :] = hmax
            dst_scr[...] = jnp.zeros_like(dst_scr)          # halo + slack rows = 0
            for b in range(bt):
                for i in range(h_out):
                    src = b * p_in + 2 * i * wr_in
                    dst = b * p_out + (i + 1) * wr_out + 1
                    dst_scr[dst:dst + w_out, :] = \
                        tmp_scr[pl.ds(src, w_out, stride=2), :]

        def conv3x3(src_scr, rows, wr, w_ref, b_ref):
            """3x3 SAME conv on a padded-flat scratch: lane-concatenate the 9
            shifted tap slices into an im2col LHS and do ONE MXU matmul."""
            taps = [src_scr[dh * wr + dw:dh * wr + dw + rows, :]
                    for dh in range(3) for dw in range(3)]
            lhs = jnp.concatenate(taps, axis=1).astype(bf16)      # [rows, 9*Cin]
            acc = jnp.dot(lhs, w_ref[...], preferred_element_type=f32)
            return jnp.maximum(acc + b_ref[...], 0.0)             # BN-folded bias+ReLU

        # ---- conv1 + folded-BN + ReLU: one MXU matmul (im2col built in wrapper) ----
        y1 = jnp.dot(x_ref[...], w1_ref[...], preferred_element_type=f32)
        y1 = jnp.maximum(y1 + b1_ref[...], 0.0)                   # [L1, 32]

        # ---- maxpool1 -> padded-flat stage-2 input ----
        pool_compact(y1, WR1, P1, WR2, P2, H2, W2, tmp1_scr, xp2_scr)

        # ---- conv2 (K = 9*32 = 288) ----
        y2 = conv3x3(xp2_scr, L2, WR2, w2_ref, b2_ref)            # [L2, 64]

        # ---- maxpool2 -> padded-flat stage-3 input ----
        pool_compact(y2, WR2, P2, WR3, P3, H3, W3, tmp2_scr, xp3_scr)

        # ---- conv3 (K = 9*64 = 576) ----
        y3 = conv3x3(xp3_scr, L3, WR3, w3_ref, b3_ref)            # [L3, 128]

        # ---- head: per-image masked global-avg (one small matmul) + FC ----
        feat = jnp.dot(avg_ref[...], y3, preferred_element_type=f32)      # [bt, 128]
        logits = jnp.dot(feat, fcw_ref[...], preferred_element_type=f32) + fcb_ref[...]
        out_ref[0] = logits                                       # lane-dense (bt, 128)

    return kernel


# ----------------------------- wrapper -----------------------------

def _build_conv1_im2col(x_nchw, g):
    """Zero-pad, flatten padded rows, and build the 9-tap im2col for conv1."""
    N, _, H, W = x_nchw.shape
    WR1, P1 = g["WR1"], g["P1"]
    xp = jnp.pad(x_nchw[:, 0], ((0, 0), (1, 1), (1, 1)))          # [N, H+2, W+2]
    xflat = xp.reshape(N, (H + 2) * WR1)
    ext = P1 + 2 * WR1 + 2
    xflat = jnp.pad(xflat, ((0, 0), (0, ext - (H + 2) * WR1)))
    offs = [dh * WR1 + dw for dh in range(3) for dw in range(3)]
    xcol = jnp.stack([xflat[:, o:o + P1] for o in offs], axis=-1)  # [N, P1, 9]
    return xcol.reshape(N * P1, 9)


@jax.jit
def mfcc_binary_cnn_forward(x_nchw, kp):
    """Fused Pallas forward.  x_nchw: [N, 1, H, W] float32 -> logits [N, 2]."""
    N, cin, H, W = x_nchw.shape
    assert cin == 1
    g = _geom(H, W)
    bt = kp["avg"].shape[0]                      # images per grid step (static)
    steps = -(-N // bt)
    Np = steps * bt
    if Np != N:                                  # pad ragged batch with zero images
        x_nchw = jnp.pad(x_nchw, ((0, Np - N), (0, 0), (0, 0), (0, 0)))

    xcol = _build_conv1_im2col(x_nchw, g)        # [Np*P1, 9]

    kernel = _make_kernel(g, bt)
    out = pl.pallas_call(
        kernel,
        out_shape=jax.ShapeDtypeStruct((steps, bt, 128), jnp.float32),
        grid=(steps,),
        in_specs=[
            pl.BlockSpec((bt * g["P1"], 9), lambda n: (n, 0)),    # conv1 im2col
            pl.BlockSpec(kp["w1"].shape, lambda n: (0, 0)),       # [9, 32]   f32
            pl.BlockSpec(kp["b1"].shape, lambda n: (0, 0)),
            pl.BlockSpec(kp["w2"].shape, lambda n: (0, 0)),       # [288, 64] bf16
            pl.BlockSpec(kp["b2"].shape, lambda n: (0, 0)),
            pl.BlockSpec(kp["w3"].shape, lambda n: (0, 0)),       # [576,128] bf16
            pl.BlockSpec(kp["b3"].shape, lambda n: (0, 0)),
            pl.BlockSpec(kp["avg"].shape, lambda n: (0, 0)),      # [bt, L3]  f32
            pl.BlockSpec(kp["fc_w"].shape, lambda n: (0, 0)),     # [128,128] f32
            pl.BlockSpec(kp["fc_b"].shape, lambda n: (0, 0)),
        ],
        out_specs=pl.BlockSpec((1, bt, 128), lambda n: (n, 0, 0)),
        scratch_shapes=[
            pltpu.VMEM((bt * g["P2"], 32), jnp.float32),          # pooled1 (padded-flat)
            pltpu.VMEM((bt * g["P3"], 64), jnp.float32),          # pooled2 (padded-flat)
            pltpu.VMEM((bt * g["P1"], 32), jnp.float32),          # pool1 staging
            pltpu.VMEM((bt * g["P2"], 64), jnp.float32),          # pool2 staging
        ],
        compiler_params=pltpu.CompilerParams(
            dimension_semantics=("parallel",),                    # shard steps on v7x
            vmem_limit_bytes=32 * 1024 * 1024),
    )(xcol, kp["w1"], kp["b1"], kp["w2"], kp["b2"], kp["w3"], kp["b3"],
      kp["avg"], kp["fc_w"], kp["fc_b"])
    return out.reshape(Np, 128)[:N, :2]


# ----------------------------- parameters -----------------------------

def init_raw_params(key):
    """Module-style parameters (HWIO conv weights, conv bias, BN stats, FC)."""
    ks = jax.random.split(key, 5)
    p = {}

    def conv_bn(i, cin, cout, k):
        k1, k2, k3, k4, k5 = jax.random.split(k, 5)
        std = 1.0 / np.sqrt(9.0 * cin)
        p[f"w{i}"] = std * jax.random.normal(k1, (3, 3, cin, cout), jnp.float32)
        p[f"cb{i}"] = 0.1 * jax.random.normal(k2, (cout,), jnp.float32)
        p[f"gamma{i}"] = 1.0 + 0.1 * jax.random.normal(k3, (cout,), jnp.float32)
        p[f"beta{i}"] = 0.1 * jax.random.normal(k4, (cout,), jnp.float32)
        p[f"mean{i}"] = 0.1 * jax.random.normal(k5, (cout,), jnp.float32)
        p[f"var{i}"] = 0.5 + jnp.linspace(0.0, 1.0, cout, dtype=jnp.float32)

    conv_bn(1, 1, 32, ks[0])
    conv_bn(2, 32, 64, ks[1])
    conv_bn(3, 64, 128, ks[2])
    p["fc_w"] = (1.0 / np.sqrt(128.0)) * jax.random.normal(ks[3], (128, 2), jnp.float32)
    p["fc_b"] = 0.1 * jax.random.normal(ks[4], (2,), jnp.float32)
    return p


def prepare_kernel_params(raw, H, W, bt, eps=1e-5):
    """Fold eval-mode BN into conv weights/bias; build kernel-side constants."""
    g = _geom(H, W)

    def fold(i):
        scale = raw[f"gamma{i}"] / jnp.sqrt(raw[f"var{i}"] + eps)
        w = raw[f"w{i}"] * scale
        b = (raw[f"cb{i}"] - raw[f"mean{i}"]) * scale + raw[f"beta{i}"]
        return w, b

    w1, b1 = fold(1)
    w2, b2 = fold(2)
    w3, b3 = fold(3)

    # per-image masked/scaled global-average rows (one row per image in the block)
    L3 = (bt - 1) * g["P3"] + g["M3"]
    avg = np.zeros((bt, L3), np.float32)
    for b in range(bt):
        for h in range(g["H3"]):
            for w in range(g["W3"]):
                avg[b, b * g["P3"] + h * g["WR3"] + w] = 1.0 / float(g["H3"] * g["W3"])

    # FC padded to 128 output lanes -> lane-dense per-step output store
    fcw = jnp.zeros((128, 128), jnp.float32).at[:, :2].set(raw["fc_w"])
    fcb = jnp.zeros((1, 128), jnp.float32).at[0, :2].set(raw["fc_b"])

    return {
        "w1": w1.reshape(9, 32),                               # f32,  K = 9
        "b1": b1[None, :],
        "w2": w2.reshape(9 * 32, 64).astype(jnp.bfloat16),     # bf16, K = 288
        "b2": b2[None, :],
        "w3": w3.reshape(9 * 64, 128).astype(jnp.bfloat16),    # bf16, K = 576
        "b3": b3[None, :],
        "avg": jnp.asarray(avg),
        "fc_w": fcw,
        "fc_b": fcb,
    }


# ----------------------------- pure-JAX reference -----------------------------

def ref_forward(x_nchw, raw, eps=1e-5):
    x = jnp.transpose(x_nchw, (0, 2, 3, 1))                        # NCHW -> NHWC

    def block(h, i):
        y = lax.conv_general_dilated(
            h, raw[f"w{i}"], (1, 1), "SAME",
            dimension_numbers=("NHWC", "HWIO", "NHWC"),
            precision=lax.Precision.HIGHEST) + raw[f"cb{i}"]
        y = (y - raw[f"mean{i}"]) / jnp.sqrt(raw[f"var{i}"] + eps) \
            * raw[f"gamma{i}"] + raw[f"beta{i}"]
        return jnp.maximum(y, 0.0)

    def pool(h):
        n, hh, ww, c = h.shape
        return jnp.max(h.reshape(n, hh // 2, 2, ww // 2, 2, c), axis=(2, 4))

    h = pool(block(x, 1))
    h = pool(block(h, 2))
    h = block(h, 3)
    feat = jnp.mean(h, axis=(1, 2))
    return feat @ raw["fc_w"] + raw["fc_b"]


# ----------------------------- main -----------------------------

if __name__ == "__main__":
    key = jax.random.PRNGKey(0)
    k_x, k_p = jax.random.split(key)
    N, H, W = 4, 16, 16
    BT = 2                                   # images per grid step -> 2 grid steps
    x = jax.random.normal(k_x, (N, 1, H, W), jnp.float32)          # NCHW, 1 channel

    raw = init_raw_params(k_p)
    kp = prepare_kernel_params(raw, H=H, W=W, bt=BT)

    out = jax.block_until_ready(mfcc_binary_cnn_forward(x, kp))
    ref = jax.block_until_ready(ref_forward(x, raw))

    # bf16 MXU operands for conv2/conv3 vs an f32 HIGHEST reference -> relaxed
    # tolerance; structural bugs would blow far past this.
    np.testing.assert_allclose(np.asarray(out), np.asarray(ref),
                               rtol=4e-2, atol=4e-2)
    assert out.shape == (N, 2)
    print("KERNEL_OK")
</pallas_src>

<mosaic_0001>
module attributes {stable_mosaic.version = 11 : i64} {
  func.func @kernel(%arg0: i32, %arg1: memref<656x9xf32, #tpu.memory_space<vmem>>, %arg2: memref<9x32xf32, #tpu.memory_space<vmem>>, %arg3: memref<1x32xf32, #tpu.memory_space<vmem>>, %arg4: memref<288x64xbf16, #tpu.memory_space<vmem>>, %arg5: memref<1x64xf32, #tpu.memory_space<vmem>>, %arg6: memref<576x128xbf16, #tpu.memory_space<vmem>>, %arg7: memref<1x128xf32, #tpu.memory_space<vmem>>, %arg8: memref<2x64xf32, #tpu.memory_space<vmem>>, %arg9: memref<128x128xf32, #tpu.memory_space<vmem>>, %arg10: memref<1x128xf32, #tpu.memory_space<vmem>>, %arg11: memref<1x2x128xf32, #tpu.memory_space<vmem>>, %arg12: memref<208x32xf32, #tpu.memory_space<vmem>>, %arg13: memref<80x64xf32, #tpu.memory_space<vmem>>, %arg14: memref<656x32xf32, #tpu.memory_space<vmem>>, %arg15: memref<208x64xf32, #tpu.memory_space<vmem>>) attributes {dimension_semantics = [#tpu.dimension_semantics<parallel>], iteration_bounds = array<i64: 2>, scalar_prefetch = 0 : i64, scratch_operands = 4 : i64, tpu.core_type = #tpu.core_type<tc>, window_params = [{transform_indices = @transform_0, window_bounds = array<i64: 656, 9>}, {pipeline_mode = #tpu.pipeline_mode<synchronous>, transform_indices = @transform_1, window_bounds = array<i64: 9, 32>}, {pipeline_mode = #tpu.pipeline_mode<synchronous>, transform_indices = @transform_2, window_bounds = array<i64: 1, 32>}, {pipeline_mode = #tpu.pipeline_mode<synchronous>, transform_indices = @transform_3, window_bounds = array<i64: 288, 64>}, {pipeline_mode = #tpu.pipeline_mode<synchronous>, transform_indices = @transform_4, window_bounds = array<i64: 1, 64>}, {pipeline_mode = #tpu.pipeline_mode<synchronous>, transform_indices = @transform_5, window_bounds = array<i64: 576, 128>}, {pipeline_mode = #tpu.pipeline_mode<synchronous>, transform_indices = @transform_6, window_bounds = array<i64: 1, 128>}, {pipeline_mode = #tpu.pipeline_mode<synchronous>, transform_indices = @transform_7, window_bounds = array<i64: 2, 64>}, {pipeline_mode = #tpu.pipeline_mode<synchronous>, transform_indices = @transform_8, window_bounds = array<i64: 128, 128>}, {pipeline_mode = #tpu.pipeline_mode<synchronous>, transform_indices = @transform_9, window_bounds = array<i64: 1, 128>}, {transform_indices = @transform_10, window_bounds = array<i64: 1, 2, 128>}]} {
    %c0 = arith.constant 0 : index
    %c0_0 = arith.constant 0 : index
    %0 = vector.load %arg1[%c0, %c0_0] : memref<656x9xf32, #tpu.memory_space<vmem>>, vector<656x9xf32>
    %c0_1 = arith.constant 0 : index
    %c0_2 = arith.constant 0 : index
    %1 = vector.load %arg2[%c0_1, %c0_2] : memref<9x32xf32, #tpu.memory_space<vmem>>, vector<9x32xf32>
    %cst = arith.constant dense<0.000000e+00> : vector<656x32xf32>
    %2 = tpu.matmul %0, %1, %cst {dimension_numbers = #tpu.dot_dimension_numbers<[1], [0], [0], [1], [0, 0, 1, 1], [], []>} : vector<656x9xf32>, vector<9x32xf32>, vector<656x32xf32> -> vector<656x32xf32>
    %c0_3 = arith.constant 0 : index
    %c0_4 = arith.constant 0 : index
    %3 = vector.load %arg3[%c0_3, %c0_4] : memref<1x32xf32, #tpu.memory_space<vmem>>, vector<1x32xf32>
    %4 = vector.broadcast %3 : vector<1x32xf32> to vector<656x32xf32>
    %5 = arith.addf %2, %4 : vector<656x32xf32>
    %cst_5 = arith.constant 0.000000e+00 : f32
    %6 = vector.broadcast %cst_5 : f32 to vector<656x32xf32>
    %7 = arith.maximumf %5, %6 : vector<656x32xf32>
    %8 = vector.extract_strided_slice %7 {offsets = [0, 0], sizes = [638, 32], strides = [1, 1]} : vector<656x32xf32> to vector<638x32xf32>
    %9 = vector.extract_strided_slice %7 {offsets = [18, 0], sizes = [638, 32], strides = [1, 1]} : vector<656x32xf32> to vector<638x32xf32>
    %10 = arith.maximumf %8, %9 : vector<638x32xf32>
    %11 = vector.extract_strided_slice %10 {offsets = [0, 0], sizes = [637, 32], strides = [1, 1]} : vector<638x32xf32> to vector<637x32xf32>
    %12 = vector.extract_strided_slice %10 {offsets = [1, 0], sizes = [637, 32], strides = [1, 1]} : vector<638x32xf32> to vector<637x32xf32>
    %13 = arith.maximumf %11, %12 : vector<637x32xf32>
    %c0_6 = arith.constant 0 : index
    %c0_7 = arith.constant 0 : index
    %14 = vector.load %arg14[%c0_6, %c0_7] : memref<656x32xf32, #tpu.memory_space<vmem>>, vector<637x32xf32>
    tpu.vector_store %arg14[%c0_6, %c0_7], %13 {strides = array<i32>} : memref<656x32xf32, #tpu.memory_space<vmem>>, vector<637x32xf32>,
    %cst_8 = arith.constant 0.000000e+00 : f32
    %15 = vector.broadcast %cst_8 : f32 to vector<208x32xf32>
    %c0_9 = arith.constant 0 : index
    %c0_10 = arith.constant 0 : index
    %16 = vector.load %arg12[%c0_9, %c0_10] : memref<208x32xf32, #tpu.memory_space<vmem>>, vector<208x32xf32>
    tpu.vector_store %arg12[%c0_9, %c0_10], %15 {strides = array<i32>} : memref<208x32xf32, #tpu.memory_space<vmem>>, vector<208x32xf32>,
    %c0_11 = arith.constant 0 : index
    %c0_12 = arith.constant 0 : index
    %17 = tpu.strided_load %arg14[%c0_11, %c0_12] {strides = array<i32: 2, 1>} : memref<656x32xf32, #tpu.memory_space<vmem>>, vector<8x32xf32>
    %c11 = arith.constant 11 : index
    %c0_13 = arith.constant 0 : index
    %18 = vector.load %arg12[%c11, %c0_13] : memref<208x32xf32, #tpu.memory_space<vmem>>, vector<8x32xf32>
    tpu.vector_store %arg12[%c11, %c0_13], %17 {strides = array<i32>} : memref<208x32xf32, #tpu.memory_space<vmem>>, vector<8x32xf32>,
    %c36 = arith.constant 36 : index
    %c0_14 = arith.constant 0 : index
    %19 = tpu.strided_load %arg14[%c36, %c0_14] {strides = array<i32: 2, 1>} : memref<656x32xf32, #tpu.memory_space<vmem>>, vector<8x32xf32>
    %c21 = arith.constant 21 : index
    %c0_15 = arith.constant 0 : index
    %20 = vector.load %arg12[%c21, %c0_15] : memref<208x32xf32, #tpu.memory_space<vmem>>, vector<8x32xf32>
    tpu.vector_store %arg12[%c21, %c0_15], %19 {strides = array<i32>} : memref<208x32xf32, #tpu.memory_space<vmem>>, vector<8x32xf32>,
    %c72 = arith.constant 72 : index
    %c0_16 = arith.constant 0 : index
    %21 = tpu.strided_load %arg14[%c72, %c0_16] {strides = array<i32: 2, 1>} : memref<656x32xf32, #tpu.memory_space<vmem>>, vector<8x32xf32>
    %c31 = arith.constant 31 : index
    %c0_17 = arith.constant 0 : index
    %22 = vector.load %arg12[%c31, %c0_17] : memref<208x32xf32, #tpu.memory_space<vmem>>, vector<8x32xf32>
    tpu.vector_store %arg12[%c31, %c0_17], %21 {strides = array<i32>} : memref<208x32xf32, #tpu.memory_space<vmem>>, vector<8x32xf32>,
    %c108 = arith.constant 108 : index
    %c0_18 = arith.constant 0 : index
    %23 = tpu.strided_load %arg14[%c108, %c0_18] {strides = array<i32: 2, 1>} : memref<656x32xf32, #tpu.memory_space<vmem>>, vector<8x32xf32>
    %c41 = arith.constant 41 : index
    %c0_19 = arith.constant 0 : index
    %24 = vector.load %arg12[%c41, %c0_19] : memref<208x32xf32, #tpu.memory_space<vmem>>, vector<8x32xf32>
    tpu.vector_store %arg12[%c41, %c0_19], %23 {strides = array<i32>} : memref<208x32xf32, #tpu.memory_space<vmem>>, vector<8x32xf32>,
    %c144 = arith.constant 144 : index
    %c0_20 = arith.constant 0 : index
    %25 = tpu.strided_load %arg14[%c144, %c0_20] {strides = array<i32: 2, 1>} : memref<656x32xf32, #tpu.memory_space<vmem>>, vector<8x32xf32>
    %c51 = arith.constant 51 : index
    %c0_21 = arith.constant 0 : index
    %26 = vector.load %arg12[%c51, %c0_21] : memref<208x32xf32, #tpu.memory_space<vmem>>, vector<8x32xf32>
    tpu.vector_store %arg12[%c51, %c0_21], %25 {strides = array<i32>} : memref<208x32xf32, #tpu.memory_space<vmem>>, vector<8x32xf32>,
    %c180 = arith.constant 180 : index
    %c0_22 = arith.constant 0 : index
    %27 = tpu.strided_load %arg14[%c180, %c0_22] {strides = array<i32: 2, 1>} : memref<656x32xf32, #tpu.memory_space<vmem>>, vector<8x32xf32>
    %c61 = arith.constant 61 : index
    %c0_23 = arith.constant 0 : index
    %28 = vector.load %arg12[%c61, %c0_23] : memref<208x32xf32, #tpu.memory_space<vmem>>, vector<8x32xf32>
    tpu.vector_store %arg12[%c61, %c0_23], %27 {strides = array<i32>} : memref<208x32xf32, #tpu.memory_space<vmem>>, vector<8x32xf32>,
    %c216 = arith.constant 216 : index
    %c0_24 = arith.constant 0 : index
    %29 = tpu.strided_load %arg14[%c216, %c0_24] {strides = array<i32: 2, 1>} : memref<656x32xf32, #tpu.memory_space<vmem>>, vector<8x32xf32>
    %c71 = arith.constant 71 : index
    %c0_25 = arith.constant 0 : index
    %30 = vector.load %arg12[%c71, %c0_25] : memref<208x32xf32, #tpu.memory_space<vmem>>, vector<8x32xf32>
    tpu.vector_store %arg12[%c71, %c0_25], %29 {strides = array<i32>} : memref<208x32xf32, #tpu.memory_space<vmem>>, vector<8x32xf32>,
    %c252 = arith.constant 252 : index
    %c0_26 = arith.constant 0 : index
    %31 = tpu.strided_load %arg14[%c252, %c0_26] {strides = array<i32: 2, 1>} : memref<656x32xf32, #tpu.memory_space<vmem>>, vector<8x32xf32>
    %c81 = arith.constant 81 : index
    %c0_27 = arith.constant 0 : index
    %32 = vector.load %arg12[%c81, %c0_27] : memref<208x32xf32, #tpu.memory_space<vmem>>, vector<8x32xf32>
    tpu.vector_store %arg12[%c81, %c0_27], %31 {strides = array<i32>} : memref<208x32xf32, #tpu.memory_space<vmem>>, vector<8x32xf32>,
    %c328 = arith.constant 328 : index
    %c0_28 = arith.constant 0 : index
    %33 = tpu.strided_load %arg14[%c328, %c0_28] {strides = array<i32: 2, 1>} : memref<656x32xf32, #tpu.memory_space<vmem>>, vector<8x32xf32>
    %c115 = arith.constant 115 : index
    %c0_29 = arith.constant 0 : index
    %34 = vector.load %arg12[%c115, %c0_29] : memref<208x32xf32, #tpu.memory_space<vmem>>, vector<8x32xf32>
    tpu.vector_store %arg12[%c115, %c0_29], %33 {strides = array<i32>} : memref<208x32xf32, #tpu.memory_space<vmem>>, vector<8x32xf32>,
    %c364 = arith.constant 364 : index
    %c0_30 = arith.constant 0 : index
    %35 = tpu.strided_load %arg14[%c364, %c0_30] {strides = array<i32: 2, 1>} : memref<656x32xf32, #tpu.memory_space<vmem>>, vector<8x32xf32>
    %c125 = arith.constant 125 : index
    %c0_31 = arith.constant 0 : index
    %36 = vector.load %arg12[%c125, %c0_31] : memref<208x32xf32, #tpu.memory_space<vmem>>, vector<8x32xf32>
    tpu.vector_store %arg12[%c125, %c0_31], %35 {strides = array<i32>} : memref<208x32xf32, #tpu.memory_space<vmem>>, vector<8x32xf32>,
    %c400 = arith.constant 400 : index
    %c0_32 = arith.constant 0 : index
    %37 = tpu.strided_load %arg14[%c400, %c0_32] {strides = array<i32: 2, 1>} : memref<656x32xf32, #tpu.memory_space<vmem>>, vector<8x32xf32>
    %c135 = arith.constant 135 : index
    %c0_33 = arith.constant 0 : index
    %38 = vector.load %arg12[%c135, %c0_33] : memref<208x32xf32, #tpu.memory_space<vmem>>, vector<8x32xf32>
    tpu.vector_store %arg12[%c135, %c0_33], %37 {strides = array<i32>} : memref<208x32xf32, #tpu.memory_space<vmem>>, vector<8x32xf32>,
    %c436 = arith.constant 436 : index
    %c0_34 = arith.constant 0 : index
    %39 = tpu.strided_load %arg14[%c436, %c0_34] {strides = array<i32: 2, 1>} : memref<656x32xf32, #tpu.memory_space<vmem>>, vector<8x32xf32>
    %c145 = arith.constant 145 : index
    %c0_35 = arith.constant 0 : index
    %40 = vector.load %arg12[%c145, %c0_35] : memref<208x32xf32, #tpu.memory_space<vmem>>, vector<8x32xf32>
    tpu.vector_store %arg12[%c145, %c0_35], %39 {strides = array<i32>} : memref<208x32xf32, #tpu.memory_space<vmem>>, vector<8x32xf32>,
    %c472 = arith.constant 472 : index
    %c0_36 = arith.constant 0 : index
    %41 = tpu.strided_load %arg14[%c472, %c0_36] {strides = array<i32: 2, 1>} : memref<656x32xf32, #tpu.memory_space<vmem>>, vector<8x32xf32>
    %c155 = arith.constant 155 : index
    %c0_37 = arith.constant 0 : index
    %42 = vector.load %arg12[%c155, %c0_37] : memref<208x32xf32, #tpu.memory_space<vmem>>, vector<8x32xf32>
    tpu.vector_store %arg12[%c155, %c0_37], %41 {strides = array<i32>} : memref<208x32xf32, #tpu.memory_space<vmem>>, vector<8x32xf32>,
    %c508 = arith.constant 508 : index
    %c0_38 = arith.constant 0 : index
    %43 = tpu.strided_load %arg14[%c508, %c0_38] {strides = array<i32: 2, 1>} : memref<656x32xf32, #tpu.memory_space<vmem>>, vector<8x32xf32>
    %c165 = arith.constant 165 : index
    %c0_39 = arith.constant 0 : index
    %44 = vector.load %arg12[%c165, %c0_39] : memref<208x32xf32, #tpu.memory_space<vmem>>, vector<8x32xf32>
    tpu.vector_store %arg12[%c165, %c0_39], %43 {strides = array<i32>} : memref<208x32xf32, #tpu.memory_space<vmem>>, vector<8x32xf32>,
    %c544 = arith.constant 544 : index
    %c0_40 = arith.constant 0 : index
    %45 = tpu.strided_load %arg14[%c544, %c0_40] {strides = array<i32: 2, 1>} : memref<656x32xf32, #tpu.memory_space<vmem>>, vector<8x32xf32>
    %c175 = arith.constant 175 : index
    %c0_41 = arith.constant 0 : index
    %46 = vector.load %arg12[%c175, %c0_41] : memref<208x32xf32, #tpu.memory_space<vmem>>, vector<8x32xf32>
    tpu.vector_store %arg12[%c175, %c0_41], %45 {strides = array<i32>} : memref<208x32xf32, #tpu.memory_space<vmem>>, vector<8x32xf32>,
    %c580 = arith.constant 580 : index
    %c0_42 = arith.constant 0 : index
    %47 = tpu.strided_load %arg14[%c580, %c0_42] {strides = array<i32: 2, 1>} : memref<656x32xf32, #tpu.memory_space<vmem>>, vector<8x32xf32>
    %c185 = arith.constant 185 : index
    %c0_43 = arith.constant 0 : index
    %48 = vector.load %arg12[%c185, %c0_43] : memref<208x32xf32, #tpu.memory_space<vmem>>, vector<8x32xf32>
    tpu.vector_store %arg12[%c185, %c0_43], %47 {strides = array<i32>} : memref<208x32xf32, #tpu.memory_space<vmem>>, vector<8x32xf32>,
    %c0_44 = arith.constant 0 : index
    %c0_45 = arith.constant 0 : index
    %49 = vector.load %arg12[%c0_44, %c0_45] : memref<208x32xf32, #tpu.memory_space<vmem>>, vector<184x32xf32>
    %c1 = arith.constant 1 : index
    %c0_46 = arith.constant 0 : index
    %50 = vector.load %arg12[%c1, %c0_46] : memref<208x32xf32, #tpu.memory_space<vmem>>, vector<184x32xf32>
    %c2 = arith.constant 2 : index
    %c0_47 = arith.constant 0 : index
    %51 = vector.load %arg12[%c2, %c0_47] : memref<208x32xf32, #tpu.memory_space<vmem>>, vector<184x32xf32>
    %c10 = arith.constant 10 : index
    %c0_48 = arith.constant 0 : index
    %52 = vector.load %arg12[%c10, %c0_48] : memref<208x32xf32, #tpu.memory_space<vmem>>, vector<184x32xf32>
    %c11_49 = arith.constant 11 : index
    %c0_50 = arith.constant 0 : index
    %53 = vector.load %arg12[%c11_49, %c0_50] : memref<208x32xf32, #tpu.memory_space<vmem>>, vector<184x32xf32>
    %c12 = arith.constant 12 : index
    %c0_51 = arith.constant 0 : index
    %54 = vector.load %arg12[%c12, %c0_51] : memref<208x32xf32, #tpu.memory_space<vmem>>, vector<184x32xf32>
    %c20 = arith.constant 20 : index
    %c0_52 = arith.constant 0 : index
    %55 = vector.load %arg12[%c20, %c0_52] : memref<208x32xf32, #tpu.memory_space<vmem>>, vector<184x32xf32>
    %c21_53 = arith.constant 21 : index
    %c0_54 = arith.constant 0 : index
    %56 = vector.load %arg12[%c21_53, %c0_54] : memref<208x32xf32, #tpu.memory_space<vmem>>, vector<184x32xf32>
    %c22 = arith.constant 22 : index
    %c0_55 = arith.constant 0 : index
    %57 = vector.load %arg12[%c22, %c0_55] : memref<208x32xf32, #tpu.memory_space<vmem>>, vector<184x32xf32>
    %58 = tpu.concatenate %49, %50, %51, %52, %53, %54, %55, %56, %57 in 1 : vector<184x32xf32>, vector<184x32xf32>, vector<184x32xf32>, vector<184x32xf32>, vector<184x32xf32>, vector<184x32xf32>, vector<184x32xf32>, vector<184x32xf32>, vector<184x32xf32> -> vector<184x288xf32>
    %59 = arith.truncf %58 : vector<184x288xf32> to vector<184x288xbf16>
    %c0_56 = arith.constant 0 : index
    %c0_57 = arith.constant 0 : index
    %60 = vector.load %arg4[%c0_56, %c0_57] : memref<288x64xbf16, #tpu.memory_space<vmem>>, vector<288x64xbf16>
    %cst_58 = arith.constant dense<0.000000e+00> : vector<184x64xf32>
    %61 = tpu.matmul %59, %60, %cst_58 {dimension_numbers = #tpu.dot_dimension_numbers<[1], [0], [0], [1], [0, 0, 1, 1], [], []>} : vector<184x288xbf16>, vector<288x64xbf16>, vector<184x64xf32> -> vector<184x64xf32>
    %c0_59 = arith.constant 0 : index
    %c0_60 = arith.constant 0 : index
    %62 = vector.load %arg5[%c0_59, %c0_60] : memref<1x64xf32, #tpu.memory_space<vmem>>, vector<1x64xf32>
    %63 = vector.broadcast %62 : vector<1x64xf32> to vector<184x64xf32>
    %64 = arith.addf %61, %63 : vector<184x64xf32>
    %cst_61 = arith.constant 0.000000e+00 : f32
    %65 = vector.broadcast %cst_61 : f32 to vector<184x64xf32>
    %66 = arith.maximumf %64, %65 : vector<184x64xf32>
    %67 = vector.extract_strided_slice %66 {offsets = [0, 0], sizes = [174, 64], strides = [1, 1]} : vector<184x64xf32> to vector<174x64xf32>
    %68 = vector.extract_strided_slice %66 {offsets = [10, 0], sizes = [174, 64], strides = [1, 1]} : vector<184x64xf32> to vector<174x64xf32>
    %69 = arith.maximumf %67, %68 : vector<174x64xf32>
    %70 = vector.extract_strided_slice %69 {offsets = [0, 0], sizes = [173, 64], strides = [1, 1]} : vector<174x64xf32> to vector<173x64xf32>
    %71 = vector.extract_strided_slice %69 {offsets = [1, 0], sizes = [173, 64], strides = [1, 1]} : vector<174x64xf32> to vector<173x64xf32>
    %72 = arith.maximumf %70, %71 : vector<173x64xf32>
    %c0_62 = arith.constant 0 : index
    %c0_63 = arith.constant 0 : index
    %73 = vector.load %arg15[%c0_62, %c0_63] : memref<208x64xf32, #tpu.memory_space<vmem>>, vector<173x64xf32>
    tpu.vector_store %arg15[%c0_62, %c0_63], %72 {strides = array<i32>} : memref<208x64xf32, #tpu.memory_space<vmem>>, vector<173x64xf32>,
    %cst_64 = arith.constant 0.000000e+00 : f32
    %74 = vector.broadcast %cst_64 : f32 to vector<80x64xf32>
    %c0_65 = arith.constant 0 : index
    %c0_66 = arith.constant 0 : index
    %75 = vector.load %arg13[%c0_65, %c0_66] : memref<80x64xf32, #tpu.memory_space<vmem>>, vector<80x64xf32>
    tpu.vector_store %arg13[%c0_65, %c0_66], %74 {strides = array<i32>} : memref<80x64xf32, #tpu.memory_space<vmem>>, vector<80x64xf32>,
    %c0_67 = arith.constant 0 : index
    %c0_68 = arith.constant 0 : index
    %76 = tpu.strided_load %arg15[%c0_67, %c0_68] {strides = array<i32: 2, 1>} : memref<208x64xf32, #tpu.memory_space<vmem>>, vector<4x64xf32>
    %c7 = arith.constant 7 : index
    %c0_69 = arith.constant 0 : index
    %77 = vector.load %arg13[%c7, %c0_69] : memref<80x64xf32, #tpu.memory_space<vmem>>, vector<4x64xf32>
    tpu.vector_store %arg13[%c7, %c0_69], %76 {strides = array<i32>} : memref<80x64xf32, #tpu.memory_space<vmem>>, vector<4x64xf32>,
    %c20_70 = arith.constant 20 : index
    %c0_71 = arith.constant 0 : index
    %78 = tpu.strided_load %arg15[%c20_70, %c0_71] {strides = array<i32: 2, 1>} : memref<208x64xf32, #tpu.memory_space<vmem>>, vector<4x64xf32>
    %c13 = arith.constant 13 : index
    %c0_72 = arith.constant 0 : index
    %79 = vector.load %arg13[%c13, %c0_72] : memref<80x64xf32, #tpu.memory_space<vmem>>, vector<4x64xf32>
    tpu.vector_store %arg13[%c13, %c0_72], %78 {strides = array<i32>} : memref<80x64xf32, #tpu.memory_space<vmem>>, vector<4x64xf32>,
    %c40 = arith.constant 40 : index
    %c0_73 = arith.constant 0 : index
    %80 = tpu.strided_load %arg15[%c40, %c0_73] {strides = array<i32: 2, 1>} : memref<208x64xf32, #tpu.memory_space<vmem>>, vector<4x64xf32>
    %c19 = arith.constant 19 : index
    %c0_74 = arith.constant 0 : index
    %81 = vector.load %arg13[%c19, %c0_74] : memref<80x64xf32, #tpu.memory_space<vmem>>, vector<4x64xf32>
    tpu.vector_store %arg13[%c19, %c0_74], %80 {strides = array<i32>} : memref<80x64xf32, #tpu.memory_space<vmem>>, vector<4x64xf32>,
    %c60 = arith.constant 60 : index
    %c0_75 = arith.constant 0 : index
    %82 = tpu.strided_load %arg15[%c60, %c0_75] {strides = array<i32: 2, 1>} : memref<208x64xf32, #tpu.memory_space<vmem>>, vector<4x64xf32>
    %c25 = arith.constant 25 : index
    %c0_76 = arith.constant 0 : index
    %83 = vector.load %arg13[%c25, %c0_76] : memref<80x64xf32, #tpu.memory_space<vmem>>, vector<4x64xf32>
    tpu.vector_store %arg13[%c25, %c0_76], %82 {strides = array<i32>} : memref<80x64xf32, #tpu.memory_space<vmem>>, vector<4x64xf32>,
    %c104 = arith.constant 104 : index
    %c0_77 = arith.constant 0 : index
    %84 = tpu.strided_load %arg15[%c104, %c0_77] {strides = array<i32: 2, 1>} : memref<208x64xf32, #tpu.memory_space<vmem>>, vector<4x64xf32>
    %c47 = arith.constant 47 : index
    %c0_78 = arith.constant 0 : index
    %85 = vector.load %arg13[%c47, %c0_78] : memref<80x64xf32, #tpu.memory_space<vmem>>, vector<4x64xf32>
    tpu.vector_store %arg13[%c47, %c0_78], %84 {strides = array<i32>} : memref<80x64xf32, #tpu.memory_space<vmem>>, vector<4x64xf32>,
    %c124 = arith.constant 124 : index
    %c0_79 = arith.constant 0 : index
    %86 = tpu.strided_load %arg15[%c124, %c0_79] {strides = array<i32: 2, 1>} : memref<208x64xf32, #tpu.memory_space<vmem>>, vector<4x64xf32>
    %c53 = arith.constant 53 : index
    %c0_80 = arith.constant 0 : index
    %87 = vector.load %arg13[%c53, %c0_80] : memref<80x64xf32, #tpu.memory_space<vmem>>, vector<4x64xf32>
    tpu.vector_store %arg13[%c53, %c0_80], %86 {strides = array<i32>} : memref<80x64xf32, #tpu.memory_space<vmem>>, vector<4x64xf32>,
    %c144_81 = arith.constant 144 : index
    %c0_82 = arith.constant 0 : index
    %88 = tpu.strided_load %arg15[%c144_81, %c0_82] {strides = array<i32: 2, 1>} : memref<208x64xf32, #tpu.memory_space<vmem>>, vector<4x64xf32>
    %c59 = arith.constant 59 : index
    %c0_83 = arith.constant 0 : index
    %89 = vector.load %arg13[%c59, %c0_83] : memref<80x64xf32, #tpu.memory_space<vmem>>, vector<4x64xf32>
    tpu.vector_store %arg13[%c59, %c0_83], %88 {strides = array<i32>} : memref<80x64xf32, #tpu.memory_space<vmem>>, vector<4x64xf32>,
    %c164 = arith.constant 164 : index
    %c0_84 = arith.constant 0 : index
    %90 = tpu.strided_load %arg15[%c164, %c0_84] {strides = array<i32: 2, 1>} : memref<208x64xf32, #tpu.memory_space<vmem>>, vector<4x64xf32>
    %c65 = arith.constant 65 : index
    %c0_85 = arith.constant 0 : index
    %91 = vector.load %arg13[%c65, %c0_85] : memref<80x64xf32, #tpu.memory_space<vmem>>, vector<4x64xf32>
    tpu.vector_store %arg13[%c65, %c0_85], %90 {strides = array<i32>} : memref<80x64xf32, #tpu.memory_space<vmem>>, vector<4x64xf32>,
    %c0_86 = arith.constant 0 : index
    %c0_87 = arith.constant 0 : index
    %92 = vector.load %arg13[%c0_86, %c0_87] : memref<80x64xf32, #tpu.memory_space<vmem>>, vector<64x64xf32>
    %c1_88 = arith.constant 1 : index
    %c0_89 = arith.constant 0 : index
    %93 = vector.load %arg13[%c1_88, %c0_89] : memref<80x64xf32, #tpu.memory_space<vmem>>, vector<64x64xf32>
    %c2_90 = arith.constant 2 : index
    %c0_91 = arith.constant 0 : index
    %94 = vector.load %arg13[%c2_90, %c0_91] : memref<80x64xf32, #tpu.memory_space<vmem>>, vector<64x64xf32>
    %c6 = arith.constant 6 : index
    %c0_92 = arith.constant 0 : index
    %95 = vector.load %arg13[%c6, %c0_92] : memref<80x64xf32, #tpu.memory_space<vmem>>, vector<64x64xf32>
    %c7_93 = arith.constant 7 : index
    %c0_94 = arith.constant 0 : index
    %96 = vector.load %arg13[%c7_93, %c0_94] : memref<80x64xf32, #tpu.memory_space<vmem>>, vector<64x64xf32>
    %c8 = arith.constant 8 : index
    %c0_95 = arith.constant 0 : index
    %97 = vector.load %arg13[%c8, %c0_95] : memref<80x64xf32, #tpu.memory_space<vmem>>, vector<64x64xf32>
    %c12_96 = arith.constant 12 : index
    %c0_97 = arith.constant 0 : index
    %98 = vector.load %arg13[%c12_96, %c0_97] : memref<80x64xf32, #tpu.memory_space<vmem>>, vector<64x64xf32>
    %c13_98 = arith.constant 13 : index
    %c0_99 = arith.constant 0 : index
    %99 = vector.load %arg13[%c13_98, %c0_99] : memref<80x64xf32, #tpu.memory_space<vmem>>, vector<64x64xf32>
    %c14 = arith.constant 14 : index
    %c0_100 = arith.constant 0 : index
    %100 = vector.load %arg13[%c14, %c0_100] : memref<80x64xf32, #tpu.memory_space<vmem>>, vector<64x64xf32>
    %101 = tpu.concatenate %92, %93, %94, %95, %96, %97, %98, %99, %100 in 1 : vector<64x64xf32>, vector<64x64xf32>, vector<64x64xf32>, vector<64x64xf32>, vector<64x64xf32>, vector<64x64xf32>, vector<64x64xf32>, vector<64x64xf32>, vector<64x64xf32> -> vector<64x576xf32>
    %102 = arith.truncf %101 : vector<64x576xf32> to vector<64x576xbf16>
    %c0_101 = arith.constant 0 : index
    %c0_102 = arith.constant 0 : index
    %103 = vector.load %arg6[%c0_101, %c0_102] : memref<576x128xbf16, #tpu.memory_space<vmem>>, vector<576x128xbf16>
    %cst_103 = arith.constant dense<0.000000e+00> : vector<64x128xf32>
    %104 = tpu.matmul %102, %103, %cst_103 {dimension_numbers = #tpu.dot_dimension_numbers<[1], [0], [0], [1], [0, 0, 1, 1], [], []>} : vector<64x576xbf16>, vector<576x128xbf16>, vector<64x128xf32> -> vector<64x128xf32>
    %c0_104 = arith.constant 0 : index
    %c0_105 = arith.constant 0 : index
    %105 = vector.load %arg7[%c0_104, %c0_105] : memref<1x128xf32, #tpu.memory_space<vmem>>, vector<1x128xf32>
    %106 = vector.broadcast %105 : vector<1x128xf32> to vector<64x128xf32>
    %107 = arith.addf %104, %106 : vector<64x128xf32>
    %cst_106 = arith.constant 0.000000e+00 : f32
    %108 = vector.broadcast %cst_106 : f32 to vector<64x128xf32>
    %109 = arith.maximumf %107, %108 : vector<64x128xf32>
    %c0_107 = arith.constant 0 : index
    %c0_108 = arith.constant 0 : index
    %110 = vector.load %arg8[%c0_107, %c0_108] : memref<2x64xf32, #tpu.memory_space<vmem>>, vector<2x64xf32>
    %cst_109 = arith.constant dense<0.000000e+00> : vector<2x128xf32>
    %111 = tpu.matmul %110, %109, %cst_109 {dimension_numbers = #tpu.dot_dimension_numbers<[1], [0], [0], [1], [0, 0, 1, 1], [], []>} : vector<2x64xf32>, vector<64x128xf32>, vector<2x128xf32> -> vector<2x128xf32>
    %c0_110 = arith.constant 0 : index
    %c0_111 = arith.constant 0 : index
    %112 = vector.load %arg9[%c0_110, %c0_111] : memref<128x128xf32, #tpu.memory_space<vmem>>, vector<128x128xf32>
    %cst_112 = arith.constant dense<0.000000e+00> : vector<2x128xf32>
    %113 = tpu.matmul %111, %112, %cst_112 {dimension_numbers = #tpu.dot_dimension_numbers<[1], [0], [0], [1], [0, 0, 1, 1], [], []>} : vector<2x128xf32>, vector<128x128xf32>, vector<2x128xf32> -> vector<2x128xf32>
    %c0_113 = arith.constant 0 : index
    %c0_114 = arith.constant 0 : index
    %114 = vector.load %arg10[%c0_113, %c0_114] : memref<1x128xf32, #tpu.memory_space<vmem>>, vector<1x128xf32>
    %115 = vector.broadcast %114 : vector<1x128xf32> to vector<2x128xf32>
    %116 = arith.addf %113, %115 : vector<2x128xf32>
    %c0_115 = arith.constant 0 : index
    %c0_116 = arith.constant 0 : index
    %c0_117 = arith.constant 0 : index
    %117 = vector.load %arg11[%c0_115, %c0_116, %c0_117] : memref<1x2x128xf32, #tpu.memory_space<vmem>>, vector<1x2x128xf32>
    %118 = vector.shape_cast %117 : vector<1x2x128xf32> to vector<2x128xf32>
    %119 = vector.shape_cast %116 : vector<2x128xf32> to vector<1x2x128xf32>
    tpu.vector_store %arg11[%c0_115, %c0_116, %c0_117], %119 {strides = array<i32>} : memref<1x2x128xf32, #tpu.memory_space<vmem>>, vector<1x2x128xf32>,
    return
  }
  func.func @transform_0(%arg0: i32) -> (i32, i32) {
    %c0_i32 = arith.constant 0 : i32
    %c0_i32_0 = arith.constant 0 : i32
    return %arg0, %c0_i32 : i32, i32
  }
  func.func @transform_1(%arg0: i32) -> (i32, i32) {
    %c0_i32 = arith.constant 0 : i32
    %c0_i32_0 = arith.constant 0 : i32
    %c0_i32_1 = arith.constant 0 : i32
    return %c0_i32, %c0_i32_0 : i32, i32
  }
  func.func @transform_2(%arg0: i32) -> (i32, i32) {
    %c0_i32 = arith.constant 0 : i32
    %c0_i32_0 = arith.constant 0 : i32
    %c0_i32_1 = arith.constant 0 : i32
    return %c0_i32, %c0_i32_0 : i32, i32
  }
  func.func @transform_3(%arg0: i32) -> (i32, i32) {
    %c0_i32 = arith.constant 0 : i32
    %c0_i32_0 = arith.constant 0 : i32
    %c0_i32_1 = arith.constant 0 : i32
    return %c0_i32, %c0_i32_0 : i32, i32
  }
  func.func @transform_4(%arg0: i32) -> (i32, i32) {
    %c0_i32 = arith.constant 0 : i32
    %c0_i32_0 = arith.constant 0 : i32
    %c0_i32_1 = arith.constant 0 : i32
    return %c0_i32, %c0_i32_0 : i32, i32
  }
  func.func @transform_5(%arg0: i32) -> (i32, i32) {
    %c0_i32 = arith.constant 0 : i32
    %c0_i32_0 = arith.constant 0 : i32
    %c0_i32_1 = arith.constant 0 : i32
    return %c0_i32, %c0_i32_0 : i32, i32
  }
  func.func @transform_6(%arg0: i32) -> (i32, i32) {
    %c0_i32 = arith.constant 0 : i32
    %c0_i32_0 = arith.constant 0 : i32
    %c0_i32_1 = arith.constant 0 : i32
    return %c0_i32, %c0_i32_0 : i32, i32
  }
  func.func @transform_7(%arg0: i32) -> (i32, i32) {
    %c0_i32 = arith.constant 0 : i32
    %c0_i32_0 = arith.constant 0 : i32
    %c0_i32_1 = arith.constant 0 : i32
    return %c0_i32, %c0_i32_0 : i32, i32
  }
  func.func @transform_8(%arg0: i32) -> (i32, i32) {
    %c0_i32 = arith.constant 0 : i32
    %c0_i32_0 = arith.constant 0 : i32
    %c0_i32_1 = arith.constant 0 : i32
    return %c0_i32, %c0_i32_0 : i32, i32
  }
  func.func @transform_9(%arg0: i32) -> (i32, i32) {
    %c0_i32 = arith.constant 0 : i32
    %c0_i32_0 = arith.constant 0 : i32
    %c0_i32_1 = arith.constant 0 : i32
    return %c0_i32, %c0_i32_0 : i32, i32
  }
  func.func @transform_10(%arg0: i32) -> (i32, i32, i32) {
    %c0_i32 = arith.constant 0 : i32
    %c0_i32_0 = arith.constant 0 : i32
    %c0_i32_1 = arith.constant 0 : i32
    return %arg0, %c0_i32, %c0_i32_0 : i32, i32, i32
  }
}

</mosaic_0001>

<llo_original>
// kernel: mfcc_binary_cnn_forward.1
$region0: #{mfcc_binary_cnn_forward.1}
  #allocation0 [shape = 'u32[]', space=smem, size = 0x4, offset = 0x4, fixed_abs, tag = 'smem constant byte address 0x4 - core index']
  #allocation1 [shape = 'u32[72,128]{1,0:T(1,128)}', space=vmem, size = 0x9000, scoped, tag = 'internal scratch']
  #allocation2 [shape = 'f32[208,32]{1,0:T(8,128)}', space=vmem, size = 0x1a000, scoped, tag = 'scratch operand']
  #allocation3 [shape = 'f32[80,64]{1,0:T(8,128)}', space=vmem, size = 0xa000, scoped, tag = 'scratch operand']
  #allocation4 [shape = 'f32[656,32]{1,0:T(8,128)}', space=vmem, size = 0x52000, scoped, tag = 'scratch operand']
  #allocation5 [shape = 'f32[208,64]{1,0:T(8,128)}', space=vmem, size = 0x1a000, scoped, tag = 'scratch operand']
  %s0 = inlined_call_operand.vmem [shape: f32[1312,9], index: 0, kind: input, shape index: {}]
  %s1 = inlined_call_operand.vmem [shape: f32[9,32], index: 1, kind: input, shape index: {}]
  %s2 = inlined_call_operand.vmem [shape: f32[1,32], index: 2, kind: input, shape index: {}]
  %s3 = inlined_call_operand.vmem [shape: bf16[288,64], index: 3, kind: input, shape index: {}]
  %s4 = inlined_call_operand.vmem [shape: f32[1,64], index: 4, kind: input, shape index: {}]
  %s5 = inlined_call_operand.vmem [shape: bf16[576,128], index: 5, kind: input, shape index: {}]
  %s6 = inlined_call_operand.vmem [shape: f32[1,128], index: 6, kind: input, shape index: {}]
  %s7 = inlined_call_operand.vmem [shape: f32[2,64], index: 7, kind: input, shape index: {}]
  %s8 = inlined_call_operand.vmem [shape: f32[128,128], index: 8, kind: input, shape index: {}]
  %s9 = inlined_call_operand.vmem [shape: f32[1,128], index: 9, kind: input, shape index: {}]
  %s10 = inlined_call_operand.vmem [shape: f32[2,2,128], index: 10, kind: output, shape index: {}]
  %s11 = sld [smem:[#allocation0]]
  $region73: #{mfcc_binary_cnn_forward.1} parent=0
    _
  %s13 = ssub.s32 1, %s11
  %s14 = scalar_select 0, %s13, %s11
  loop: start=0, step=1, limit=4
  $region2: #{mfcc_binary_cnn_forward.1} parent=0 // loop_pre_header
    _
  $region3: #{mfcc_binary_cnn_forward.1} parent=0 // loop_header
    %s16 = sphi 0, %s20
    %p17 = scmp.ge.s32.totalorder %s16, 4
    %s26 = sphi 0, %s28
    %s29 = sphi 0, %s26
    %s30 = sphi 0, %s29
    %s46 = sphi 0, %s30
    %s50 = sphi 0, %s50
    %s52 = sphi 0, %s50
    %s53 = sphi 0, %s52
    %s67 = sphi 0, %s53
    %s71 = sphi 0, %s71
    %s73 = sphi 0, %s71
    %s74 = sphi 0, %s73
    %s88 = sphi 0, %s74
    %s92 = sphi 0, %s92
    %s94 = sphi 0, %s92
    %s95 = sphi 0, %s94
    %s109 = sphi 0, %s95
    %s113 = sphi 0, %s113
    %s115 = sphi 0, %s113
    %s116 = sphi 0, %s115
    %s130 = sphi 0, %s116
    %s134 = sphi 0, %s134
    %s136 = sphi 0, %s134
    %s137 = sphi 0, %s136
    %s151 = sphi 0, %s137
    %s155 = sphi 0, %s155
    %s157 = sphi 0, %s155
    %s158 = sphi 0, %s157
    %s172 = sphi 0, %s158
    %s176 = sphi 0, %s176
    %s178 = sphi 0, %s176
    %s179 = sphi 0, %s178
    %s193 = sphi 0, %s179
    %s197 = sphi 0, %s197
    %s199 = sphi 0, %s197
    %s200 = sphi 0, %s199
    %s214 = sphi 0, %s200
    %s218 = sphi 0, %s218
    %s220 = sphi 0, %s218
    %s221 = sphi 0, %s220
    %s235 = sphi 0, %s221
    %s241 = sphi 0, %s243
    %s244 = sphi 0, %s241
    %s245 = sphi 0, %s244
    %s261 = sphi 0, %s245
  $region4: #{mfcc_binary_cnn_forward.1} parent=0 // loop_header_branch
    %19 = sbr.rel (%p17) target = $region8
  $region5: #{mfcc_binary_cnn_forward.1} parent=0 // loop_body
    %s21 = ssub.s32 %s16, 1
    %s22 = ssub.s32 %s16, 2
    %s23 = sadd.s32 %s16, 1
    %s24 = ssub.s32 %s16, %s23
    %p25 = scmp.eq.s32.totalorder %s24, 0
    %s27 = sadd.s32 %s26, 1
    %s28 = scalar_select %p25, %s26, %s27
    %p31 = pneg %p25
    %p32 = scmp.eq.s32.totalorder %s16, 1
    %p33 = por %p31, %p32
    %p34 = scmp.ne.s32.totalorder %s26, %s29
    %p35 = scmp.eq.s32.totalorder %s16, 0
    %p36 = por %p34, %p35
    %p37 = scmp.ne.s32.totalorder %s26, %s29
    %p38 = scmp.eq.s32.totalorder %s21, 1
    %p39 = por %p37, %p38
    %p40 = scmp.ne.s32.totalorder %s29, %s30
    %p41 = scmp.eq.s32.totalorder %s21, 0
    %p42 = por %p40, %p41
    %p43 = scmp.ne.s32.totalorder %s29, %s30
    %p44 = scmp.eq.s32.totalorder %s22, 1
    %p45 = por %p43, %p44
    %p47 = scmp.ne.s32.totalorder %s30, %s46
    %p48 = scmp.eq.s32.totalorder %s22, 0
    %p49 = por %p47, %p48
    %s51 = sadd.s32 %s50, 1
    %p54 = scmp.eq.s32.totalorder %s16, 1
    %p55 = scmp.ne.s32.totalorder %s50, %s52
    %p56 = scmp.eq.s32.totalorder %s16, 0
    %p57 = por %p55, %p56
    %p58 = scmp.ne.s32.totalorder %s50, %s52
    %p59 = scmp.eq.s32.totalorder %s21, 1
    %p60 = por %p58, %p59
    %p61 = scmp.ne.s32.totalorder %s52, %s53
    %p62 = scmp.eq.s32.totalorder %s21, 0
    %p63 = por %p61, %p62
    %p64 = scmp.ne.s32.totalorder %s52, %s53
    %p65 = scmp.eq.s32.totalorder %s22, 1
    %p66 = por %p64, %p65
    %p68 = scmp.ne.s32.totalorder %s53, %s67
    %p69 = scmp.eq.s32.totalorder %s22, 0
    %p70 = por %p68, %p69
    %s72 = sadd.s32 %s71, 1
    %p75 = scmp.eq.s32.totalorder %s16, 1
    %p76 = scmp.ne.s32.totalorder %s71, %s73
    %p77 = scmp.eq.s32.totalorder %s16, 0
    %p78 = por %p76, %p77
    %p79 = scmp.ne.s32.totalorder %s71, %s73
    %p80 = scmp.eq.s32.totalorder %s21, 1
    %p81 = por %p79, %p80
    %p82 = scmp.ne.s32.totalorder %s73, %s74
    %p83 = scmp.eq.s32.totalorder %s21, 0
    %p84 = por %p82, %p83
    %p85 = scmp.ne.s32.totalorder %s73, %s74
    %p86 = scmp.eq.s32.totalorder %s22, 1
    %p87 = por %p85, %p86
    %p89 = scmp.ne.s32.totalorder %s74, %s88
    %p90 = scmp.eq.s32.totalorder %s22, 0
    %p91 = por %p89, %p90
    %s93 = sadd.s32 %s92, 1
    %p96 = scmp.eq.s32.totalorder %s16, 1
    %p97 = scmp.ne.s32.totalorder %s92, %s94
    %p98 = scmp.eq.s32.totalorder %s16, 0
    %p99 = por %p97, %p98
    %p100 = scmp.ne.s32.totalorder %s92, %s94
    %p101 = scmp.eq.s32.totalorder %s21, 1
    %p102 = por %p100, %p101
    %p103 = scmp.ne.s32.totalorder %s94, %s95
    %p104 = scmp.eq.s32.totalorder %s21, 0
    %p105 = por %p103, %p104
    %p106 = scmp.ne.s32.totalorder %s94, %s95
    %p107 = scmp.eq.s32.totalorder %s22, 1
    %p108 = por %p106, %p107
    %p110 = scmp.ne.s32.totalorder %s95, %s109
    %p111 = scmp.eq.s32.totalorder %s22, 0
    %p112 = por %p110, %p111
    %s114 = sadd.s32 %s113, 1
    %p117 = scmp.eq.s32.totalorder %s16, 1
    %p118 = scmp.ne.s32.totalorder %s113, %s115
    %p119 = scmp.eq.s32.totalorder %s16, 0
    %p120 = por %p118, %p119
    %p121 = scmp.ne.s32.totalorder %s113, %s115
    %p122 = scmp.eq.s32.totalorder %s21, 1
    %p123 = por %p121, %p122
    %p124 = scmp.ne.s32.totalorder %s115, %s116
    %p125 = scmp.eq.s32.totalorder %s21, 0
    %p126 = por %p124, %p125
    %p127 = scmp.ne.s32.totalorder %s115, %s116
    %p128 = scmp.eq.s32.totalorder %s22, 1
    %p129 = por %p127, %p128
    %p131 = scmp.ne.s32.totalorder %s116, %s130
    %p132 = scmp.eq.s32.totalorder %s22, 0
    %p133 = por %p131, %p132
    %s135 = sadd.s32 %s134, 1
    %p138 = scmp.eq.s32.totalorder %s16, 1
    %p139 = scmp.ne.s32.totalorder %s134, %s136
    %p140 = scmp.eq.s32.totalorder %s16, 0
    %p141 = por %p139, %p140
    %p142 = scmp.ne.s32.totalorder %s134, %s136
    %p143 = scmp.eq.s32.totalorder %s21, 1
    %p144 = por %p142, %p143
    %p145 = scmp.ne.s32.totalorder %s136, %s137
    %p146 = scmp.eq.s32.totalorder %s21, 0
    %p147 = por %p145, %p146
    %p148 = scmp.ne.s32.totalorder %s136, %s137
    %p149 = scmp.eq.s32.totalorder %s22, 1
    %p150 = por %p148, %p149
    %p152 = scmp.ne.s32.totalorder %s137, %s151
    %p153 = scmp.eq.s32.totalorder %s22, 0
    %p154 = por %p152, %p153
    %s156 = sadd.s32 %s155, 1
    %p159 = scmp.eq.s32.totalorder %s16, 1
    %p160 = scmp.ne.s32.totalorder %s155, %s157
    %p161 = scmp.eq.s32.totalorder %s16, 0
    %p162 = por %p160, %p161
    %p163 = scmp.ne.s32.totalorder %s155, %s157
    %p164 = scmp.eq.s32.totalorder %s21, 1
    %p165 = por %p163, %p164
    %p166 = scmp.ne.s32.totalorder %s157, %s158
    %p167 = scmp.eq.s32.totalorder %s21, 0
    %p168 = por %p166, %p167
    %p169 = scmp.ne.s32.totalorder %s157, %s158
    %p170 = scmp.eq.s32.totalorder %s22, 1
    %p171 = por %p169, %p170
    %p173 = scmp.ne.s32.totalorder %s158, %s172
    %p174 = scmp.eq.s32.totalorder %s22, 0
    %p175 = por %p173, %p174
    %s177 = sadd.s32 %s176, 1
    %p180 = scmp.eq.s32.totalorder %s16, 1
    %p181 = scmp.ne.s32.totalorder %s176, %s178
    %p182 = scmp.eq.s32.totalorder %s16, 0
    %p183 = por %p181, %p182
    %p184 = scmp.ne.s32.totalorder %s176, %s178
    %p185 = scmp.eq.s32.totalorder %s21, 1
    %p186 = por %p184, %p185
    %p187 = scmp.ne.s32.totalorder %s178, %s179
    %p188 = scmp.eq.s32.totalorder %s21, 0
    %p189 = por %p187, %p188
    %p190 = scmp.ne.s32.totalorder %s178, %s179
    %p191 = scmp.eq.s32.totalorder %s22, 1
    %p192 = por %p190, %p191
    %p194 = scmp.ne.s32.totalorder %s179, %s193
    %p195 = scmp.eq.s32.totalorder %s22, 0
    %p196 = por %p194, %p195
    %s198 = sadd.s32 %s197, 1
    %p201 = scmp.eq.s32.totalorder %s16, 1
    %p202 = scmp.ne.s32.totalorder %s197, %s199
    %p203 = scmp.eq.s32.totalorder %s16, 0
    %p204 = por %p202, %p203
    %p205 = scmp.ne.s32.totalorder %s197, %s199
    %p206 = scmp.eq.s32.totalorder %s21, 1
    %p207 = por %p205, %p206
    %p208 = scmp.ne.s32.totalorder %s199, %s200
    %p209 = scmp.eq.s32.totalorder %s21, 0
    %p210 = por %p208, %p209
    %p211 = scmp.ne.s32.totalorder %s199, %s200
    %p212 = scmp.eq.s32.totalorder %s22, 1
    %p213 = por %p211, %p212
    %p215 = scmp.ne.s32.totalorder %s200, %s214
    %p216 = scmp.eq.s32.totalorder %s22, 0
    %p217 = por %p215, %p216
    %s219 = sadd.s32 %s218, 1
    %p222 = scmp.eq.s32.totalorder %s16, 1
    %p223 = scmp.ne.s32.totalorder %s218, %s220
    %p224 = scmp.eq.s32.totalorder %s16, 0
    %p225 = por %p223, %p224
    %p226 = scmp.ne.s32.totalorder %s218, %s220
    %p227 = scmp.eq.s32.totalorder %s21, 1
    %p228 = por %p226, %p227
    %p229 = scmp.ne.s32.totalorder %s220, %s221
    %p230 = scmp.eq.s32.totalorder %s21, 0
    %p231 = por %p229, %p230
    %p232 = scmp.ne.s32.totalorder %s220, %s221
    %p233 = scmp.eq.s32.totalorder %s22, 1
    %p234 = por %p232, %p233
    %p236 = scmp.ne.s32.totalorder %s221, %s235
    %p237 = scmp.eq.s32.totalorder %s22, 0
    %p238 = por %p236, %p237
    %s239 = ssub.s32 %s16, %s23
    %p240 = scmp.eq.s32.totalorder %s239, 0
    %s242 = sadd.s32 %s241, 1
    %s243 = scalar_select %p240, %s241, %s242
    %p246 = pneg %p240
    %p247 = scmp.eq.s32.totalorder %s16, 1
    %p248 = por %p246, %p247
    %p249 = scmp.ne.s32.totalorder %s241, %s244
    %p250 = scmp.eq.s32.totalorder %s16, 0
    %p251 = por %p249, %p250
    %p252 = scmp.ne.s32.totalorder %s241, %s244
    %p253 = scmp.eq.s32.totalorder %s21, 1
    %p254 = por %p252, %p253
    %p255 = scmp.ne.s32.totalorder %s244, %s245
    %p256 = scmp.eq.s32.totalorder %s21, 0
    %p257 = por %p255, %p256
    %p258 = scmp.ne.s32.totalorder %s244, %s245
    %p259 = scmp.eq.s32.totalorder %s22, 1
    %p260 = por %p258, %p259
    %p262 = scmp.ne.s32.totalorder %s245, %s261
    %p263 = scmp.eq.s32.totalorder %s22, 0
    %p264 = por %p262, %p263
    %p265 = scmp.le.s32.totalorder 1, %s16
    %p266 = scmp.lt.s32.totalorder %s16, 3
    %p267 = pnand %p265, %p266
    %p268 = pneg %p267
    // Predicated region
    $region9: #{mfcc_binary_cnn_forward.1} parent=5 // pred_check
      _
    $region10: #{mfcc_binary_cnn_forward.1} parent=5 // pred_check_branch
      %270 = sbr.rel (%p267) target = $region12
    $region11: #{mfcc_binary_cnn_forward.1} parent=5 // pred_region
      %s271 = ssub.s32 %s16, 1
      // Predicated region
      $region13: #{mfcc_binary_cnn_forward.1} parent=11 // pred_check
        %p272 = pneg %p63
      $region14: #{mfcc_binary_cnn_forward.1} parent=11 // pred_check_branch
        %274 = sbr.rel (%p272) target = $region16
      $region15: #{mfcc_binary_cnn_forward.1} parent=11 // pred_region
        _
      $region16: #{mfcc_binary_cnn_forward.1} parent=11 // pred_fallthru
        _
      // Predicated region
      $region17: #{mfcc_binary_cnn_forward.1} parent=11 // pred_check
        %p275 = pneg %p84
      $region18: #{mfcc_binary_cnn_forward.1} parent=11 // pred_check_branch
        %277 = sbr.rel (%p275) target = $region20
      $region19: #{mfcc_binary_cnn_forward.1} parent=11 // pred_region
        _
      $region20: #{mfcc_binary_cnn_forward.1} parent=11 // pred_fallthru
        _
      // Predicated region
      $region21: #{mfcc_binary_cnn_forward.1} parent=11 // pred_check
        %p278 = pneg %p105
      $region22: #{mfcc_binary_cnn_forward.1} parent=11 // pred_check_branch
        %280 = sbr.rel (%p278) target = $region24
      $region23: #{mfcc_binary_cnn_forward.1} parent=11 // pred_region
        _
      $region24: #{mfcc_binary_cnn_forward.1} parent=11 // pred_fallthru
        _
      // Predicated region
      $region25: #{mfcc_binary_cnn_forward.1} parent=11 // pred_check
        %p281 = pneg %p126
      $region26: #{mfcc_binary_cnn_forward.1} parent=11 // pred_check_branch
        %283 = sbr.rel (%p281) target = $region28
      $region27: #{mfcc_binary_cnn_forward.1} parent=11 // pred_region
        _
      $region28: #{mfcc_binary_cnn_forward.1} parent=11 // pred_fallthru
        _
      // Predicated region
      $region29: #{mfcc_binary_cnn_forward.1} parent=11 // pred_check
        %p284 = pneg %p147
      $region30: #{mfcc_binary_cnn_forward.1} parent=11 // pred_check_branch
        %286 = sbr.rel (%p284) target = $region32
      $region31: #{mfcc_binary_cnn_forward.1} parent=11 // pred_region
        _
      $region32: #{mfcc_binary_cnn_forward.1} parent=11 // pred_fallthru
        _
      // Predicated region
      $region33: #{mfcc_binary_cnn_forward.1} parent=11 // pred_check
        %p287 = pneg %p168
      $region34: #{mfcc_binary_cnn_forward.1} parent=11 // pred_check_branch
        %289 = sbr.rel (%p287) target = $region36
      $region35: #{mfcc_binary_cnn_forward.1} parent=11 // pred_region
        _
      $region36: #{mfcc_binary_cnn_forward.1} parent=11 // pred_fallthru
        _
      // Predicated region
      $region37: #{mfcc_binary_cnn_forward.1} parent=11 // pred_check
        %p290 = pneg %p189
      $region38: #{mfcc_binary_cnn_forward.1} parent=11 // pred_check_branch
        %292 = sbr.rel (%p290) target = $region40
      $region39: #{mfcc_binary_cnn_forward.1} parent=11 // pred_region
        _
      $region40: #{mfcc_binary_cnn_forward.1} parent=11 // pred_fallthru
        _
      // Predicated region
      $region41: #{mfcc_binary_cnn_forward.1} parent=11 // pred_check
        %p293 = pneg %p210
      $region42: #{mfcc_binary_cnn_forward.1} parent=11 // pred_check_branch
        %295 = sbr.rel (%p293) target = $region44
      $region43: #{mfcc_binary_cnn_forward.1} parent=11 // pred_region
        _
      $region44: #{mfcc_binary_cnn_forward.1} parent=11 // pred_fallthru
        _
      // Predicated region
      $region45: #{mfcc_binary_cnn_forward.1} parent=11 // pred_check
        %p296 = pneg %p231
      $region46: #{mfcc_binary_cnn_forward.1} parent=11 // pred_check_branch
        %298 = sbr.rel (%p296) target = $region48
      $region47: #{mfcc_binary_cnn_forward.1} parent=11 // pred_region
        _
      $region48: #{mfcc_binary_cnn_forward.1} parent=11 // pred_fallthru
        _
    $region12: #{mfcc_binary_cnn_forward.1} parent=5 // pred_fallthru
      _
    %p299 = scmp.lt.s32.totalorder %s16, 2
    // Predicated region
    $region49: #{mfcc_binary_cnn_forward.1} parent=5 // pred_check
      %p300 = pneg %p299
    $region50: #{mfcc_binary_cnn_forward.1} parent=5 // pred_check_branch
      %302 = sbr.rel (%p300) target = $region52
    $region51: #{mfcc_binary_cnn_forward.1} parent=5 // pred_region
      // Predicated region
      $region53: #{mfcc_binary_cnn_forward.1} parent=51 // pred_check
        %p303 = pneg %p36
      $region54: #{mfcc_binary_cnn_forward.1} parent=51 // pred_check_branch
        %305 = sbr.rel (%p303) target = $region56
      $region55: #{mfcc_binary_cnn_forward.1} parent=51 // pred_region
        %s306 = smul.u32 82, %s16
        %p307 = scmp.lt.s32.totalorder %s306, 163
        %s308 = scalar_select %p307, %s306, 163
        %s309 = smul.addr %s308, 8
        %s310 = scalar_lea.vmem %s0, %s309
        %s311 = smul.u32 82, %s16
      $region56: #{mfcc_binary_cnn_forward.1} parent=51 // pred_fallthru
        _
    $region52: #{mfcc_binary_cnn_forward.1} parent=5 // pred_fallthru
      _
    %p312 = scmp.le.s32.totalorder 1, %s16
    %p313 = scmp.lt.s32.totalorder %s16, 3
    %p314 = pnand %p312, %p313
    %p315 = pneg %p314
    // Predicated region
    $region57: #{mfcc_binary_cnn_forward.1} parent=5 // pred_check
      _
    $region58: #{mfcc_binary_cnn_forward.1} parent=5 // pred_check_branch
      %317 = sbr.rel (%p314) target = $region60
    $region59: #{mfcc_binary_cnn_forward.1} parent=5 // pred_region
      %s318 = ssub.s32 %s16, 1
      %s319 = smul.u32 82, %s21
      %p320 = scmp.lt.s32.totalorder %s319, 163
      %s321 = scalar_select %p320, %s319, 163
      %s322 = smul.addr %s321, 8
      %s323 = scalar_lea.vmem %s0, %s322
      %p324 = pneg %p42
      %p325 = pneg %p39
      %p326 = pneg %p63
      %p327 = pneg %p60
      %p328 = pneg %p84
      %p329 = pneg %p81
      %p330 = pneg %p105
      %p331 = pneg %p102
      %p332 = pneg %p126
      %p333 = pneg %p123
      %p334 = pneg %p147
      %p335 = pneg %p144
      %p336 = pneg %p168
      %p337 = pneg %p165
      %p338 = pneg %p189
      %p339 = pneg %p186
      %p340 = pneg %p210
      %p341 = pneg %p207
      %p342 = pneg %p231
      %p343 = pneg %p228
      %p344 = pneg %p257
      %p345 = pneg %p254
      %p346 = scmp.lt.s32.totalorder %s21, 1
      %s347 = scalar_select %p346, %s21, 1
      %s348 = smul.addr %s347, 2
      %s349 = scalar_lea.vmem %s10, %s348
      %s350 = smul.u32 82, %s21
      %p351 = scmp.lt.s32.totalorder %s350, 163
      %s352 = scalar_select %p351, %s350, 163
      %s353 = smul.addr %s352, 8
      %s354 = scalar_lea.vmem %s0, %s353
      %s355 = smul.u32 82, %s21
      %p356 = scmp.lt.s32.totalorder %s21, 1
      %s357 = scalar_select %p356, %s21, 1
      %s358 = smul.addr %s357, 2
      %s359 = scalar_lea.vmem %s10, %s358
      %v361 = vld [vmem:[%s354] sm:$0xff]
      %v362 = vld [vmem:[%s354 + $0x8] sm:$0xff]
      %v363 = vld [vmem:[%s354 + $0x10] sm:$0xff]
      %v364 = vld [vmem:[%s354 + $0x18] sm:$0xff]
      %v365 = vld [vmem:[%s354 + $0x20] sm:$0xff]
      %v366 = vld [vmem:[%s354 + $0x28] sm:$0xff]
      %v367 = vld [vmem:[%s354 + $0x30] sm:$0xff]
      %v368 = vld [vmem:[%s354 + $0x38] sm:$0xff]
      %v369 = vld [vmem:[%s354 + $0x40] sm:$0xff]
      %v370 = vld [vmem:[%s354 + $0x48] sm:$0xff]
      %v371 = vld [vmem:[%s354 + $0x50] sm:$0xff]
      %v372 = vld [vmem:[%s354 + $0x58] sm:$0xff]
      %v373 = vld [vmem:[%s354 + $0x60] sm:$0xff]
      %v374 = vld [vmem:[%s354 + $0x68] sm:$0xff]
      %v375 = vld [vmem:[%s354 + $0x70] sm:$0xff]
      %v376 = vld [vmem:[%s354 + $0x78] sm:$0xff]
      %v377 = vld [vmem:[%s354 + $0x80] sm:$0xff]
      %v378 = vld [vmem:[%s354 + $0x88] sm:$0xff]
      %v379 = vld [vmem:[%s354 + $0x90] sm:$0xff]
      %v380 = vld [vmem:[%s354 + $0x98] sm:$0xff]
      %v381 = vld [vmem:[%s354 + $0xa0] sm:$0xff]
      %v382 = vld [vmem:[%s354 + $0xa8] sm:$0xff]
      %v383 = vld [vmem:[%s354 + $0xb0] sm:$0xff]
      %v384 = vld [vmem:[%s354 + $0xb8] sm:$0xff]
      %v385 = vld [vmem:[%s354 + $0xc0] sm:$0xff]
      %v386 = vld [vmem:[%s354 + $0xc8] sm:$0xff]
      %v387 = vld [vmem:[%s354 + $0xd0] sm:$0xff]
      %v388 = vld [vmem:[%s354 + $0xd8] sm:$0xff]
      %v389 = vld [vmem:[%s354 + $0xe0] sm:$0xff]
      %v390 = vld [vmem:[%s354 + $0xe8] sm:$0xff]
      %v391 = vld [vmem:[%s354 + $0xf0] sm:$0xff]
      %v392 = vld [vmem:[%s354 + $0xf8] sm:$0xff]
      %v393 = vld [vmem:[%s354 + $0x100] sm:$0xff]
      %v394 = vld [vmem:[%s354 + $0x108] sm:$0xff]
      %v395 = vld [vmem:[%s354 + $0x110] sm:$0xff]
      %v396 = vld [vmem:[%s354 + $0x118] sm:$0xff]
      %v397 = vld [vmem:[%s354 + $0x120] sm:$0xff]
      %v398 = vld [vmem:[%s354 + $0x128] sm:$0xff]
      %v399 = vld [vmem:[%s354 + $0x130] sm:$0xff]
      %v400 = vld [vmem:[%s354 + $0x138] sm:$0xff]
      %v401 = vld [vmem:[%s354 + $0x140] sm:$0xff]
      %v402 = vld [vmem:[%s354 + $0x148] sm:$0xff]
      %v403 = vld [vmem:[%s354 + $0x150] sm:$0xff]
      %v404 = vld [vmem:[%s354 + $0x158] sm:$0xff]
      %v405 = vld [vmem:[%s354 + $0x160] sm:$0xff]
      %v406 = vld [vmem:[%s354 + $0x168] sm:$0xff]
      %v407 = vld [vmem:[%s354 + $0x170] sm:$0xff]
      %v408 = vld [vmem:[%s354 + $0x178] sm:$0xff]
      %v409 = vld [vmem:[%s354 + $0x180] sm:$0xff]
      %v410 = vld [vmem:[%s354 + $0x188] sm:$0xff]
      %v411 = vld [vmem:[%s354 + $0x190] sm:$0xff]
      %v412 = vld [vmem:[%s354 + $0x198] sm:$0xff]
      %v413 = vld [vmem:[%s354 + $0x1a0] sm:$0xff]
      %v414 = vld [vmem:[%s354 + $0x1a8] sm:$0xff]
      %v415 = vld [vmem:[%s354 + $0x1b0] sm:$0xff]
      %v416 = vld [vmem:[%s354 + $0x1b8] sm:$0xff]
      %v417 = vld [vmem:[%s354 + $0x1c0] sm:$0xff]
      %v418 = vld [vmem:[%s354 + $0x1c8] sm:$0xff]
      %v419 = vld [vmem:[%s354 + $0x1d0] sm:$0xff]
      %v420 = vld [vmem:[%s354 + $0x1d8] sm:$0xff]
      %v421 = vld [vmem:[%s354 + $0x1e0] sm:$0xff]
      %v422 = vld [vmem:[%s354 + $0x1e8] sm:$0xff]
      %v423 = vld [vmem:[%s354 + $0x1f0] sm:$0xff]
      %v424 = vld [vmem:[%s354 + $0x1f8] sm:$0xff]
      %v425 = vld [vmem:[%s354 + $0x200] sm:$0xff]
      %v426 = vld [vmem:[%s354 + $0x208] sm:$0xff]
      %v427 = vld [vmem:[%s354 + $0x210] sm:$0xff]
      %v428 = vld [vmem:[%s354 + $0x218] sm:$0xff]
      %v429 = vld [vmem:[%s354 + $0x220] sm:$0xff]
      %v430 = vld [vmem:[%s354 + $0x228] sm:$0xff]
      %v431 = vld [vmem:[%s354 + $0x230] sm:$0xff]
      %v432 = vld [vmem:[%s354 + $0x238] sm:$0xff]
      %v433 = vld [vmem:[%s354 + $0x240] sm:$0xff]
      %v434 = vld [vmem:[%s354 + $0x248] sm:$0xff]
      %v435 = vld [vmem:[%s354 + $0x250] sm:$0xff]
      %v436 = vld [vmem:[%s354 + $0x258] sm:$0xff]
      %v437 = vld [vmem:[%s354 + $0x260] sm:$0xff]
      %v438 = vld [vmem:[%s354 + $0x268] sm:$0xff]
      %v439 = vld [vmem:[%s354 + $0x270] sm:$0xff]
      %v440 = vld [vmem:[%s354 + $0x278] sm:$0xff]
      %v441 = vld [vmem:[%s354 + $0x280] sm:$0xff]
      %v442 = vld [vmem:[%s354 + $0x288] sm:$0xff]
      %v443 = vld [vmem:[%s1] sm:$0xff]
      %v444 = vld [vmem:[%s1 + $0x8] sm:$0x1]
      %v445 = vld [vmem:[%s2] sm:$0x1]
      %v447 = vperm.slane %v445, 0
      %vm449 = vcmask 72704
      %v451 = vsel %vm449, %v361, 0
      %v454 = vsel %vm449, %v362, 0
      %v457 = vsel %vm449, %v363, 0
      %v460 = vsel %vm449, %v364, 0
      %v463 = vsel %vm449, %v365, 0
      %v466 = vsel %vm449, %v366, 0
      %v469 = vsel %vm449, %v367, 0
      %v472 = vsel %vm449, %v368, 0
      %v475 = vsel %vm449, %v369, 0
      %v478 = vsel %vm449, %v370, 0
      %v481 = vsel %vm449, %v371, 0
      %v484 = vsel %vm449, %v372, 0
      %v487 = vsel %vm449, %v373, 0
      %v490 = vsel %vm449, %v374, 0
      %v493 = vsel %vm449, %v375, 0
      %v496 = vsel %vm449, %v376, 0
      %v499 = vsel %vm449, %v377, 0
      %v502 = vsel %vm449, %v378, 0
      %v505 = vsel %vm449, %v379, 0
      %v508 = vsel %vm449, %v380, 0
      %v511 = vsel %vm449, %v381, 0
      %v514 = vsel %vm449, %v382, 0
      %v517 = vsel %vm449, %v383, 0
      %v520 = vsel %vm449, %v384, 0
      %v523 = vsel %vm449, %v385, 0
      %v526 = vsel %vm449, %v386, 0
      %v529 = vsel %vm449, %v387, 0
      %v532 = vsel %vm449, %v388, 0
      %v535 = vsel %vm449, %v389, 0
      %v538 = vsel %vm449, %v390, 0
      %v541 = vsel %vm449, %v391, 0
      %v544 = vsel %vm449, %v392, 0
      %v547 = vsel %vm449, %v393, 0
      %v550 = vsel %vm449, %v394, 0
      %v553 = vsel %vm449, %v395, 0
      %v556 = vsel %vm449, %v396, 0
      %v559 = vsel %vm449, %v397, 0
      %v562 = vsel %vm449, %v398, 0
      %v565 = vsel %vm449, %v399, 0
      %v568 = vsel %vm449, %v400, 0
      %v571 = vsel %vm449, %v401, 0
      %v574 = vsel %vm449, %v402, 0
      %v577 = vsel %vm449, %v403, 0
      %v580 = vsel %vm449, %v404, 0
      %v583 = vsel %vm449, %v405, 0
      %v586 = vsel %vm449, %v406, 0
      %v589 = vsel %vm449, %v407, 0
      %v592 = vsel %vm449, %v408, 0
      %v595 = vsel %vm449, %v409, 0
      %v598 = vsel %vm449, %v410, 0
      %v601 = vsel %vm449, %v411, 0
      %v604 = vsel %vm449, %v412, 0
      %v607 = vsel %vm449, %v413, 0
      %v610 = vsel %vm449, %v414, 0
      %v613 = vsel %vm449, %v415, 0
      %v616 = vsel %vm449, %v416, 0
      %v619 = vsel %vm449, %v417, 0
      %v622 = vsel %vm449, %v418, 0
      %v625 = vsel %vm449, %v419, 0
      %v628 = vsel %vm449, %v420, 0
      %v631 = vsel %vm449, %v421, 0
      %v634 = vsel %vm449, %v422, 0
      %v637 = vsel %vm449, %v423, 0
      %v640 = vsel %vm449, %v424, 0
      %v643 = vsel %vm449, %v425, 0
      %v646 = vsel %vm449, %v426, 0
      %v649 = vsel %vm449, %v427, 0
      %v652 = vsel %vm449, %v428, 0
      %v655 = vsel %vm449, %v429, 0
      %v658 = vsel %vm449, %v430, 0
      %v661 = vsel %vm449, %v431, 0
      %v664 = vsel %vm449, %v432, 0
      %v667 = vsel %vm449, %v433, 0
      %v670 = vsel %vm449, %v434, 0
      %v673 = vsel %vm449, %v435, 0
      %v676 = vsel %vm449, %v436, 0
      %v679 = vsel %vm449, %v437, 0
      %v682 = vsel %vm449, %v438, 0
      %v685 = vsel %vm449, %v439, 0
      %v688 = vsel %vm449, %v440, 0
      %v691 = vsel %vm449, %v441, 0
      %v694 = vsel %vm449, %v442, 0
      %vm696 = vcmask 1040384
      %v698 = vsel %vm696, %v444, 0
      %700 = vmatpush.msra.mxu0 0.0
      %701 = vmatpush.msra.mxu0 0.0
      %702 = vmatpush.msra.mxu0 0.0
      %703 = vmatpush.msra.mxu0 0.0
      %704 = vmatpush.msra.mxu0 0.0
      %705 = vmatpush.msra.mxu0 0.0
      %706 = vmatpush.msra.mxu0 0.0
      %707 = vmatpush.msra.mxu0 0.0
      %708 = vmatpush.msra.mxu0 0.0
      %709 = vmatpush.msra.mxu0 0.0
      %710 = vmatpush.msra.mxu0 0.0
      %711 = vmatpush.msra.mxu0 0.0
      %712 = vmatpush.msra.mxu0 0.0
      %713 = vmatpush.msra.mxu0 0.0
      %714 = vmatpush.msra.mxu0 %v698
      %715 = vmatpush.msra.mxu0 %v443
      %716 = vmatmul.f32.gmra.mxu0 %v451
      %v717 = vpop.f32.mrf.mxu0
      %v718 = vadd.f32 %v447, %v717
      %719 = vmatmul.f32.gmra.mxu0 %v454
      %v720 = vpop.f32.mrf.mxu0
      %v721 = vadd.f32 %v447, %v720
      %722 = vmatmul.f32.gmra.mxu0 %v457
      %v723 = vpop.f32.mrf.mxu0
      %v724 = vadd.f32 %v447, %v723
      %725 = vmatmul.f32.gmra.mxu0 %v460
      %v726 = vpop.f32.mrf.mxu0
      %v727 = vadd.f32 %v447, %v726
      %728 = vmatmul.f32.gmra.mxu0 %v463
      %v729 = vpop.f32.mrf.mxu0
      %v730 = vadd.f32 %v447, %v729
      %731 = vmatmul.f32.gmra.mxu0 %v466
      %v732 = vpop.f32.mrf.mxu0
      %v733 = vadd.f32 %v447, %v732
      %734 = vmatmul.f32.gmra.mxu0 %v469
      %v735 = vpop.f32.mrf.mxu0
      %v736 = vadd.f32 %v447, %v735
      %737 = vmatmul.f32.gmra.mxu0 %v472
      %v738 = vpop.f32.mrf.mxu0
      %v739 = vadd.f32 %v447, %v738
      %740 = vmatmul.f32.gmra.mxu0 %v475
      %v741 = vpop.f32.mrf.mxu0
      %v742 = vadd.f32 %v447, %v741
      %743 = vmatmul.f32.gmra.mxu0 %v478
      %v744 = vpop.f32.mrf.mxu0
      %v745 = vadd.f32 %v447, %v744
      %746 = vmatmul.f32.gmra.mxu0 %v481
      %v747 = vpop.f32.mrf.mxu0
      %v748 = vadd.f32 %v447, %v747
      %749 = vmatmul.f32.gmra.mxu0 %v484
      %v750 = vpop.f32.mrf.mxu0
      %v751 = vadd.f32 %v447, %v750
      %752 = vmatmul.f32.gmra.mxu0 %v487
      %v753 = vpop.f32.mrf.mxu0
      %v754 = vadd.f32 %v447, %v753
      %755 = vmatmul.f32.gmra.mxu0 %v490
      %v756 = vpop.f32.mrf.mxu0
      %v757 = vadd.f32 %v447, %v756
      %758 = vmatmul.f32.gmra.mxu0 %v493
      %v759 = vpop.f32.mrf.mxu0
      %v760 = vadd.f32 %v447, %v759
      %761 = vmatmul.f32.gmra.mxu0 %v496
      %v762 = vpop.f32.mrf.mxu0
      %v763 = vadd.f32 %v447, %v762
      %764 = vmatmul.f32.gmra.mxu0 %v499
      %v765 = vpop.f32.mrf.mxu0
      %v766 = vadd.f32 %v447, %v765
      %767 = vmatmul.f32.gmra.mxu0 %v502
      %v768 = vpop.f32.mrf.mxu0
      %v769 = vadd.f32 %v447, %v768
      %770 = vmatmul.f32.gmra.mxu0 %v505
      %v771 = vpop.f32.mrf.mxu0
      %v772 = vadd.f32 %v447, %v771
      %773 = vmatmul.f32.gmra.mxu0 %v508
      %v774 = vpop.f32.mrf.mxu0
      %v775 = vadd.f32 %v447, %v774
      %776 = vmatmul.f32.gmra.mxu0 %v511
      %v777 = vpop.f32.mrf.mxu0
      %v778 = vadd.f32 %v447, %v777
      %779 = vmatmul.f32.gmra.mxu0 %v514
      %v780 = vpop.f32.mrf.mxu0
      %v781 = vadd.f32 %v447, %v780
      %782 = vmatmul.f32.gmra.mxu0 %v517
      %v783 = vpop.f32.mrf.mxu0
      %v784 = vadd.f32 %v447, %v783
      %785 = vmatmul.f32.gmra.mxu0 %v520
      %v786 = vpop.f32.mrf.mxu0
      %v787 = vadd.f32 %v447, %v786
      %788 = vmatmul.f32.gmra.mxu0 %v523
      %v789 = vpop.f32.mrf.mxu0
      %v790 = vadd.f32 %v447, %v789
      %791 = vmatmul.f32.gmra.mxu0 %v526
      %v792 = vpop.f32.mrf.mxu0
      %v793 = vadd.f32 %v447, %v792
      %794 = vmatmul.f32.gmra.mxu0 %v529
      %v795 = vpop.f32.mrf.mxu0
      %v796 = vadd.f32 %v447, %v795
      %797 = vmatmul.f32.gmra.mxu0 %v532
      %v798 = vpop.f32.mrf.mxu0
      %v799 = vadd.f32 %v447, %v798
      %800 = vmatmul.f32.gmra.mxu0 %v535
      %v801 = vpop.f32.mrf.mxu0
      %v802 = vadd.f32 %v447, %v801
      %803 = vmatmul.f32.gmra.mxu0 %v538
      %v804 = vpop.f32.mrf.mxu0
      %v805 = vadd.f32 %v447, %v804
      %806 = vmatmul.f32.gmra.mxu0 %v541
      %v807 = vpop.f32.mrf.mxu0
      %v808 = vadd.f32 %v447, %v807
      %809 = vmatmul.f32.gmra.mxu0 %v544
      %v810 = vpop.f32.mrf.mxu0
      %v811 = vadd.f32 %v447, %v810
      %812 = vmatmul.f32.gmra.mxu0 %v547
      %v813 = vpop.f32.mrf.mxu0
      %v814 = vadd.f32 %v447, %v813
      %815 = vmatmul.f32.gmra.mxu0 %v550
      %v816 = vpop.f32.mrf.mxu0
      %v817 = vadd.f32 %v447, %v816
      %818 = vmatmul.f32.gmra.mxu0 %v553
      %v819 = vpop.f32.mrf.mxu0
      %v820 = vadd.f32 %v447, %v819
      %821 = vmatmul.f32.gmra.mxu0 %v556
      %v822 = vpop.f32.mrf.mxu0
      %v823 = vadd.f32 %v447, %v822
      %824 = vmatmul.f32.gmra.mxu0 %v559
      %v825 = vpop.f32.mrf.mxu0
      %v826 = vadd.f32 %v447, %v825
      %827 = vmatmul.f32.gmra.mxu0 %v562
      %v828 = vpop.f32.mrf.mxu0
      %v829 = vadd.f32 %v447, %v828
      %830 = vmatmul.f32.gmra.mxu0 %v565
      %v831 = vpop.f32.mrf.mxu0
      %v832 = vadd.f32 %v447, %v831
      %833 = vmatmul.f32.gmra.mxu0 %v568
      %v834 = vpop.f32.mrf.mxu0
      %v835 = vadd.f32 %v447, %v834
      %836 = vmatmul.f32.gmra.mxu0 %v571
      %v837 = vpop.f32.mrf.mxu0
      %v838 = vadd.f32 %v447, %v837
      %839 = vmatmul.f32.gmra.mxu0 %v574
      %v840 = vpop.f32.mrf.mxu0
      %v841 = vadd.f32 %v447, %v840
      %842 = vmatmul.f32.gmra.mxu0 %v577
      %v843 = vpop.f32.mrf.mxu0
      %v844 = vadd.f32 %v447, %v843
      %845 = vmatmul.f32.gmra.mxu0 %v580
      %v846 = vpop.f32.mrf.mxu0
      %v847 = vadd.f32 %v447, %v846
      %848 = vmatmul.f32.gmra.mxu0 %v583
      %v849 = vpop.f32.mrf.mxu0
      %v850 = vadd.f32 %v447, %v849
      %851 = vmatmul.f32.gmra.mxu0 %v586
      %v852 = vpop.f32.mrf.mxu0
      %v853 = vadd.f32 %v447, %v852
      %854 = vmatmul.f32.gmra.mxu0 %v589
      %v855 = vpop.f32.mrf.mxu0
      %v856 = vadd.f32 %v447, %v855
      %857 = vmatmul.f32.gmra.mxu0 %v592
      %v858 = vpop.f32.mrf.mxu0
      %v859 = vadd.f32 %v447, %v858
      %860 = vmatmul.f32.gmra.mxu0 %v595
      %v861 = vpop.f32.mrf.mxu0
      %v862 = vadd.f32 %v447, %v861
      %863 = vmatmul.f32.gmra.mxu0 %v598
      %v864 = vpop.f32.mrf.mxu0
      %v865 = vadd.f32 %v447, %v864
      %866 = vmatmul.f32.gmra.mxu0 %v601
      %v867 = vpop.f32.mrf.mxu0
      %v868 = vadd.f32 %v447, %v867
      %869 = vmatmul.f32.gmra.mxu0 %v604
      %v870 = vpop.f32.mrf.mxu0
      %v871 = vadd.f32 %v447, %v870
      %872 = vmatmul.f32.gmra.mxu0 %v607
      %v873 = vpop.f32.mrf.mxu0
      %v874 = vadd.f32 %v447, %v873
      %875 = vmatmul.f32.gmra.mxu0 %v610
      %v876 = vpop.f32.mrf.mxu0
      %v877 = vadd.f32 %v447, %v876
      %878 = vmatmul.f32.gmra.mxu0 %v613
      %v879 = vpop.f32.mrf.mxu0
      %v880 = vadd.f32 %v447, %v879
      %881 = vmatmul.f32.gmra.mxu0 %v616
      %v882 = vpop.f32.mrf.mxu0
      %v883 = vadd.f32 %v447, %v882
      %884 = vmatmul.f32.gmra.mxu0 %v619
      %v885 = vpop.f32.mrf.mxu0
      %v886 = vadd.f32 %v447, %v885
      %887 = vmatmul.f32.gmra.mxu0 %v622
      %v888 = vpop.f32.mrf.mxu0
      %v889 = vadd.f32 %v447, %v888
      %890 = vmatmul.f32.gmra.mxu0 %v625
      %v891 = vpop.f32.mrf.mxu0
      %v892 = vadd.f32 %v447, %v891
      %893 = vmatmul.f32.gmra.mxu0 %v628
      %v894 = vpop.f32.mrf.mxu0
      %v895 = vadd.f32 %v447, %v894
      %896 = vmatmul.f32.gmra.mxu0 %v631
      %v897 = vpop.f32.mrf.mxu0
      %v898 = vadd.f32 %v447, %v897
      %899 = vmatmul.f32.gmra.mxu0 %v634
      %v900 = vpop.f32.mrf.mxu0
      %v901 = vadd.f32 %v447, %v900
      %902 = vmatmul.f32.gmra.mxu0 %v637
      %v903 = vpop.f32.mrf.mxu0
      %v904 = vadd.f32 %v447, %v903
      %905 = vmatmul.f32.gmra.mxu0 %v640
      %v906 = vpop.f32.mrf.mxu0
      %v907 = vadd.f32 %v447, %v906
      %908 = vmatmul.f32.gmra.mxu0 %v643
      %v909 = vpop.f32.mrf.mxu0
      %v910 = vadd.f32 %v447, %v909
      %911 = vmatmul.f32.gmra.mxu0 %v646
      %v912 = vpop.f32.mrf.mxu0
      %v913 = vadd.f32 %v447, %v912
      %914 = vmatmul.f32.gmra.mxu0 %v649
      %v915 = vpop.f32.mrf.mxu0
      %v916 = vadd.f32 %v447, %v915
      %917 = vmatmul.f32.gmra.mxu0 %v652
      %v918 = vpop.f32.mrf.mxu0
      %v919 = vadd.f32 %v447, %v918
      %920 = vmatmul.f32.gmra.mxu0 %v655
      %v921 = vpop.f32.mrf.mxu0
      %v922 = vadd.f32 %v447, %v921
      %923 = vmatmul.f32.gmra.mxu0 %v658
      %v924 = vpop.f32.mrf.mxu0
      %v925 = vadd.f32 %v447, %v924
      %926 = vmatmul.f32.gmra.mxu0 %v661
      %v927 = vpop.f32.mrf.mxu0
      %v928 = vadd.f32 %v447, %v927
      %929 = vmatmul.f32.gmra.mxu0 %v664
      %v930 = vpop.f32.mrf.mxu0
      %v931 = vadd.f32 %v447, %v930
      %932 = vmatmul.f32.gmra.mxu0 %v667
      %v933 = vpop.f32.mrf.mxu0
      %v934 = vadd.f32 %v447, %v933
      %935 = vmatmul.f32.gmra.mxu0 %v670
      %v936 = vpop.f32.mrf.mxu0
      %v937 = vadd.f32 %v447, %v936
      %938 = vmatmul.f32.gmra.mxu0 %v673
      %v939 = vpop.f32.mrf.mxu0
      %v940 = vadd.f32 %v447, %v939
      %941 = vmatmul.f32.gmra.mxu0 %v676
      %v942 = vpop.f32.mrf.mxu0
      %v943 = vadd.f32 %v447, %v942
      %944 = vmatmul.f32.gmra.mxu0 %v679
      %v945 = vpop.f32.mrf.mxu0
      %v946 = vadd.f32 %v447, %v945
      %947 = vmatmul.f32.gmra.mxu0 %v682
      %v948 = vpop.f32.mrf.mxu0
      %v949 = vadd.f32 %v447, %v948
      %950 = vmatmul.f32.gmra.mxu0 %v685
      %v951 = vpop.f32.mrf.mxu0
      %v952 = vadd.f32 %v447, %v951
      %953 = vmatmul.f32.gmra.mxu0 %v688
      %v954 = vpop.f32.mrf.mxu0
      %v955 = vadd.f32 %v447, %v954
      %956 = vmatmul.f32.gmra.mxu0 %v691
      %v957 = vpop.f32.mrf.mxu0
      %v958 = vadd.f32 %v447, %v957
      %959 = vmatmul.f32.gmra.mxu0 %v694
      %v960 = vpop.f32.mrf.mxu0
      %v961 = vadd.f32 %v447, %v960
      %962 = vdwg.mxu0
      %v963 = vmax.f32 %v718, 0.0
      %v964 = vmax.f32 %v721, 0.0
      %v965 = vmax.f32 %v724, 0.0
      %v966 = vmax.f32 %v727, 0.0
      %v967 = vmax.f32 %v730, 0.0
      %v968 = vmax.f32 %v733, 0.0
      %v969 = vmax.f32 %v736, 0.0
      %v970 = vmax.f32 %v739, 0.0
      %v971 = vmax.f32 %v742, 0.0
      %v972 = vmax.f32 %v745, 0.0
      %v973 = vmax.f32 %v748, 0.0
      %v974 = vmax.f32 %v751, 0.0
      %v975 = vmax.f32 %v754, 0.0
      %v976 = vmax.f32 %v757, 0.0
      %v977 = vmax.f32 %v760, 0.0
      %v978 = vmax.f32 %v763, 0.0
      %v979 = vmax.f32 %v766, 0.0
      %v980 = vmax.f32 %v769, 0.0
      %v981 = vmax.f32 %v772, 0.0
      %v982 = vmax.f32 %v775, 0.0
      %v983 = vmax.f32 %v778, 0.0
      %v984 = vmax.f32 %v781, 0.0
      %v985 = vmax.f32 %v784, 0.0
      %v986 = vmax.f32 %v787, 0.0
      %v987 = vmax.f32 %v790, 0.0
      %v988 = vmax.f32 %v793, 0.0
      %v989 = vmax.f32 %v796, 0.0
      %v990 = vmax.f32 %v799, 0.0
      %v991 = vmax.f32 %v802, 0.0
      %v992 = vmax.f32 %v805, 0.0
      %v993 = vmax.f32 %v808, 0.0
      %v994 = vmax.f32 %v811, 0.0
      %v995 = vmax.f32 %v814, 0.0
      %v996 = vmax.f32 %v817, 0.0
      %v997 = vmax.f32 %v820, 0.0
      %v998 = vmax.f32 %v823, 0.0
      %v999 = vmax.f32 %v826, 0.0
      %v1000 = vmax.f32 %v829, 0.0
      %v1001 = vmax.f32 %v832, 0.0
      %v1002 = vmax.f32 %v835, 0.0
      %v1003 = vmax.f32 %v838, 0.0
      %v1004 = vmax.f32 %v841, 0.0
      %v1005 = vmax.f32 %v844, 0.0
      %v1006 = vmax.f32 %v847, 0.0
      %v1007 = vmax.f32 %v850, 0.0
      %v1008 = vmax.f32 %v853, 0.0
      %v1009 = vmax.f32 %v856, 0.0
      %v1010 = vmax.f32 %v859, 0.0
      %v1011 = vmax.f32 %v862, 0.0
      %v1012 = vmax.f32 %v865, 0.0
      %v1013 = vmax.f32 %v868, 0.0
      %v1014 = vmax.f32 %v871, 0.0
      %v1015 = vmax.f32 %v874, 0.0
      %v1016 = vmax.f32 %v877, 0.0
      %v1017 = vmax.f32 %v880, 0.0
      %v1018 = vmax.f32 %v883, 0.0
      %v1019 = vmax.f32 %v886, 0.0
      %v1020 = vmax.f32 %v889, 0.0
      %v1021 = vmax.f32 %v892, 0.0
      %v1022 = vmax.f32 %v895, 0.0
      %v1023 = vmax.f32 %v898, 0.0
      %v1024 = vmax.f32 %v901, 0.0
      %v1025 = vmax.f32 %v904, 0.0
      %v1026 = vmax.f32 %v907, 0.0
      %v1027 = vmax.f32 %v910, 0.0
      %v1028 = vmax.f32 %v913, 0.0
      %v1029 = vmax.f32 %v916, 0.0
      %v1030 = vmax.f32 %v919, 0.0
      %v1031 = vmax.f32 %v922, 0.0
      %v1032 = vmax.f32 %v925, 0.0
      %v1033 = vmax.f32 %v928, 0.0
      %v1034 = vmax.f32 %v931, 0.0
      %v1035 = vmax.f32 %v934, 0.0
      %v1036 = vmax.f32 %v937, 0.0
      %v1037 = vmax.f32 %v940, 0.0
      %v1038 = vmax.f32 %v943, 0.0
      %v1039 = vmax.f32 %v946, 0.0
      %v1040 = vmax.f32 %v949, 0.0
      %v1041 = vmax.f32 %v952, 0.0
      %v1042 = vmax.f32 %v955, 0.0
      %v1043 = vmax.f32 %v958, 0.0
      %v1044 = vmax.f32 %v961, 0.0
      %vm1125 = vcmask 1045504
      %v1126 = vrot.slane %v965, 2
      %v1127 = vrot.slane %v966, 2
      %v1128 = vsel %vm1125, %v1126, %v1127
      %v1129 = vrot.slane %v967, 2
      %v1130 = vsel %vm1125, %v1127, %v1129
      %v1131 = vrot.slane %v968, 2
      %v1132 = vsel %vm1125, %v1129, %v1131
      %v1133 = vrot.slane %v969, 2
      %v1134 = vsel %vm1125, %v1131, %v1133
      %v1135 = vrot.slane %v970, 2
      %v1136 = vsel %vm1125, %v1133, %v1135
      %v1137 = vrot.slane %v971, 2
      %v1138 = vsel %vm1125, %v1135, %v1137
      %v1139 = vrot.slane %v972, 2
      %v1140 = vsel %vm1125, %v1137, %v1139
      %v1141 = vrot.slane %v973, 2
      %v1142 = vsel %vm1125, %v1139, %v1141
      %v1143 = vrot.slane %v974, 2
      %v1144 = vsel %vm1125, %v1141, %v1143
      %v1145 = vrot.slane %v975, 2
      %v1146 = vsel %vm1125, %v1143, %v1145
      %v1147 = vrot.slane %v976, 2
      %v1148 = vsel %vm1125, %v1145, %v1147
      %v1149 = vrot.slane %v977, 2
      %v1150 = vsel %vm1125, %v1147, %v1149
      %v1151 = vrot.slane %v978, 2
      %v1152 = vsel %vm1125, %v1149, %v1151
      %v1153 = vrot.slane %v979, 2
      %v1154 = vsel %vm1125, %v1151, %v1153
      %v1155 = vrot.slane %v980, 2
      %v1156 = vsel %vm1125, %v1153, %v1155
      %v1157 = vrot.slane %v981, 2
      %v1158 = vsel %vm1125, %v1155, %v1157
      %v1159 = vrot.slane %v982, 2
      %v1160 = vsel %vm1125, %v1157, %v1159
      %v1161 = vrot.slane %v983, 2
      %v1162 = vsel %vm1125, %v1159, %v1161
      %v1163 = vrot.slane %v984, 2
      %v1164 = vsel %vm1125, %v1161, %v1163
      %v1165 = vrot.slane %v985, 2
      %v1166 = vsel %vm1125, %v1163, %v1165
      %v1167 = vrot.slane %v986, 2
      %v1168 = vsel %vm1125, %v1165, %v1167
      %v1169 = vrot.slane %v987, 2
      %v1170 = vsel %vm1125, %v1167, %v1169
      %v1171 = vrot.slane %v988, 2
      %v1172 = vsel %vm1125, %v1169, %v1171
      %v1173 = vrot.slane %v989, 2
      %v1174 = vsel %vm1125, %v1171, %v1173
      %v1175 = vrot.slane %v990, 2
      %v1176 = vsel %vm1125, %v1173, %v1175
      %v1177 = vrot.slane %v991, 2
      %v1178 = vsel %vm1125, %v1175, %v1177
      %v1179 = vrot.slane %v992, 2
      %v1180 = vsel %vm1125, %v1177, %v1179
      %v1181 = vrot.slane %v993, 2
      %v1182 = vsel %vm1125, %v1179, %v1181
      %v1183 = vrot.slane %v994, 2
      %v1184 = vsel %vm1125, %v1181, %v1183
      %v1185 = vrot.slane %v995, 2
      %v1186 = vsel %vm1125, %v1183, %v1185
      %v1187 = vrot.slane %v996, 2
      %v1188 = vsel %vm1125, %v1185, %v1187
      %v1189 = vrot.slane %v997, 2
      %v1190 = vsel %vm1125, %v1187, %v1189
      %v1191 = vrot.slane %v998, 2
      %v1192 = vsel %vm1125, %v1189, %v1191
      %v1193 = vrot.slane %v999, 2
      %v1194 = vsel %vm1125, %v1191, %v1193
      %v1195 = vrot.slane %v1000, 2
      %v1196 = vsel %vm1125, %v1193, %v1195
      %v1197 = vrot.slane %v1001, 2
      %v1198 = vsel %vm1125, %v1195, %v1197
      %v1199 = vrot.slane %v1002, 2
      %v1200 = vsel %vm1125, %v1197, %v1199
      %v1201 = vrot.slane %v1003, 2
      %v1202 = vsel %vm1125, %v1199, %v1201
      %v1203 = vrot.slane %v1004, 2
      %v1204 = vsel %vm1125, %v1201, %v1203
      %v1205 = vrot.slane %v1005, 2
      %v1206 = vsel %vm1125, %v1203, %v1205
      %v1207 = vrot.slane %v1006, 2
      %v1208 = vsel %vm1125, %v1205, %v1207
      %v1209 = vrot.slane %v1007, 2
      %v1210 = vsel %vm1125, %v1207, %v1209
      %v1211 = vrot.slane %v1008, 2
      %v1212 = vsel %vm1125, %v1209, %v1211
      %v1213 = vrot.slane %v1009, 2
      %v1214 = vsel %vm1125, %v1211, %v1213
      %v1215 = vrot.slane %v1010, 2
      %v1216 = vsel %vm1125, %v1213, %v1215
      %v1217 = vrot.slane %v1011, 2
      %v1218 = vsel %vm1125, %v1215, %v1217
      %v1219 = vrot.slane %v1012, 2
      %v1220 = vsel %vm1125, %v1217, %v1219
      %v1221 = vrot.slane %v1013, 2
      %v1222 = vsel %vm1125, %v1219, %v1221
      %v1223 = vrot.slane %v1014, 2
      %v1224 = vsel %vm1125, %v1221, %v1223
      %v1225 = vrot.slane %v1015, 2
      %v1226 = vsel %vm1125, %v1223, %v1225
      %v1227 = vrot.slane %v1016, 2
      %v1228 = vsel %vm1125, %v1225, %v1227
      %v1229 = vrot.slane %v1017, 2
      %v1230 = vsel %vm1125, %v1227, %v1229
      %v1231 = vrot.slane %v1018, 2
      %v1232 = vsel %vm1125, %v1229, %v1231
      %v1233 = vrot.slane %v1019, 2
      %v1234 = vsel %vm1125, %v1231, %v1233
      %v1235 = vrot.slane %v1020, 2
      %v1236 = vsel %vm1125, %v1233, %v1235
      %v1237 = vrot.slane %v1021, 2
      %v1238 = vsel %vm1125, %v1235, %v1237
      %v1239 = vrot.slane %v1022, 2
      %v1240 = vsel %vm1125, %v1237, %v1239
      %v1241 = vrot.slane %v1023, 2
      %v1242 = vsel %vm1125, %v1239, %v1241
      %v1243 = vrot.slane %v1024, 2
      %v1244 = vsel %vm1125, %v1241, %v1243
      %v1245 = vrot.slane %v1025, 2
      %v1246 = vsel %vm1125, %v1243, %v1245
      %v1247 = vrot.slane %v1026, 2
      %v1248 = vsel %vm1125, %v1245, %v1247
      %v1249 = vrot.slane %v1027, 2
      %v1250 = vsel %vm1125, %v1247, %v1249
      %v1251 = vrot.slane %v1028, 2
      %v1252 = vsel %vm1125, %v1249, %v1251
      %v1253 = vrot.slane %v1029, 2
      %v1254 = vsel %vm1125, %v1251, %v1253
      %v1255 = vrot.slane %v1030, 2
      %v1256 = vsel %vm1125, %v1253, %v1255
      %v1257 = vrot.slane %v1031, 2
      %v1258 = vsel %vm1125, %v1255, %v1257
      %v1259 = vrot.slane %v1032, 2
      %v1260 = vsel %vm1125, %v1257, %v1259
      %v1261 = vrot.slane %v1033, 2
      %v1262 = vsel %vm1125, %v1259, %v1261
      %v1263 = vrot.slane %v1034, 2
      %v1264 = vsel %vm1125, %v1261, %v1263
      %v1265 = vrot.slane %v1035, 2
      %v1266 = vsel %vm1125, %v1263, %v1265
      %v1267 = vrot.slane %v1036, 2
      %v1268 = vsel %vm1125, %v1265, %v1267
      %v1269 = vrot.slane %v1037, 2
      %v1270 = vsel %vm1125, %v1267, %v1269
      %v1271 = vrot.slane %v1038, 2
      %v1272 = vsel %vm1125, %v1269, %v1271
      %v1273 = vrot.slane %v1039, 2
      %v1274 = vsel %vm1125, %v1271, %v1273
      %v1275 = vrot.slane %v1040, 2
      %v1276 = vsel %vm1125, %v1273, %v1275
      %v1277 = vrot.slane %v1041, 2
      %v1278 = vsel %vm1125, %v1275, %v1277
      %v1279 = vrot.slane %v1042, 2
      %v1280 = vsel %vm1125, %v1277, %v1279
      %v1281 = vrot.slane %v1043, 2
      %v1282 = vsel %vm1125, %v1279, %v1281
      %v1283 = vrot.slane %v1044, 2
      %v1284 = vsel %vm1125, %v1281, %v1283
      %v1365 = vmax.f32 %v963, %v1128
      %v1366 = vmax.f32 %v964, %v1130
      %v1367 = vmax.f32 %v965, %v1132
      %v1368 = vmax.f32 %v966, %v1134
      %v1369 = vmax.f32 %v967, %v1136
      %v1370 = vmax.f32 %v968, %v1138
      %v1371 = vmax.f32 %v969, %v1140
      %v1372 = vmax.f32 %v970, %v1142
      %v1373 = vmax.f32 %v971, %v1144
      %v1374 = vmax.f32 %v972, %v1146
      %v1375 = vmax.f32 %v973, %v1148
      %v1376 = vmax.f32 %v974, %v1150
      %v1377 = vmax.f32 %v975, %v1152
      %v1378 = vmax.f32 %v976, %v1154
      %v1379 = vmax.f32 %v977, %v1156
      %v1380 = vmax.f32 %v978, %v1158
      %v1381 = vmax.f32 %v979, %v1160
      %v1382 = vmax.f32 %v980, %v1162
      %v1383 = vmax.f32 %v981, %v1164
      %v1384 = vmax.f32 %v982, %v1166
      %v1385 = vmax.f32 %v983, %v1168
      %v1386 = vmax.f32 %v984, %v1170
      %v1387 = vmax.f32 %v985, %v1172
      %v1388 = vmax.f32 %v986, %v1174
      %v1389 = vmax.f32 %v987, %v1176
      %v1390 = vmax.f32 %v988, %v1178
      %v1391 = vmax.f32 %v989, %v1180
      %v1392 = vmax.f32 %v990, %v1182
      %v1393 = vmax.f32 %v991, %v1184
      %v1394 = vmax.f32 %v992, %v1186
      %v1395 = vmax.f32 %v993, %v1188
      %v1396 = vmax.f32 %v994, %v1190
      %v1397 = vmax.f32 %v995, %v1192
      %v1398 = vmax.f32 %v996, %v1194
      %v1399 = vmax.f32 %v997, %v1196
      %v1400 = vmax.f32 %v998, %v1198
      %v1401 = vmax.f32 %v999, %v1200
      %v1402 = vmax.f32 %v1000, %v1202
      %v1403 = vmax.f32 %v1001, %v1204
      %v1404 = vmax.f32 %v1002, %v1206
      %v1405 = vmax.f32 %v1003, %v1208
      %v1406 = vmax.f32 %v1004, %v1210
      %v1407 = vmax.f32 %v1005, %v1212
      %v1408 = vmax.f32 %v1006, %v1214
      %v1409 = vmax.f32 %v1007, %v1216
      %v1410 = vmax.f32 %v1008, %v1218
      %v1411 = vmax.f32 %v1009, %v1220
      %v1412 = vmax.f32 %v1010, %v1222
      %v1413 = vmax.f32 %v1011, %v1224
      %v1414 = vmax.f32 %v1012, %v1226
      %v1415 = vmax.f32 %v1013, %v1228
      %v1416 = vmax.f32 %v1014, %v1230
      %v1417 = vmax.f32 %v1015, %v1232
      %v1418 = vmax.f32 %v1016, %v1234
      %v1419 = vmax.f32 %v1017, %v1236
      %v1420 = vmax.f32 %v1018, %v1238
      %v1421 = vmax.f32 %v1019, %v1240
      %v1422 = vmax.f32 %v1020, %v1242
      %v1423 = vmax.f32 %v1021, %v1244
      %v1424 = vmax.f32 %v1022, %v1246
      %v1425 = vmax.f32 %v1023, %v1248
      %v1426 = vmax.f32 %v1024, %v1250
      %v1427 = vmax.f32 %v1025, %v1252
      %v1428 = vmax.f32 %v1026, %v1254
      %v1429 = vmax.f32 %v1027, %v1256
      %v1430 = vmax.f32 %v1028, %v1258
      %v1431 = vmax.f32 %v1029, %v1260
      %v1432 = vmax.f32 %v1030, %v1262
      %v1433 = vmax.f32 %v1031, %v1264
      %v1434 = vmax.f32 %v1032, %v1266
      %v1435 = vmax.f32 %v1033, %v1268
      %v1436 = vmax.f32 %v1034, %v1270
      %v1437 = vmax.f32 %v1035, %v1272
      %v1438 = vmax.f32 %v1036, %v1274
      %v1439 = vmax.f32 %v1037, %v1276
      %v1440 = vmax.f32 %v1038, %v1278
      %v1441 = vmax.f32 %v1039, %v1280
      %v1442 = vmax.f32 %v1040, %v1282
      %v1443 = vmax.f32 %v1041, %v1284
      %v1444 = vmax.f32 %v1042, %v1283
      %vm1525 = vcmask 1046528
      %v1526 = vrot.slane %v1365, 1
      %v1527 = vrot.slane %v1366, 1
      %v1528 = vsel %vm1525, %v1526, %v1527
      %v1529 = vrot.slane %v1367, 1
      %v1530 = vsel %vm1525, %v1527, %v1529
      %v1531 = vrot.slane %v1368, 1
      %v1532 = vsel %vm1525, %v1529, %v1531
      %v1533 = vrot.slane %v1369, 1
      %v1534 = vsel %vm1525, %v1531, %v1533
      %v1535 = vrot.slane %v1370, 1
      %v1536 = vsel %vm1525, %v1533, %v1535
      %v1537 = vrot.slane %v1371, 1
      %v1538 = vsel %vm1525, %v1535, %v1537
      %v1539 = vrot.slane %v1372, 1
      %v1540 = vsel %vm1525, %v1537, %v1539
      %v1541 = vrot.slane %v1373, 1
      %v1542 = vsel %vm1525, %v1539, %v1541
      %v1543 = vrot.slane %v1374, 1
      %v1544 = vsel %vm1525, %v1541, %v1543
      %v1545 = vrot.slane %v1375, 1
      %v1546 = vsel %vm1525, %v1543, %v1545
      %v1547 = vrot.slane %v1376, 1
      %v1548 = vsel %vm1525, %v1545, %v1547
      %v1549 = vrot.slane %v1377, 1
      %v1550 = vsel %vm1525, %v1547, %v1549
      %v1551 = vrot.slane %v1378, 1
      %v1552 = vsel %vm1525, %v1549, %v1551
      %v1553 = vrot.slane %v1379, 1
      %v1554 = vsel %vm1525, %v1551, %v1553
      %v1555 = vrot.slane %v1380, 1
      %v1556 = vsel %vm1525, %v1553, %v1555
      %v1557 = vrot.slane %v1381, 1
      %v1558 = vsel %vm1525, %v1555, %v1557
      %v1559 = vrot.slane %v1382, 1
      %v1560 = vsel %vm1525, %v1557, %v1559
      %v1561 = vrot.slane %v1383, 1
      %v1562 = vsel %vm1525, %v1559, %v1561
      %v1563 = vrot.slane %v1384, 1
      %v1564 = vsel %vm1525, %v1561, %v1563
      %v1565 = vrot.slane %v1385, 1
      %v1566 = vsel %vm1525, %v1563, %v1565
      %v1567 = vrot.slane %v1386, 1
      %v1568 = vsel %vm1525, %v1565, %v1567
      %v1569 = vrot.slane %v1387, 1
      %v1570 = vsel %vm1525, %v1567, %v1569
      %v1571 = vrot.slane %v1388, 1
      %v1572 = vsel %vm1525, %v1569, %v1571
      %v1573 = vrot.slane %v1389, 1
      %v1574 = vsel %vm1525, %v1571, %v1573
      %v1575 = vrot.slane %v1390, 1
      %v1576 = vsel %vm1525, %v1573, %v1575
      %v1577 = vrot.slane %v1391, 1
      %v1578 = vsel %vm1525, %v1575, %v1577
      %v1579 = vrot.slane %v1392, 1
      %v1580 = vsel %vm1525, %v1577, %v1579
      %v1581 = vrot.slane %v1393, 1
      %v1582 = vsel %vm1525, %v1579, %v1581
      %v1583 = vrot.slane %v1394, 1
      %v1584 = vsel %vm1525, %v1581, %v1583
      %v1585 = vrot.slane %v1395, 1
      %v1586 = vsel %vm1525, %v1583, %v1585
      %v1587 = vrot.slane %v1396, 1
      %v1588 = vsel %vm1525, %v1585, %v1587
      %v1589 = vrot.slane %v1397, 1
      %v1590 = vsel %vm1525, %v1587, %v1589
      %v1591 = vrot.slane %v1398, 1
      %v1592 = vsel %vm1525, %v1589, %v1591
      %v1593 = vrot.slane %v1399, 1
      %v1594 = vsel %vm1525, %v1591, %v1593
      %v1595 = vrot.slane %v1400, 1
      %v1596 = vsel %vm1525, %v1593, %v1595
      %v1597 = vrot.slane %v1401, 1
      %v1598 = vsel %vm1525, %v1595, %v1597
      %v1599 = vrot.slane %v1402, 1
      %v1600 = vsel %vm1525, %v1597, %v1599
      %v1601 = vrot.slane %v1403, 1
      %v1602 = vsel %vm1525, %v1599, %v1601
      %v1603 = vrot.slane %v1404, 1
      %v1604 = vsel %vm1525, %v1601, %v1603
      %v1605 = vrot.slane %v1405, 1
      %v1606 = vsel %vm1525, %v1603, %v1605
      %v1607 = vrot.slane %v1406, 1
      %v1608 = vsel %vm1525, %v1605, %v1607
      %v1609 = vrot.slane %v1407, 1
      %v1610 = vsel %vm1525, %v1607, %v1609
      %v1611 = vrot.slane %v1408, 1
      %v1612 = vsel %vm1525, %v1609, %v1611
      %v1613 = vrot.slane %v1409, 1
      %v1614 = vsel %vm1525, %v1611, %v1613
      %v1615 = vrot.slane %v1410, 1
      %v1616 = vsel %vm1525, %v1613, %v1615
      %v1617 = vrot.slane %v1411, 1
      %v1618 = vsel %vm1525, %v1615, %v1617
      %v1619 = vrot.slane %v1412, 1
      %v1620 = vsel %vm1525, %v1617, %v1619
      %v1621 = vrot.slane %v1413, 1
      %v1622 = vsel %vm1525, %v1619, %v1621
      %v1623 = vrot.slane %v1414, 1
      %v1624 = vsel %vm1525, %v1621, %v1623
      %v1625 = vrot.slane %v1415, 1
      %v1626 = vsel %vm1525, %v1623, %v1625
      %v1627 = vrot.slane %v1416, 1
      %v1628 = vsel %vm1525, %v1625, %v1627
      %v1629 = vrot.slane %v1417, 1
      %v1630 = vsel %vm1525, %v1627, %v1629
      %v1631 = vrot.slane %v1418, 1
      %v1632 = vsel %vm1525, %v1629, %v1631
      %v1633 = vrot.slane %v1419, 1
      %v1634 = vsel %vm1525, %v1631, %v1633
      %v1635 = vrot.slane %v1420, 1
      %v1636 = vsel %vm1525, %v1633, %v1635
      %v1637 = vrot.slane %v1421, 1
      %v1638 = vsel %vm1525, %v1635, %v1637
      %v1639 = vrot.slane %v1422, 1
      %v1640 = vsel %vm1525, %v1637, %v1639
      %v1641 = vrot.slane %v1423, 1
      %v1642 = vsel %vm1525, %v1639, %v1641
      %v1643 = vrot.slane %v1424, 1
      %v1644 = vsel %vm1525, %v1641, %v1643
      %v1645 = vrot.slane %v1425, 1
      %v1646 = vsel %vm1525, %v1643, %v1645
      %v1647 = vrot.slane %v1426, 1
      %v1648 = vsel %vm1525, %v1645, %v1647
      %v1649 = vrot.slane %v1427, 1
      %v1650 = vsel %vm1525, %v1647, %v1649
      %v1651 = vrot.slane %v1428, 1
      %v1652 = vsel %vm1525, %v1649, %v1651
      %v1653 = vrot.slane %v1429, 1
      %v1654 = vsel %vm1525, %v1651, %v1653
      %v1655 = vrot.slane %v1430, 1
      %v1656 = vsel %vm1525, %v1653, %v1655
      %v1657 = vrot.slane %v1431, 1
      %v1658 = vsel %vm1525, %v1655, %v1657
      %v1659 = vrot.slane %v1432, 1
      %v1660 = vsel %vm1525, %v1657, %v1659
      %v1661 = vrot.slane %v1433, 1
      %v1662 = vsel %vm1525, %v1659, %v1661
      %v1663 = vrot.slane %v1434, 1
      %v1664 = vsel %vm1525, %v1661, %v1663
      %v1665 = vrot.slane %v1435, 1
      %v1666 = vsel %vm1525, %v1663, %v1665
      %v1667 = vrot.slane %v1436, 1
      %v1668 = vsel %vm1525, %v1665, %v1667
      %v1669 = vrot.slane %v1437, 1
      %v1670 = vsel %vm1525, %v1667, %v1669
      %v1671 = vrot.slane %v1438, 1
      %v1672 = vsel %vm1525, %v1669, %v1671
      %v1673 = vrot.slane %v1439, 1
      %v1674 = vsel %vm1525, %v1671, %v1673
      %v1675 = vrot.slane %v1440, 1
      %v1676 = vsel %vm1525, %v1673, %v1675
      %v1677 = vrot.slane %v1441, 1
      %v1678 = vsel %vm1525, %v1675, %v1677
      %v1679 = vrot.slane %v1442, 1
      %v1680 = vsel %vm1525, %v1677, %v1679
      %v1681 = vrot.slane %v1443, 1
      %v1682 = vsel %vm1525, %v1679, %v1681
      %v1683 = vrot.slane %v1444, 1
      %v1684 = vsel %vm1525, %v1681, %v1683
      %v1765 = vmax.f32 %v1365, %v1528
      %v1766 = vmax.f32 %v1366, %v1530
      %v1767 = vmax.f32 %v1367, %v1532
      %v1768 = vmax.f32 %v1368, %v1534
      %v1769 = vmax.f32 %v1369, %v1536
      %v1770 = vmax.f32 %v1370, %v1538
      %v1771 = vmax.f32 %v1371, %v1540
      %v1772 = vmax.f32 %v1372, %v1542
      %v1773 = vmax.f32 %v1373, %v1544
      %v1774 = vmax.f32 %v1374, %v1546
      %v1775 = vmax.f32 %v1375, %v1548
      %v1776 = vmax.f32 %v1376, %v1550
      %v1777 = vmax.f32 %v1377, %v1552
      %v1778 = vmax.f32 %v1378, %v1554
      %v1779 = vmax.f32 %v1379, %v1556
      %v1780 = vmax.f32 %v1380, %v1558
      %v1781 = vmax.f32 %v1381, %v1560
      %v1782 = vmax.f32 %v1382, %v1562
      %v1783 = vmax.f32 %v1383, %v1564
      %v1784 = vmax.f32 %v1384, %v1566
      %v1785 = vmax.f32 %v1385, %v1568
      %v1786 = vmax.f32 %v1386, %v1570
      %v1787 = vmax.f32 %v1387, %v1572
      %v1788 = vmax.f32 %v1388, %v1574
      %v1789 = vmax.f32 %v1389, %v1576
      %v1790 = vmax.f32 %v1390, %v1578
      %v1791 = vmax.f32 %v1391, %v1580
      %v1792 = vmax.f32 %v1392, %v1582
      %v1793 = vmax.f32 %v1393, %v1584
      %v1794 = vmax.f32 %v1394, %v1586
      %v1795 = vmax.f32 %v1395, %v1588
      %v1796 = vmax.f32 %v1396, %v1590
      %v1797 = vmax.f32 %v1397, %v1592
      %v1798 = vmax.f32 %v1398, %v1594
      %v1799 = vmax.f32 %v1399, %v1596
      %v1800 = vmax.f32 %v1400, %v1598
      %v1801 = vmax.f32 %v1401, %v1600
      %v1802 = vmax.f32 %v1402, %v1602
      %v1803 = vmax.f32 %v1403, %v1604
      %v1804 = vmax.f32 %v1404, %v1606
      %v1805 = vmax.f32 %v1405, %v1608
      %v1806 = vmax.f32 %v1406, %v1610
      %v1807 = vmax.f32 %v1407, %v1612
      %v1808 = vmax.f32 %v1408, %v1614
      %v1809 = vmax.f32 %v1409, %v1616
      %v1810 = vmax.f32 %v1410, %v1618
      %v1811 = vmax.f32 %v1411, %v1620
      %v1812 = vmax.f32 %v1412, %v1622
      %v1813 = vmax.f32 %v1413, %v1624
      %v1814 = vmax.f32 %v1414, %v1626
      %v1815 = vmax.f32 %v1415, %v1628
      %v1816 = vmax.f32 %v1416, %v1630
      %v1817 = vmax.f32 %v1417, %v1632
      %v1818 = vmax.f32 %v1418, %v1634
      %v1819 = vmax.f32 %v1419, %v1636
      %v1820 = vmax.f32 %v1420, %v1638
      %v1821 = vmax.f32 %v1421, %v1640
      %v1822 = vmax.f32 %v1422, %v1642
      %v1823 = vmax.f32 %v1423, %v1644
      %v1824 = vmax.f32 %v1424, %v1646
      %v1825 = vmax.f32 %v1425, %v1648
      %v1826 = vmax.f32 %v1426, %v1650
      %v1827 = vmax.f32 %v1427, %v1652
      %v1828 = vmax.f32 %v1428, %v1654
      %v1829 = vmax.f32 %v1429, %v1656
      %v1830 = vmax.f32 %v1430, %v1658
      %v1831 = vmax.f32 %v1431, %v1660
      %v1832 = vmax.f32 %v1432, %v1662
      %v1833 = vmax.f32 %v1433, %v1664
      %v1834 = vmax.f32 %v1434, %v1666
      %v1835 = vmax.f32 %v1435, %v1668
      %v1836 = vmax.f32 %v1436, %v1670
      %v1837 = vmax.f32 %v1437, %v1672
      %v1838 = vmax.f32 %v1438, %v1674
      %v1839 = vmax.f32 %v1439, %v1676
      %v1840 = vmax.f32 %v1440, %v1678
      %v1841 = vmax.f32 %v1441, %v1680
      %v1842 = vmax.f32 %v1442, %v1682
      %v1843 = vmax.f32 %v1443, %v1684
      %v1844 = vmax.f32 %v1444, %v1683
      %vm1845 = vcmask 261120
      %1846 = vst.msk [vmem:[#allocation4] sm:$0xff] %vm1845, %v1765
      %1847 = vst.msk [vmem:[#allocation4 + $0x8] sm:$0xff] %vm1845, %v1766
      %1848 = vst.msk [vmem:[#allocation4 + $0x10] sm:$0xff] %vm1845, %v1767
      %1849 = vst.msk [vmem:[#allocation4 + $0x18] sm:$0xff] %vm1845, %v1768
      %1850 = vst.msk [vmem:[#allocation4 + $0x20] sm:$0xff] %vm1845, %v1769
      %1851 = vst.msk [vmem:[#allocation4 + $0x28] sm:$0xff] %vm1845, %v1770
      %1852 = vst.msk [vmem:[#allocation4 + $0x30] sm:$0xff] %vm1845, %v1771
      %1853 = vst.msk [vmem:[#allocation4 + $0x38] sm:$0xff] %vm1845, %v1772
      %1854 = vst.msk [vmem:[#allocation4 + $0x40] sm:$0xff] %vm1845, %v1773
      %1855 = vst.msk [vmem:[#allocation4 + $0x48] sm:$0xff] %vm1845, %v1774
      %1856 = vst.msk [vmem:[#allocation4 + $0x50] sm:$0xff] %vm1845, %v1775
      %1857 = vst.msk [vmem:[#allocation4 + $0x58] sm:$0xff] %vm1845, %v1776
      %1858 = vst.msk [vmem:[#allocation4 + $0x60] sm:$0xff] %vm1845, %v1777
      %1859 = vst.msk [vmem:[#allocation4 + $0x68] sm:$0xff] %vm1845, %v1778
      %1860 = vst.msk [vmem:[#allocation4 + $0x70] sm:$0xff] %vm1845, %v1779
      %1861 = vst.msk [vmem:[#allocation4 + $0x78] sm:$0xff] %vm1845, %v1780
      %1862 = vst.msk [vmem:[#allocation4 + $0x80] sm:$0xff] %vm1845, %v1781
      %1863 = vst.msk [vmem:[#allocation4 + $0x88] sm:$0xff] %vm1845, %v1782
      %1864 = vst.msk [vmem:[#allocation4 + $0x90] sm:$0xff] %vm1845, %v1783
      %1865 = vst.msk [vmem:[#allocation4 + $0x98] sm:$0xff] %vm1845, %v1784
      %1866 = vst.msk [vmem:[#allocation4 + $0xa0] sm:$0xff] %vm1845, %v1785
      %1867 = vst.msk [vmem:[#allocation4 + $0xa8] sm:$0xff] %vm1845, %v1786
      %1868 = vst.msk [vmem:[#allocation4 + $0xb0] sm:$0xff] %vm1845, %v1787
      %1869 = vst.msk [vmem:[#allocation4 + $0xb8] sm:$0xff] %vm1845, %v1788
      %1870 = vst.msk [vmem:[#allocation4 + $0xc0] sm:$0xff] %vm1845, %v1789
      %1871 = vst.msk [vmem:[#allocation4 + $0xc8] sm:$0xff] %vm1845, %v1790
      %1872 = vst.msk [vmem:[#allocation4 + $0xd0] sm:$0xff] %vm1845, %v1791
      %1873 = vst.msk [vmem:[#allocation4 + $0xd8] sm:$0xff] %vm1845, %v1792
      %1874 = vst.msk [vmem:[#allocation4 + $0xe0] sm:$0xff] %vm1845, %v1793
      %1875 = vst.msk [vmem:[#allocation4 + $0xe8] sm:$0xff] %vm1845, %v1794
      %1876 = vst.msk [vmem:[#allocation4 + $0xf0] sm:$0xff] %vm1845, %v1795
      %1877 = vst.msk [vmem:[#allocation4 + $0xf8] sm:$0xff] %vm1845, %v1796
      %1878 = vst.msk [vmem:[#allocation4 + $0x100] sm:$0xff] %vm1845, %v1797
      %1879 = vst.msk [vmem:[#allocation4 + $0x108] sm:$0xff] %vm1845, %v1798
      %1880 = vst.msk [vmem:[#allocation4 + $0x110] sm:$0xff] %vm1845, %v1799
      %1881 = vst.msk [vmem:[#allocation4 + $0x118] sm:$0xff] %vm1845, %v1800
      %1882 = vst.msk [vmem:[#allocation4 + $0x120] sm:$0xff] %vm1845, %v1801
      %1883 = vst.msk [vmem:[#allocation4 + $0x128] sm:$0xff] %vm1845, %v1802
      %1884 = vst.msk [vmem:[#allocation4 + $0x130] sm:$0xff] %vm1845, %v1803
      %1885 = vst.msk [vmem:[#allocation4 + $0x138] sm:$0xff] %vm1845, %v1804
      %1886 = vst.msk [vmem:[#allocation4 + $0x140] sm:$0xff] %vm1845, %v1805
      %1887 = vst.msk [vmem:[#allocation4 + $0x148] sm:$0xff] %vm1845, %v1806
      %1888 = vst.msk [vmem:[#allocation4 + $0x150] sm:$0xff] %vm1845, %v1807
      %1889 = vst.msk [vmem:[#allocation4 + $0x158] sm:$0xff] %vm1845, %v1808
      %1890 = vst.msk [vmem:[#allocation4 + $0x160] sm:$0xff] %vm1845, %v1809
      %1891 = vst.msk [vmem:[#allocation4 + $0x168] sm:$0xff] %vm1845, %v1810
      %1892 = vst.msk [vmem:[#allocation4 + $0x170] sm:$0xff] %vm1845, %v1811
      %1893 = vst.msk [vmem:[#allocation4 + $0x178] sm:$0xff] %vm1845, %v1812
      %1894 = vst.msk [vmem:[#allocation4 + $0x180] sm:$0xff] %vm1845, %v1813
      %1895 = vst.msk [vmem:[#allocation4 + $0x188] sm:$0xff] %vm1845, %v1814
      %1896 = vst.msk [vmem:[#allocation4 + $0x190] sm:$0xff] %vm1845, %v1815
      %1897 = vst.msk [vmem:[#allocation4 + $0x198] sm:$0xff] %vm1845, %v1816
      %1898 = vst.msk [vmem:[#allocation4 + $0x1a0] sm:$0xff] %vm1845, %v1817
      %1899 = vst.msk [vmem:[#allocation4 + $0x1a8] sm:$0xff] %vm1845, %v1818
      %1900 = vst.msk [vmem:[#allocation4 + $0x1b0] sm:$0xff] %vm1845, %v1819
      %1901 = vst.msk [vmem:[#allocation4 + $0x1b8] sm:$0xff] %vm1845, %v1820
      %1902 = vst.msk [vmem:[#allocation4 + $0x1c0] sm:$0xff] %vm1845, %v1821
      %1903 = vst.msk [vmem:[#allocation4 + $0x1c8] sm:$0xff] %vm1845, %v1822
      %1904 = vst.msk [vmem:[#allocation4 + $0x1d0] sm:$0xff] %vm1845, %v1823
      %1905 = vst.msk [vmem:[#allocation4 + $0x1d8] sm:$0xff] %vm1845, %v1824
      %1906 = vst.msk [vmem:[#allocation4 + $0x1e0] sm:$0xff] %vm1845, %v1825
      %1907 = vst.msk [vmem:[#allocation4 + $0x1e8] sm:$0xff] %vm1845, %v1826
      %1908 = vst.msk [vmem:[#allocation4 + $0x1f0] sm:$0xff] %vm1845, %v1827
      %1909 = vst.msk [vmem:[#allocation4 + $0x1f8] sm:$0xff] %vm1845, %v1828
      %1910 = vst.msk [vmem:[#allocation4 + $0x200] sm:$0xff] %vm1845, %v1829
      %1911 = vst.msk [vmem:[#allocation4 + $0x208] sm:$0xff] %vm1845, %v1830
      %1912 = vst.msk [vmem:[#allocation4 + $0x210] sm:$0xff] %vm1845, %v1831
      %1913 = vst.msk [vmem:[#allocation4 + $0x218] sm:$0xff] %vm1845, %v1832
      %1914 = vst.msk [vmem:[#allocation4 + $0x220] sm:$0xff] %vm1845, %v1833
      %1915 = vst.msk [vmem:[#allocation4 + $0x228] sm:$0xff] %vm1845, %v1834
      %1916 = vst.msk [vmem:[#allocation4 + $0x230] sm:$0xff] %vm1845, %v1835
      %1917 = vst.msk [vmem:[#allocation4 + $0x238] sm:$0xff] %vm1845, %v1836
      %1918 = vst.msk [vmem:[#allocation4 + $0x240] sm:$0xff] %vm1845, %v1837
      %1919 = vst.msk [vmem:[#allocation4 + $0x248] sm:$0xff] %vm1845, %v1838
      %1920 = vst.msk [vmem:[#allocation4 + $0x250] sm:$0xff] %vm1845, %v1839
      %1921 = vst.msk [vmem:[#allocation4 + $0x258] sm:$0xff] %vm1845, %v1840
      %1922 = vst.msk [vmem:[#allocation4 + $0x260] sm:$0xff] %vm1845, %v1841
      %1923 = vst.msk [vmem:[#allocation4 + $0x268] sm:$0xff] %vm1845, %v1842
      %1924 = vst.msk [vmem:[#allocation4 + $0x270] sm:$0xff] %vm1845, %v1843
      %vm1925 = vcmask 258048
      %1926 = vst.msk [vmem:[#allocation4 + $0x278] sm:$0x1f] %vm1925, %v1844
      %1927 = vst.msk [vmem:[#allocation2] sm:$0xff] %vm1845, 0.0
      %1928 = vst.msk [vmem:[#allocation2 + $0x8] sm:$0xff] %vm1845, 0.0
      %1929 = vst.msk [vmem:[#allocation2 + $0x10] sm:$0xff] %vm1845, 0.0
      %1930 = vst.msk [vmem:[#allocation2 + $0x18] sm:$0xff] %vm1845, 0.0
      %1931 = vst.msk [vmem:[#allocation2 + $0x20] sm:$0xff] %vm1845, 0.0
      %1932 = vst.msk [vmem:[#allocation2 + $0x28] sm:$0xff] %vm1845, 0.0
      %1933 = vst.msk [vmem:[#allocation2 + $0x30] sm:$0xff] %vm1845, 0.0
      %1934 = vst.msk [vmem:[#allocation2 + $0x38] sm:$0xff] %vm1845, 0.0
      %1935 = vst.msk [vmem:[#allocation2 + $0x40] sm:$0xff] %vm1845, 0.0
      %1936 = vst.msk [vmem:[#allocation2 + $0x48] sm:$0xff] %vm1845, 0.0
      %1937 = vst.msk [vmem:[#allocation2 + $0x50] sm:$0xff] %vm1845, 0.0
      %1938 = vst.msk [vmem:[#allocation2 + $0x58] sm:$0xff] %vm1845, 0.0
      %1939 = vst.msk [vmem:[#allocation2 + $0x60] sm:$0xff] %vm1845, 0.0
      %1940 = vst.msk [vmem:[#allocation2 + $0x68] sm:$0xff] %vm1845, 0.0
      %1941 = vst.msk [vmem:[#allocation2 + $0x70] sm:$0xff] %vm1845, 0.0
      %1942 = vst.msk [vmem:[#allocation2 + $0x78] sm:$0xff] %vm1845, 0.0
      %1943 = vst.msk [vmem:[#allocation2 + $0x80] sm:$0xff] %vm1845, 0.0
      %1944 = vst.msk [vmem:[#allocation2 + $0x88] sm:$0xff] %vm1845, 0.0
      %1945 = vst.msk [vmem:[#allocation2 + $0x90] sm:$0xff] %vm1845, 0.0
      %1946 = vst.msk [vmem:[#allocation2 + $0x98] sm:$0xff] %vm1845, 0.0
      %1947 = vst.msk [vmem:[#allocation2 + $0xa0] sm:$0xff] %vm1845, 0.0
      %1948 = vst.msk [vmem:[#allocation2 + $0xa8] sm:$0xff] %vm1845, 0.0
      %1949 = vst.msk [vmem:[#allocation2 + $0xb0] sm:$0xff] %vm1845, 0.0
      %1950 = vst.msk [vmem:[#allocation2 + $0xb8] sm:$0xff] %vm1845, 0.0
      %1951 = vst.msk [vmem:[#allocation2 + $0xc0] sm:$0xff] %vm1845, 0.0
      %1952 = vst.msk [vmem:[#allocation2 + $0xc8] sm:$0xff] %vm1845, 0.0
      %v1953 = vld [vmem:[#allocation4] ss:$2 sm:$0xff]
      %1954 = vst.msk [vmem:[#allocation2 + $0xb] sm:$0xff] %vm1845, %v1953
      %s1955 = scalar_lea.vmem [#allocation4], 36
      %v1956 = vld [vmem:[%s1955] ss:$2 sm:$0xff]
      %1957 = vst.msk [vmem:[#allocation2 + $0x15] sm:$0xff] %vm1845, %v1956
      %s1958 = scalar_lea.vmem [#allocation4], 72
      %v1959 = vld [vmem:[%s1958] ss:$2 sm:$0xff]
      %1960 = vst.msk [vmem:[#allocation2 + $0x1f] sm:$0xff] %vm1845, %v1959
      %s1961 = scalar_lea.vmem [#allocation4], 108
      %v1962 = vld [vmem:[%s1961] ss:$2 sm:$0xff]
      %1963 = vst.msk [vmem:[#allocation2 + $0x29] sm:$0xff] %vm1845, %v1962
      %s1964 = scalar_lea.vmem [#allocation4], 144
      %v1965 = vld [vmem:[%s1964] ss:$2 sm:$0xff]
      %1966 = vst.msk [vmem:[#allocation2 + $0x33] sm:$0xff] %vm1845, %v1965
      %s1967 = scalar_lea.vmem [#allocation4], 180
      %v1968 = vld [vmem:[%s1967] ss:$2 sm:$0xff]
      %1969 = vst.msk [vmem:[#allocation2 + $0x3d] sm:$0xff] %vm1845, %v1968
      %s1970 = scalar_lea.vmem [#allocation4], 216
      %v1971 = vld [vmem:[%s1970] ss:$2 sm:$0xff]
      %1972 = vst.msk [vmem:[#allocation2 + $0x47] sm:$0xff] %vm1845, %v1971
      %s1973 = scalar_lea.vmem [#allocation4], 252
      %v1974 = vld [vmem:[%s1973] ss:$2 sm:$0xff]
      %1975 = vst.msk [vmem:[#allocation2 + $0x51] sm:$0xff] %vm1845, %v1974
      %s1976 = scalar_lea.vmem [#allocation4], 328
      %v1977 = vld [vmem:[%s1976] ss:$2 sm:$0xff]
      %1978 = vst.msk [vmem:[#allocation2 + $0x73] sm:$0xff] %vm1845, %v1977
      %s1979 = scalar_lea.vmem [#allocation4], 364
      %v1980 = vld [vmem:[%s1979] ss:$2 sm:$0xff]
      %1981 = vst.msk [vmem:[#allocation2 + $0x7d] sm:$0xff] %vm1845, %v1980
      %s1982 = scalar_lea.vmem [#allocation4], 400
      %v1983 = vld [vmem:[%s1982] ss:$2 sm:$0xff]
      %1984 = vst.msk [vmem:[#allocation2 + $0x87] sm:$0xff] %vm1845, %v1983
      %s1985 = scalar_lea.vmem [#allocation4], 436
      %v1986 = vld [vmem:[%s1985] ss:$2 sm:$0xff]
      %1987 = vst.msk [vmem:[#allocation2 + $0x91] sm:$0xff] %vm1845, %v1986
      %s1988 = scalar_lea.vmem [#allocation4], 472
      %v1989 = vld [vmem:[%s1988] ss:$2 sm:$0xff]
      %1990 = vst.msk [vmem:[#allocation2 + $0x9b] sm:$0xff] %vm1845, %v1989
      %s1991 = scalar_lea.vmem [#allocation4], 508
      %v1992 = vld [vmem:[%s1991] ss:$2 sm:$0xff]
      %1993 = vst.msk [vmem:[#allocation2 + $0xa5] sm:$0xff] %vm1845, %v1992
      %s1994 = scalar_lea.vmem [#allocation4], 544
      %v1995 = vld [vmem:[%s1994] ss:$2 sm:$0xff]
      %1996 = vst.msk [vmem:[#allocation2 + $0xaf] sm:$0xff] %vm1845, %v1995
      %s1997 = scalar_lea.vmem [#allocation4], 580
      %v1998 = vld [vmem:[%s1997] ss:$2 sm:$0xff]
      %1999 = vst.msk [vmem:[#allocation2 + $0xb9] sm:$0xff] %vm1845, %v1998
      %v2000 = vld [vmem:[#allocation2] sm:$0xff]
      %v2001 = vld [vmem:[#allocation2 + $0x8] sm:$0xff]
      %v2002 = vld [vmem:[#allocation2 + $0x10] sm:$0xff]
      %v2003 = vld [vmem:[#allocation2 + $0x18] sm:$0xff]
      %v2004 = vld [vmem:[#allocation2 + $0x20] sm:$0xff]
      %v2005 = vld [vmem:[#allocation2 + $0x28] sm:$0xff]
      %v2006 = vld [vmem:[#allocation2 + $0x30] sm:$0xff]
      %v2007 = vld [vmem:[#allocation2 + $0x38] sm:$0xff]
      %v2008 = vld [vmem:[#allocation2 + $0x40] sm:$0xff]
      %v2009 = vld [vmem:[#allocation2 + $0x48] sm:$0xff]
      %v2010 = vld [vmem:[#allocation2 + $0x50] sm:$0xff]
      %v2011 = vld [vmem:[#allocation2 + $0x58] sm:$0xff]
      %v2012 = vld [vmem:[#allocation2 + $0x60] sm:$0xff]
      %v2013 = vld [vmem:[#allocation2 + $0x68] sm:$0xff]
      %v2014 = vld [vmem:[#allocation2 + $0x70] sm:$0xff]
      %v2015 = vld [vmem:[#allocation2 + $0x78] sm:$0xff]
      %v2016 = vld [vmem:[#allocation2 + $0x80] sm:$0xff]
      %v2017 = vld [vmem:[#allocation2 + $0x88] sm:$0xff]
      %v2018 = vld [vmem:[#allocation2 + $0x90] sm:$0xff]
      %v2019 = vld [vmem:[#allocation2 + $0x98] sm:$0xff]
      %v2020 = vld [vmem:[#allocation2 + $0xa0] sm:$0xff]
      %v2021 = vld [vmem:[#allocation2 + $0xa8] sm:$0xff]
      %v2022 = vld [vmem:[#allocation2 + $0xb0] sm:$0xff]
      %v2023 = vld [vmem:[#allocation2 + $0x1] sm:$0xff]
      %v2024 = vld [vmem:[#allocation2 + $0x9] sm:$0xff]
      %v2025 = vld [vmem:[#allocation2 + $0x11] sm:$0xff]
      %v2026 = vld [vmem:[#allocation2 + $0x19] sm:$0xff]
      %v2027 = vld [vmem:[#allocation2 + $0x21] sm:$0xff]
      %v2028 = vld [vmem:[#allocation2 + $0x29] sm:$0xff]
      %v2029 = vld [vmem:[#allocation2 + $0x31] sm:$0xff]
      %v2030 = vld [vmem:[#allocation2 + $0x39] sm:$0xff]
      %v2031 = vld [vmem:[#allocation2 + $0x41] sm:$0xff]
      %v2032 = vld [vmem:[#allocation2 + $0x49] sm:$0xff]
      %v2033 = vld [vmem:[#allocation2 + $0x51] sm:$0xff]
      %v2034 = vld [vmem:[#allocation2 + $0x59] sm:$0xff]
      %v2035 = vld [vmem:[#allocation2 + $0x61] sm:$0xff]
      %v2036 = vld [vmem:[#allocation2 + $0x69] sm:$0xff]
      %v2037 = vld [vmem:[#allocation2 + $0x71] sm:$0xff]
      %v2038 = vld [vmem:[#allocation2 + $0x79] sm:$0xff]
      %v2039 = vld [vmem:[#allocation2 + $0x81] sm:$0xff]
      %v2040 = vld [vmem:[#allocation2 + $0x89] sm:$0xff]
      %v2041 = vld [vmem:[#allocation2 + $0x91] sm:$0xff]
      %v2042 = vld [vmem:[#allocation2 + $0x99] sm:$0xff]
      %v2043 = vld [vmem:[#allocation2 + $0xa1] sm:$0xff]
      %v2044 = vld [vmem:[#allocation2 + $0xa9] sm:$0xff]
      %v2045 = vld [vmem:[#allocation2 + $0xb1] sm:$0xff]
      %v2046 = vld [vmem:[#allocation2 + $0x2] sm:$0xff]
      %v2047 = vld [vmem:[#allocation2 + $0xa] sm:$0xff]
      %v2048 = vld [vmem:[#allocation2 + $0x12] sm:$0xff]
      %v2049 = vld [vmem:[#allocation2 + $0x1a] sm:$0xff]
      %v2050 = vld [vmem:[#allocation2 + $0x22] sm:$0xff]
      %v2051 = vld [vmem:[#allocation2 + $0x2a] sm:$0xff]
      %v2052 = vld [vmem:[#allocation2 + $0x32] sm:$0xff]
      %v2053 = vld [vmem:[#allocation2 + $0x3a] sm:$0xff]
      %v2054 = vld [vmem:[#allocation2 + $0x42] sm:$0xff]
      %v2055 = vld [vmem:[#allocation2 + $0x4a] sm:$0xff]
      %v2056 = vld [vmem:[#allocation2 + $0x52] sm:$0xff]
      %v2057 = vld [vmem:[#allocation2 + $0x5a] sm:$0xff]
      %v2058 = vld [vmem:[#allocation2 + $0x62] sm:$0xff]
      %v2059 = vld [vmem:[#allocation2 + $0x6a] sm:$0xff]
      %v2060 = vld [vmem:[#allocation2 + $0x72] sm:$0xff]
      %v2061 = vld [vmem:[#allocation2 + $0x7a] sm:$0xff]
      %v2062 = vld [vmem:[#allocation2 + $0x82] sm:$0xff]
      %v2063 = vld [vmem:[#allocation2 + $0x8a] sm:$0xff]
      %v2064 = vld [vmem:[#allocation2 + $0x92] sm:$0xff]
      %v2065 = vld [vmem:[#allocation2 + $0x9a] sm:$0xff]
      %v2066 = vld [vmem:[#allocation2 + $0xa2] sm:$0xff]
      %v2067 = vld [vmem:[#allocation2 + $0xaa] sm:$0xff]
      %v2068 = vld [vmem:[#allocation2 + $0xb2] sm:$0xff]
      %v2069 = vld [vmem:[#allocation2 + $0xba] sm:$0xff]
      %v2070 = vld [vmem:[#allocation2 + $0xb] sm:$0xff]
      %v2071 = vld [vmem:[#allocation2 + $0x13] sm:$0xff]
      %v2072 = vld [vmem:[#allocation2 + $0x1b] sm:$0xff]
      %v2073 = vld [vmem:[#allocation2 + $0x23] sm:$0xff]
      %v2074 = vld [vmem:[#allocation2 + $0x2b] sm:$0xff]
      %v2075 = vld [vmem:[#allocation2 + $0x33] sm:$0xff]
      %v2076 = vld [vmem:[#allocation2 + $0x3b] sm:$0xff]
      %v2077 = vld [vmem:[#allocation2 + $0x43] sm:$0xff]
      %v2078 = vld [vmem:[#allocation2 + $0x4b] sm:$0xff]
      %v2079 = vld [vmem:[#allocation2 + $0x53] sm:$0xff]
      %v2080 = vld [vmem:[#allocation2 + $0x5b] sm:$0xff]
      %v2081 = vld [vmem:[#allocation2 + $0x63] sm:$0xff]
      %v2082 = vld [vmem:[#allocation2 + $0x6b] sm:$0xff]
      %v2083 = vld [vmem:[#allocation2 + $0x73] sm:$0xff]
      %v2084 = vld [vmem:[#allocation2 + $0x7b] sm:$0xff]
      %v2085 = vld [vmem:[#allocation2 + $0x83] sm:$0xff]
      %v2086 = vld [vmem:[#allocation2 + $0x8b] sm:$0xff]
      %v2087 = vld [vmem:[#allocation2 + $0x93] sm:$0xff]
      %v2088 = vld [vmem:[#allocation2 + $0x9b] sm:$0xff]
      %v2089 = vld [vmem:[#allocation2 + $0xa3] sm:$0xff]
      %v2090 = vld [vmem:[#allocation2 + $0xab] sm:$0xff]
      %v2091 = vld [vmem:[#allocation2 + $0xb3] sm:$0xff]
      %v2092 = vld [vmem:[#allocation2 + $0xbb] sm:$0xff]
      %v2093 = vld [vmem:[#allocation2 + $0xc] sm:$0xff]
      %v2094 = vld [vmem:[#allocation2 + $0x14] sm:$0xff]
      %v2095 = vld [vmem:[#allocation2 + $0x1c] sm:$0xff]
      %v2096 = vld [vmem:[#allocation2 + $0x24] sm:$0xff]
      %v2097 = vld [vmem:[#allocation2 + $0x2c] sm:$0xff]
      %v2098 = vld [vmem:[#allocation2 + $0x34] sm:$0xff]
      %v2099 = vld [vmem:[#allocation2 + $0x3c] sm:$0xff]
      %v2100 = vld [vmem:[#allocation2 + $0x44] sm:$0xff]
      %v2101 = vld [vmem:[#allocation2 + $0x4c] sm:$0xff]
      %v2102 = vld [vmem:[#allocation2 + $0x54] sm:$0xff]
      %v2103 = vld [vmem:[#allocation2 + $0x5c] sm:$0xff]
      %v2104 = vld [vmem:[#allocation2 + $0x64] sm:$0xff]
      %v2105 = vld [vmem:[#allocation2 + $0x6c] sm:$0xff]
      %v2106 = vld [vmem:[#allocation2 + $0x74] sm:$0xff]
      %v2107 = vld [vmem:[#allocation2 + $0x7c] sm:$0xff]
      %v2108 = vld [vmem:[#allocation2 + $0x84] sm:$0xff]
      %v2109 = vld [vmem:[#allocation2 + $0x8c] sm:$0xff]
      %v2110 = vld [vmem:[#allocation2 + $0x94] sm:$0xff]
      %v2111 = vld [vmem:[#allocation2 + $0x9c] sm:$0xff]
      %v2112 = vld [vmem:[#allocation2 + $0xa4] sm:$0xff]
      %v2113 = vld [vmem:[#allocation2 + $0xac] sm:$0xff]
      %v2114 = vld [vmem:[#allocation2 + $0xb4] sm:$0xff]
      %v2115 = vld [vmem:[#allocation2 + $0xbc] sm:$0xff]
      %v2116 = vld [vmem:[#allocation2 + $0xc4] sm:$0xff]
      %v2117 = vld [vmem:[#allocation2 + $0x15] sm:$0xff]
      %v2118 = vld [vmem:[#allocation2 + $0x1d] sm:$0xff]
      %v2119 = vld [vmem:[#allocation2 + $0x25] sm:$0xff]
      %v2120 = vld [vmem:[#allocation2 + $0x2d] sm:$0xff]
      %v2121 = vld [vmem:[#allocation2 + $0x35] sm:$0xff]
      %v2122 = vld [vmem:[#allocation2 + $0x3d] sm:$0xff]
      %v2123 = vld [vmem:[#allocation2 + $0x45] sm:$0xff]
      %v2124 = vld [vmem:[#allocation2 + $0x4d] sm:$0xff]
      %v2125 = vld [vmem:[#allocation2 + $0x55] sm:$0xff]
      %v2126 = vld [vmem:[#allocation2 + $0x5d] sm:$0xff]
      %v2127 = vld [vmem:[#allocation2 + $0x65] sm:$0xff]
      %v2128 = vld [vmem:[#allocation2 + $0x6d] sm:$0xff]
      %v2129 = vld [vmem:[#allocation2 + $0x75] sm:$0xff]
      %v2130 = vld [vmem:[#allocation2 + $0x7d] sm:$0xff]
      %v2131 = vld [vmem:[#allocation2 + $0x85] sm:$0xff]
      %v2132 = vld [vmem:[#allocation2 + $0x8d] sm:$0xff]
      %v2133 = vld [vmem:[#allocation2 + $0x95] sm:$0xff]
      %v2134 = vld [vmem:[#allocation2 + $0x9d] sm:$0xff]
      %v2135 = vld [vmem:[#allocation2 + $0xa5] sm:$0xff]
      %v2136 = vld [vmem:[#allocation2 + $0xad] sm:$0xff]
      %v2137 = vld [vmem:[#allocation2 + $0xb5] sm:$0xff]
      %v2138 = vld [vmem:[#allocation2 + $0xbd] sm:$0xff]
      %v2139 = vld [vmem:[#allocation2 + $0xc5] sm:$0xff]
      %v2140 = vld [vmem:[#allocation2 + $0x16] sm:$0xff]
      %v2141 = vld [vmem:[#allocation2 + $0x1e] sm:$0xff]
      %v2142 = vld [vmem:[#allocation2 + $0x26] sm:$0xff]
      %v2143 = vld [vmem:[#allocation2 + $0x2e] sm:$0xff]
      %v2144 = vld [vmem:[#allocation2 + $0x36] sm:$0xff]
      %v2145 = vld [vmem:[#allocation2 + $0x3e] sm:$0xff]
      %v2146 = vld [vmem:[#allocation2 + $0x46] sm:$0xff]
      %v2147 = vld [vmem:[#allocation2 + $0x4e] sm:$0xff]
      %v2148 = vld [vmem:[#allocation2 + $0x56] sm:$0xff]
      %v2149 = vld [vmem:[#allocation2 + $0x5e] sm:$0xff]
      %v2150 = vld [vmem:[#allocation2 + $0x66] sm:$0xff]
      %v2151 = vld [vmem:[#allocation2 + $0x6e] sm:$0xff]
      %v2152 = vld [vmem:[#allocation2 + $0x76] sm:$0xff]
      %v2153 = vld [vmem:[#allocation2 + $0x7e] sm:$0xff]
      %v2154 = vld [vmem:[#allocation2 + $0x86] sm:$0xff]
      %v2155 = vld [vmem:[#allocation2 + $0x8e] sm:$0xff]
      %v2156 = vld [vmem:[#allocation2 + $0x96] sm:$0xff]
      %v2157 = vld [vmem:[#allocation2 + $0x9e] sm:$0xff]
      %v2158 = vld [vmem:[#allocation2 + $0xa6] sm:$0xff]
      %v2159 = vld [vmem:[#allocation2 + $0xae] sm:$0xff]
      %v2160 = vld [vmem:[#allocation2 + $0xb6] sm:$0xff]
      %v2161 = vld [vmem:[#allocation2 + $0xbe] sm:$0xff]
      %v2162 = vld [vmem:[#allocation2 + $0xc6] sm:$0xff]
      %2186 = vrot.lane.b32.xlu0 %v2023, 32
      %v2187 = vpop.permute.xlu0 %2186
      %2188 = vrot.lane.b32.xlu0 %v2024, 32
      %v2189 = vpop.permute.xlu0 %2188
      %2190 = vrot.lane.b32.xlu0 %v2025, 32
      %v2191 = vpop.permute.xlu0 %2190
      %2192 = vrot.lane.b32.xlu0 %v2026, 32
      %v2193 = vpop.permute.xlu0 %2192
      %2194 = vrot.lane.b32.xlu0 %v2027, 32
      %v2195 = vpop.permute.xlu0 %2194
      %2196 = vrot.lane.b32.xlu0 %v2028, 32
      %v2197 = vpop.permute.xlu0 %2196
      %2198 = vrot.lane.b32.xlu0 %v2029, 32
      %v2199 = vpop.permute.xlu0 %2198
      %2200 = vrot.lane.b32.xlu0 %v2030, 32
      %v2201 = vpop.permute.xlu0 %2200
      %2202 = vrot.lane.b32.xlu0 %v2031, 32
      %v2203 = vpop.permute.xlu0 %2202
      %2204 = vrot.lane.b32.xlu0 %v2032, 32
      %v2205 = vpop.permute.xlu0 %2204
      %2206 = vrot.lane.b32.xlu0 %v2033, 32
      %v2207 = vpop.permute.xlu0 %2206
      %2208 = vrot.lane.b32.xlu0 %v2034, 32
      %v2209 = vpop.permute.xlu0 %2208
      %2210 = vrot.lane.b32.xlu0 %v2035, 32
      %v2211 = vpop.permute.xlu0 %2210
      %2212 = vrot.lane.b32.xlu0 %v2036, 32
      %v2213 = vpop.permute.xlu0 %2212
      %2214 = vrot.lane.b32.xlu0 %v2037, 32
      %v2215 = vpop.permute.xlu0 %2214
      %2216 = vrot.lane.b32.xlu0 %v2038, 32
      %v2217 = vpop.permute.xlu0 %2216
      %2218 = vrot.lane.b32.xlu0 %v2039, 32
      %v2219 = vpop.permute.xlu0 %2218
      %2220 = vrot.lane.b32.xlu0 %v2040, 32
      %v2221 = vpop.permute.xlu0 %2220
      %2222 = vrot.lane.b32.xlu0 %v2041, 32
      %v2223 = vpop.permute.xlu0 %2222
      %2224 = vrot.lane.b32.xlu0 %v2042, 32
      %v2225 = vpop.permute.xlu0 %2224
      %2226 = vrot.lane.b32.xlu0 %v2043, 32
      %v2227 = vpop.permute.xlu0 %2226
      %2228 = vrot.lane.b32.xlu0 %v2044, 32
      %v2229 = vpop.permute.xlu0 %2228
      %2230 = vrot.lane.b32.xlu0 %v2045, 32
      %v2231 = vpop.permute.xlu0 %2230
      %2278 = vrot.lane.b32.xlu0 %v2046, 64
      %v2279 = vpop.permute.xlu0 %2278
      %2280 = vrot.lane.b32.xlu0 %v2047, 64
      %v2281 = vpop.permute.xlu0 %2280
      %2282 = vrot.lane.b32.xlu0 %v2048, 64
      %v2283 = vpop.permute.xlu0 %2282
      %2284 = vrot.lane.b32.xlu0 %v2049, 64
      %v2285 = vpop.permute.xlu0 %2284
      %2286 = vrot.lane.b32.xlu0 %v2050, 64
      %v2287 = vpop.permute.xlu0 %2286
      %2288 = vrot.lane.b32.xlu0 %v2051, 64
      %v2289 = vpop.permute.xlu0 %2288
      %2290 = vrot.lane.b32.xlu0 %v2052, 64
      %v2291 = vpop.permute.xlu0 %2290
      %2292 = vrot.lane.b32.xlu0 %v2053, 64
      %v2293 = vpop.permute.xlu0 %2292
      %2294 = vrot.lane.b32.xlu0 %v2054, 64
      %v2295 = vpop.permute.xlu0 %2294
      %2296 = vrot.lane.b32.xlu0 %v2055, 64
      %v2297 = vpop.permute.xlu0 %2296
      %2298 = vrot.lane.b32.xlu0 %v2056, 64
      %v2299 = vpop.permute.xlu0 %2298
      %2300 = vrot.lane.b32.xlu0 %v2057, 64
      %v2301 = vpop.permute.xlu0 %2300
      %2302 = vrot.lane.b32.xlu0 %v2058, 64
      %v2303 = vpop.permute.xlu0 %2302
      %2304 = vrot.lane.b32.xlu0 %v2059, 64
      %v2305 = vpop.permute.xlu0 %2304
      %2306 = vrot.lane.b32.xlu0 %v2060, 64
      %v2307 = vpop.permute.xlu0 %2306
      %2308 = vrot.lane.b32.xlu0 %v2061, 64
      %v2309 = vpop.permute.xlu0 %2308
      %2310 = vrot.lane.b32.xlu0 %v2062, 64
      %v2311 = vpop.permute.xlu0 %2310
      %2312 = vrot.lane.b32.xlu0 %v2063, 64
      %v2313 = vpop.permute.xlu0 %2312
      %2314 = vrot.lane.b32.xlu0 %v2064, 64
      %v2315 = vpop.permute.xlu0 %2314
      %2316 = vrot.lane.b32.xlu0 %v2065, 64
      %v2317 = vpop.permute.xlu0 %2316
      %2318 = vrot.lane.b32.xlu0 %v2066, 64
      %v2319 = vpop.permute.xlu0 %2318
      %2320 = vrot.lane.b32.xlu0 %v2067, 64
      %v2321 = vpop.permute.xlu0 %2320
      %2322 = vrot.lane.b32.xlu0 %v2068, 64
      %v2323 = vpop.permute.xlu0 %2322
      %2348 = vrot.lane.b32.xlu0 %v2047, 96
      %v2349 = vpop.permute.xlu0 %2348
      %2350 = vrot.lane.b32.xlu0 %v2048, 96
      %v2351 = vpop.permute.xlu0 %2350
      %2352 = vrot.lane.b32.xlu0 %v2049, 96
      %v2353 = vpop.permute.xlu0 %2352
      %2354 = vrot.lane.b32.xlu0 %v2050, 96
      %v2355 = vpop.permute.xlu0 %2354
      %2356 = vrot.lane.b32.xlu0 %v2051, 96
      %v2357 = vpop.permute.xlu0 %2356
      %2358 = vrot.lane.b32.xlu0 %v2052, 96
      %v2359 = vpop.permute.xlu0 %2358
      %2360 = vrot.lane.b32.xlu0 %v2053, 96
      %v2361 = vpop.permute.xlu0 %2360
      %2362 = vrot.lane.b32.xlu0 %v2054, 96
      %v2363 = vpop.permute.xlu0 %2362
      %2364 = vrot.lane.b32.xlu0 %v2055, 96
      %v2365 = vpop.permute.xlu0 %2364
      %2366 = vrot.lane.b32.xlu0 %v2056, 96
      %v2367 = vpop.permute.xlu0 %2366
      %2368 = vrot.lane.b32.xlu0 %v2057, 96
      %v2369 = vpop.permute.xlu0 %2368
      %2370 = vrot.lane.b32.xlu0 %v2058, 96
      %v2371 = vpop.permute.xlu0 %2370
      %2372 = vrot.lane.b32.xlu0 %v2059, 96
      %v2373 = vpop.permute.xlu0 %2372
      %2374 = vrot.lane.b32.xlu0 %v2060, 96
      %v2375 = vpop.permute.xlu0 %2374
      %2376 = vrot.lane.b32.xlu0 %v2061, 96
      %v2377 = vpop.permute.xlu0 %2376
      %2378 = vrot.lane.b32.xlu0 %v2062, 96
      %v2379 = vpop.permute.xlu0 %2378
      %2380 = vrot.lane.b32.xlu0 %v2063, 96
      %v2381 = vpop.permute.xlu0 %2380
      %2382 = vrot.lane.b32.xlu0 %v2064, 96
      %v2383 = vpop.permute.xlu0 %2382
      %2384 = vrot.lane.b32.xlu0 %v2065, 96
      %v2385 = vpop.permute.xlu0 %2384
      %2386 = vrot.lane.b32.xlu0 %v2066, 96
      %v2387 = vpop.permute.xlu0 %2386
      %2388 = vrot.lane.b32.xlu0 %v2067, 96
      %v2389 = vpop.permute.xlu0 %2388
      %2390 = vrot.lane.b32.xlu0 %v2068, 96
      %v2391 = vpop.permute.xlu0 %2390
      %2392 = vrot.lane.b32.xlu0 %v2069, 96
      %v2393 = vpop.permute.xlu0 %2392
      %2440 = vrot.lane.b32.xlu0 %v2093, 32
      %v2441 = vpop.permute.xlu0 %2440
      %2442 = vrot.lane.b32.xlu0 %v2094, 32
      %v2443 = vpop.permute.xlu0 %2442
      %2444 = vrot.lane.b32.xlu0 %v2095, 32
      %v2445 = vpop.permute.xlu0 %2444
      %2446 = vrot.lane.b32.xlu0 %v2096, 32
      %v2447 = vpop.permute.xlu0 %2446
      %2448 = vrot.lane.b32.xlu0 %v2097, 32
      %v2449 = vpop.permute.xlu0 %2448
      %2450 = vrot.lane.b32.xlu0 %v2098, 32
      %v2451 = vpop.permute.xlu0 %2450
      %2452 = vrot.lane.b32.xlu0 %v2099, 32
      %v2453 = vpop.permute.xlu0 %2452
      %2454 = vrot.lane.b32.xlu0 %v2100, 32
      %v2455 = vpop.permute.xlu0 %2454
      %2456 = vrot.lane.b32.xlu0 %v2101, 32
      %v2457 = vpop.permute.xlu0 %2456
      %2458 = vrot.lane.b32.xlu0 %v2102, 32
      %v2459 = vpop.permute.xlu0 %2458
      %2460 = vrot.lane.b32.xlu0 %v2103, 32
      %v2461 = vpop.permute.xlu0 %2460
      %2462 = vrot.lane.b32.xlu0 %v2104, 32
      %v2463 = vpop.permute.xlu0 %2462
      %2464 = vrot.lane.b32.xlu0 %v2105, 32
      %v2465 = vpop.permute.xlu0 %2464
      %2466 = vrot.lane.b32.xlu0 %v2106, 32
      %v2467 = vpop.permute.xlu0 %2466
      %2468 = vrot.lane.b32.xlu0 %v2107, 32
      %v2469 = vpop.permute.xlu0 %2468
      %2470 = vrot.lane.b32.xlu0 %v2108, 32
      %v2471 = vpop.permute.xlu0 %2470
      %2472 = vrot.lane.b32.xlu0 %v2109, 32
      %v2473 = vpop.permute.xlu0 %2472
      %2474 = vrot.lane.b32.xlu0 %v2110, 32
      %v2475 = vpop.permute.xlu0 %2474
      %2476 = vrot.lane.b32.xlu0 %v2111, 32
      %v2477 = vpop.permute.xlu0 %2476
      %2478 = vrot.lane.b32.xlu0 %v2112, 32
      %v2479 = vpop.permute.xlu0 %2478
      %2480 = vrot.lane.b32.xlu0 %v2113, 32
      %v2481 = vpop.permute.xlu0 %2480
      %2482 = vrot.lane.b32.xlu0 %v2114, 32
      %v2483 = vpop.permute.xlu0 %2482
      %2484 = vrot.lane.b32.xlu0 %v2115, 32
      %v2485 = vpop.permute.xlu0 %2484
      %2510 = vrot.lane.b32.xlu0 %v2094, 64
      %v2511 = vpop.permute.xlu0 %2510
      %2512 = vrot.lane.b32.xlu0 %v2095, 64
      %v2513 = vpop.permute.xlu0 %2512
      %2514 = vrot.lane.b32.xlu0 %v2096, 64
      %v2515 = vpop.permute.xlu0 %2514
      %2516 = vrot.lane.b32.xlu0 %v2097, 64
      %v2517 = vpop.permute.xlu0 %2516
      %2518 = vrot.lane.b32.xlu0 %v2098, 64
      %v2519 = vpop.permute.xlu0 %2518
      %2520 = vrot.lane.b32.xlu0 %v2099, 64
      %v2521 = vpop.permute.xlu0 %2520
      %2522 = vrot.lane.b32.xlu0 %v2100, 64
      %v2523 = vpop.permute.xlu0 %2522
      %2524 = vrot.lane.b32.xlu0 %v2101, 64
      %v2525 = vpop.permute.xlu0 %2524
      %2526 = vrot.lane.b32.xlu0 %v2102, 64
      %v2527 = vpop.permute.xlu0 %2526
      %2528 = vrot.lane.b32.xlu0 %v2103, 64
      %v2529 = vpop.permute.xlu0 %2528
      %2530 = vrot.lane.b32.xlu0 %v2104, 64
      %v2531 = vpop.permute.xlu0 %2530
      %2532 = vrot.lane.b32.xlu0 %v2105, 64
      %v2533 = vpop.permute.xlu0 %2532
      %2534 = vrot.lane.b32.xlu0 %v2106, 64
      %v2535 = vpop.permute.xlu0 %2534
      %2536 = vrot.lane.b32.xlu0 %v2107, 64
      %v2537 = vpop.permute.xlu0 %2536
      %2538 = vrot.lane.b32.xlu0 %v2108, 64
      %v2539 = vpop.permute.xlu0 %2538
      %2540 = vrot.lane.b32.xlu0 %v2109, 64
      %v2541 = vpop.permute.xlu0 %2540
      %2542 = vrot.lane.b32.xlu0 %v2110, 64
      %v2543 = vpop.permute.xlu0 %2542
      %2544 = vrot.lane.b32.xlu0 %v2111, 64
      %v2545 = vpop.permute.xlu0 %2544
      %2546 = vrot.lane.b32.xlu0 %v2112, 64
      %v2547 = vpop.permute.xlu0 %2546
      %2548 = vrot.lane.b32.xlu0 %v2113, 64
      %v2549 = vpop.permute.xlu0 %2548
      %2550 = vrot.lane.b32.xlu0 %v2114, 64
      %v2551 = vpop.permute.xlu0 %2550
      %2552 = vrot.lane.b32.xlu0 %v2115, 64
      %v2553 = vpop.permute.xlu0 %2552
      %2554 = vrot.lane.b32.xlu0 %v2116, 64
      %v2555 = vpop.permute.xlu0 %2554
      %2602 = vrot.lane.b32.xlu0 %v2117, 96
      %v2603 = vpop.permute.xlu0 %2602
      %2604 = vrot.lane.b32.xlu0 %v2118, 96
      %v2605 = vpop.permute.xlu0 %2604
      %2606 = vrot.lane.b32.xlu0 %v2119, 96
      %v2607 = vpop.permute.xlu0 %2606
      %2608 = vrot.lane.b32.xlu0 %v2120, 96
      %v2609 = vpop.permute.xlu0 %2608
      %2610 = vrot.lane.b32.xlu0 %v2121, 96
      %v2611 = vpop.permute.xlu0 %2610
      %2612 = vrot.lane.b32.xlu0 %v2122, 96
      %v2613 = vpop.permute.xlu0 %2612
      %2614 = vrot.lane.b32.xlu0 %v2123, 96
      %v2615 = vpop.permute.xlu0 %2614
      %2616 = vrot.lane.b32.xlu0 %v2124, 96
      %v2617 = vpop.permute.xlu0 %2616
      %2618 = vrot.lane.b32.xlu0 %v2125, 96
      %v2619 = vpop.permute.xlu0 %2618
      %2620 = vrot.lane.b32.xlu0 %v2126, 96
      %v2621 = vpop.permute.xlu0 %2620
      %2622 = vrot.lane.b32.xlu0 %v2127, 96
      %v2623 = vpop.permute.xlu0 %2622
      %2624 = vrot.lane.b32.xlu0 %v2128, 96
      %v2625 = vpop.permute.xlu0 %2624
      %2626 = vrot.lane.b32.xlu0 %v2129, 96
      %v2627 = vpop.permute.xlu0 %2626
      %2628 = vrot.lane.b32.xlu0 %v2130, 96
      %v2629 = vpop.permute.xlu0 %2628
      %2630 = vrot.lane.b32.xlu0 %v2131, 96
      %v2631 = vpop.permute.xlu0 %2630
      %2632 = vrot.lane.b32.xlu0 %v2132, 96
      %v2633 = vpop.permute.xlu0 %2632
      %2634 = vrot.lane.b32.xlu0 %v2133, 96
      %v2635 = vpop.permute.xlu0 %2634
      %2636 = vrot.lane.b32.xlu0 %v2134, 96
      %v2637 = vpop.permute.xlu0 %2636
      %2638 = vrot.lane.b32.xlu0 %v2135, 96
      %v2639 = vpop.permute.xlu0 %2638
      %2640 = vrot.lane.b32.xlu0 %v2136, 96
      %v2641 = vpop.permute.xlu0 %2640
      %2642 = vrot.lane.b32.xlu0 %v2137, 96
      %v2643 = vpop.permute.xlu0 %2642
      %2644 = vrot.lane.b32.xlu0 %v2138, 96
      %v2645 = vpop.permute.xlu0 %2644
      %2646 = vrot.lane.b32.xlu0 %v2139, 96
      %v2647 = vpop.permute.xlu0 %2646
      %v2671 = vsel %vm1845, %v2000, %v2187
      %v2672 = vsel %vm1845, %v2001, %v2189
      %v2673 = vsel %vm1845, %v2002, %v2191
      %v2674 = vsel %vm1845, %v2003, %v2193
      %v2675 = vsel %vm1845, %v2004, %v2195
      %v2676 = vsel %vm1845, %v2005, %v2197
      %v2677 = vsel %vm1845, %v2006, %v2199
      %v2678 = vsel %vm1845, %v2007, %v2201
      %v2679 = vsel %vm1845, %v2008, %v2203
      %v2680 = vsel %vm1845, %v2009, %v2205
      %v2681 = vsel %vm1845, %v2010, %v2207
      %v2682 = vsel %vm1845, %v2011, %v2209
      %v2683 = vsel %vm1845, %v2012, %v2211
      %v2684 = vsel %vm1845, %v2013, %v2213
      %v2685 = vsel %vm1845, %v2014, %v2215
      %v2686 = vsel %vm1845, %v2015, %v2217
      %v2687 = vsel %vm1845, %v2016, %v2219
      %v2688 = vsel %vm1845, %v2017, %v2221
      %v2689 = vsel %vm1845, %v2018, %v2223
      %v2690 = vsel %vm1845, %v2019, %v2225
      %v2691 = vsel %vm1845, %v2020, %v2227
      %v2692 = vsel %vm1845, %v2021, %v2229
      %v2693 = vsel %vm1845, %v2022, %v2231
      %vm2694 = vcmask 523264
      %v2695 = vsel %vm2694, %v2671, %v2279
      %v2696 = vsel %vm2694, %v2672, %v2281
      %v2697 = vsel %vm2694, %v2673, %v2283
      %v2698 = vsel %vm2694, %v2674, %v2285
      %v2699 = vsel %vm2694, %v2675, %v2287
      %v2700 = vsel %vm2694, %v2676, %v2289
      %v2701 = vsel %vm2694, %v2677, %v2291
      %v2702 = vsel %vm2694, %v2678, %v2293
      %v2703 = vsel %vm2694, %v2679, %v2295
      %v2704 = vsel %vm2694, %v2680, %v2297
      %v2705 = vsel %vm2694, %v2681, %v2299
      %v2706 = vsel %vm2694, %v2682, %v2301
      %v2707 = vsel %vm2694, %v2683, %v2303
      %v2708 = vsel %vm2694, %v2684, %v2305
      %v2709 = vsel %vm2694, %v2685, %v2307
      %v2710 = vsel %vm2694, %v2686, %v2309
      %v2711 = vsel %vm2694, %v2687, %v2311
      %v2712 = vsel %vm2694, %v2688, %v2313
      %v2713 = vsel %vm2694, %v2689, %v2315
      %v2714 = vsel %vm2694, %v2690, %v2317
      %v2715 = vsel %vm2694, %v2691, %v2319
      %v2716 = vsel %vm2694, %v2692, %v2321
      %v2717 = vsel %vm2694, %v2693, %v2323
      %vm2718 = vcmask 785408
      %v2719 = vsel %vm2718, %v2695, %v2349
      %v2720 = vsel %vm2718, %v2696, %v2351
      %v2721 = vsel %vm2718, %v2697, %v2353
      %v2722 = vsel %vm2718, %v2698, %v2355
      %v2723 = vsel %vm2718, %v2699, %v2357
      %v2724 = vsel %vm2718, %v2700, %v2359
      %v2725 = vsel %vm2718, %v2701, %v2361
      %v2726 = vsel %vm2718, %v2702, %v2363
      %v2727 = vsel %vm2718, %v2703, %v2365
      %v2728 = vsel %vm2718, %v2704, %v2367
      %v2729 = vsel %vm2718, %v2705, %v2369
      %v2730 = vsel %vm2718, %v2706, %v2371
      %v2731 = vsel %vm2718, %v2707, %v2373
      %v2732 = vsel %vm2718, %v2708, %v2375
      %v2733 = vsel %vm2718, %v2709, %v2377
      %v2734 = vsel %vm2718, %v2710, %v2379
      %v2735 = vsel %vm2718, %v2711, %v2381
      %v2736 = vsel %vm2718, %v2712, %v2383
      %v2737 = vsel %vm2718, %v2713, %v2385
      %v2738 = vsel %vm2718, %v2714, %v2387
      %v2739 = vsel %vm2718, %v2715, %v2389
      %v2740 = vsel %vm2718, %v2716, %v2391
      %v2741 = vsel %vm2718, %v2717, %v2393
      %v2742 = vsel %vm1845, %v2070, %v2441
      %v2743 = vsel %vm1845, %v2071, %v2443
      %v2744 = vsel %vm1845, %v2072, %v2445
      %v2745 = vsel %vm1845, %v2073, %v2447
      %v2746 = vsel %vm1845, %v2074, %v2449
      %v2747 = vsel %vm1845, %v2075, %v2451
      %v2748 = vsel %vm1845, %v2076, %v2453
      %v2749 = vsel %vm1845, %v2077, %v2455
      %v2750 = vsel %vm1845, %v2078, %v2457
      %v2751 = vsel %vm1845, %v2079, %v2459
      %v2752 = vsel %vm1845, %v2080, %v2461
      %v2753 = vsel %vm1845, %v2081, %v2463
      %v2754 = vsel %vm1845, %v2082, %v2465
      %v2755 = vsel %vm1845, %v2083, %v2467
      %v2756 = vsel %vm1845, %v2084, %v2469
      %v2757 = vsel %vm1845, %v2085, %v2471
      %v2758 = vsel %vm1845, %v2086, %v2473
      %v2759 = vsel %vm1845, %v2087, %v2475
      %v2760 = vsel %vm1845, %v2088, %v2477
      %v2761 = vsel %vm1845, %v2089, %v2479
      %v2762 = vsel %vm1845, %v2090, %v2481
      %v2763 = vsel %vm1845, %v2091, %v2483
      %v2764 = vsel %vm1845, %v2092, %v2485
      %v2765 = vsel %vm2694, %v2742, %v2511
      %v2766 = vsel %vm2694, %v2743, %v2513
      %v2767 = vsel %vm2694, %v2744, %v2515
      %v2768 = vsel %vm2694, %v2745, %v2517
      %v2769 = vsel %vm2694, %v2746, %v2519
      %v2770 = vsel %vm2694, %v2747, %v2521
      %v2771 = vsel %vm2694, %v2748, %v2523
      %v2772 = vsel %vm2694, %v2749, %v2525
      %v2773 = vsel %vm2694, %v2750, %v2527
      %v2774 = vsel %vm2694, %v2751, %v2529
      %v2775 = vsel %vm2694, %v2752, %v2531
      %v2776 = vsel %vm2694, %v2753, %v2533
      %v2777 = vsel %vm2694, %v2754, %v2535
      %v2778 = vsel %vm2694, %v2755, %v2537
      %v2779 = vsel %vm2694, %v2756, %v2539
      %v2780 = vsel %vm2694, %v2757, %v2541
      %v2781 = vsel %vm2694, %v2758, %v2543
      %v2782 = vsel %vm2694, %v2759, %v2545
      %v2783 = vsel %vm2694, %v2760, %v2547
      %v2784 = vsel %vm2694, %v2761, %v2549
      %v2785 = vsel %vm2694, %v2762, %v2551
      %v2786 = vsel %vm2694, %v2763, %v2553
      %v2787 = vsel %vm2694, %v2764, %v2555
      %v2788 = vsel %vm2718, %v2765, %v2603
      %v2789 = vsel %vm2718, %v2766, %v2605
      %v2790 = vsel %vm2718, %v2767, %v2607
      %v2791 = vsel %vm2718, %v2768, %v2609
      %v2792 = vsel %vm2718, %v2769, %v2611
      %v2793 = vsel %vm2718, %v2770, %v2613
      %v2794 = vsel %vm2718, %v2771, %v2615
      %v2795 = vsel %vm2718, %v2772, %v2617
      %v2796 = vsel %vm2718, %v2773, %v2619
      %v2797 = vsel %vm2718, %v2774, %v2621
      %v2798 = vsel %vm2718, %v2775, %v2623
      %v2799 = vsel %vm2718, %v2776, %v2625
      %v2800 = vsel %vm2718, %v2777, %v2627
      %v2801 = vsel %vm2718, %v2778, %v2629
      %v2802 = vsel %vm2718, %v2779, %v2631
      %v2803 = vsel %vm2718, %v2780, %v2633
      %v2804 = vsel %vm2718, %v2781, %v2635
      %v2805 = vsel %vm2718, %v2782, %v2637
      %v2806 = vsel %vm2718, %v2783, %v2639
      %v2807 = vsel %vm2718, %v2784, %v2641
      %v2808 = vsel %vm2718, %v2785, %v2643
      %v2809 = vsel %vm2718, %v2786, %v2645
      %v2810 = vsel %vm2718, %v2787, %v2647
      %v2811 = vpack.c.bf16 %v2720, %v2719
      %v2812 = vpack.c.bf16 %v2789, %v2788
      %v2813 = vpack.c.bf16 %v2141, %v2140
      %v2814 = vpack.c.bf16 %v2722, %v2721
      %v2815 = vpack.c.bf16 %v2791, %v2790
      %v2816 = vpack.c.bf16 %v2143, %v2142
      %v2817 = vpack.c.bf16 %v2724, %v2723
      %v2818 = vpack.c.bf16 %v2793, %v2792
      %v2819 = vpack.c.bf16 %v2145, %v2144
      %v2820 = vpack.c.bf16 %v2726, %v2725
      %v2821 = vpack.c.bf16 %v2795, %v2794
      %v2822 = vpack.c.bf16 %v2147, %v2146
      %v2823 = vpack.c.bf16 %v2728, %v2727
      %v2824 = vpack.c.bf16 %v2797, %v2796
      %v2825 = vpack.c.bf16 %v2149, %v2148
      %v2826 = vpack.c.bf16 %v2730, %v2729
      %v2827 = vpack.c.bf16 %v2799, %v2798
      %v2828 = vpack.c.bf16 %v2151, %v2150
      %v2829 = vpack.c.bf16 %v2732, %v2731
      %v2830 = vpack.c.bf16 %v2801, %v2800
      %v2831 = vpack.c.bf16 %v2153, %v2152
      %v2832 = vpack.c.bf16 %v2734, %v2733
      %v2833 = vpack.c.bf16 %v2803, %v2802
      %v2834 = vpack.c.bf16 %v2155, %v2154
      %v2835 = vpack.c.bf16 %v2736, %v2735
      %v2836 = vpack.c.bf16 %v2805, %v2804
      %v2837 = vpack.c.bf16 %v2157, %v2156
      %v2838 = vpack.c.bf16 %v2738, %v2737
      %v2839 = vpack.c.bf16 %v2807, %v2806
      %v2840 = vpack.c.bf16 %v2159, %v2158
      %v2841 = vpack.c.bf16 %v2740, %v2739
      %v2842 = vpack.c.bf16 %v2809, %v2808
      %v2843 = vpack.c.bf16 %v2161, %v2160
      %v2844 = vpack.c.bf16 %v2741, %v2741
      %v2845 = vpack.c.bf16 %v2810, %v2810
      %v2846 = vpack.c.bf16 %v2162, %v2162
      %v2847 = vld [vmem:[%s3] sm:$0xf]
      %v2848 = vld [vmem:[%s3 + $0x4] sm:$0xf]
      %v2849 = vld [vmem:[%s3 + $0x8] sm:$0xf]
      %v2850 = vld [vmem:[%s3 + $0xc] sm:$0xf]
      %v2851 = vld [vmem:[%s3 + $0x10] sm:$0xf]
      %v2852 = vld [vmem:[%s3 + $0x14] sm:$0xf]
      %v2853 = vld [vmem:[%s3 + $0x18] sm:$0xf]
      %v2854 = vld [vmem:[%s3 + $0x1c] sm:$0xf]
      %v2855 = vld [vmem:[%s3 + $0x20] sm:$0xf]
      %v2856 = vld [vmem:[%s3 + $0x24] sm:$0xf]
      %v2857 = vld [vmem:[%s3 + $0x28] sm:$0xf]
      %v2858 = vld [vmem:[%s3 + $0x2c] sm:$0xf]
      %v2859 = vld [vmem:[%s3 + $0x30] sm:$0xf]
      %v2860 = vld [vmem:[%s3 + $0x34] sm:$0xf]
      %v2861 = vld [vmem:[%s3 + $0x38] sm:$0xf]
      %v2862 = vld [vmem:[%s3 + $0x3c] sm:$0xf]
      %v2863 = vld [vmem:[%s3 + $0x40] sm:$0xf]
      %v2864 = vld [vmem:[%s3 + $0x44] sm:$0xf]
      %v2865 = vld [vmem:[%s3 + $0x48] sm:$0xf]
      %v2866 = vld [vmem:[%s3 + $0x4c] sm:$0xf]
      %v2867 = vld [vmem:[%s3 + $0x50] sm:$0xf]
      %v2868 = vld [vmem:[%s3 + $0x54] sm:$0xf]
      %v2869 = vld [vmem:[%s3 + $0x58] sm:$0xf]
      %v2870 = vld [vmem:[%s3 + $0x5c] sm:$0xf]
      %v2871 = vld [vmem:[%s3 + $0x60] sm:$0xf]
      %v2872 = vld [vmem:[%s3 + $0x64] sm:$0xf]
      %v2873 = vld [vmem:[%s3 + $0x68] sm:$0xf]
      %v2874 = vld [vmem:[%s3 + $0x6c] sm:$0xf]
      %v2875 = vld [vmem:[%s3 + $0x70] sm:$0xf]
      %v2876 = vld [vmem:[%s3 + $0x74] sm:$0xf]
      %v2877 = vld [vmem:[%s3 + $0x78] sm:$0xf]
      %v2878 = vld [vmem:[%s3 + $0x7c] sm:$0xf]
      %v2879 = vld [vmem:[%s3 + $0x80] sm:$0xf]
      %v2880 = vld [vmem:[%s3 + $0x84] sm:$0xf]
      %v2881 = vld [vmem:[%s3 + $0x88] sm:$0xf]
      %v2882 = vld [vmem:[%s3 + $0x8c] sm:$0xf]
      %v2883 = vld [vmem:[%s4] sm:$0x1]
      %v2885 = vperm.slane %v2883, 0
      %v2923 = vunpack.c.l.b16 %v2847
      %v2924 = vunpack.c.l.b16 %v2848
      %v2925 = vunpack.c.l.b16 %v2849
      %v2926 = vunpack.c.l.b16 %v2850
      %v2927 = vunpack.c.l.b16 %v2851
      %v2928 = vunpack.c.l.b16 %v2852
      %v2929 = vunpack.c.l.b16 %v2853
      %v2930 = vunpack.c.l.b16 %v2854
      %v2931 = vunpack.c.l.b16 %v2855
      %v2932 = vunpack.c.l.b16 %v2856
      %v2933 = vunpack.c.l.b16 %v2857
      %v2934 = vunpack.c.l.b16 %v2858
      %v2935 = vunpack.c.l.b16 %v2859
      %v2936 = vunpack.c.l.b16 %v2860
      %v2937 = vunpack.c.l.b16 %v2861
      %v2938 = vunpack.c.l.b16 %v2862
      %v2939 = vunpack.c.l.b16 %v2863
      %v2940 = vunpack.c.l.b16 %v2864
      %v2941 = vunpack.c.l.b16 %v2865
      %v2942 = vunpack.c.l.b16 %v2866
      %v2943 = vunpack.c.l.b16 %v2867
      %v2944 = vunpack.c.l.b16 %v2868
      %v2945 = vunpack.c.l.b16 %v2869
      %v2946 = vunpack.c.l.b16 %v2870
      %v2947 = vunpack.c.l.b16 %v2871
      %v2948 = vunpack.c.l.b16 %v2872
      %v2949 = vunpack.c.l.b16 %v2873
      %v2950 = vunpack.c.l.b16 %v2874
      %v2951 = vunpack.c.l.b16 %v2875
      %v2952 = vunpack.c.l.b16 %v2876
      %v2953 = vunpack.c.l.b16 %v2877
      %v2954 = vunpack.c.l.b16 %v2878
      %v2955 = vunpack.c.l.b16 %v2879
      %v2956 = vunpack.c.l.b16 %v2880
      %v2957 = vunpack.c.l.b16 %v2881
      %v2958 = vunpack.c.l.b16 %v2882
      %v2959 = vpack.c.b16 %v2924, %v2923
      %v2960 = vpack.c.b16 %v2926, %v2925
      %v2961 = vpack.c.b16 %v2928, %v2927
      %v2962 = vpack.c.b16 %v2930, %v2929
      %v2963 = vpack.c.b16 %v2932, %v2931
      %v2964 = vpack.c.b16 %v2934, %v2933
      %v2965 = vpack.c.b16 %v2936, %v2935
      %v2966 = vpack.c.b16 %v2938, %v2937
      %v2967 = vpack.c.b16 %v2940, %v2939
      %v2968 = vpack.c.b16 %v2942, %v2941
      %v2969 = vpack.c.b16 %v2944, %v2943
      %v2970 = vpack.c.b16 %v2946, %v2945
      %v2971 = vpack.c.b16 %v2948, %v2947
      %v2972 = vpack.c.b16 %v2950, %v2949
      %v2973 = vpack.c.b16 %v2952, %v2951
      %v2974 = vpack.c.b16 %v2954, %v2953
      %v2975 = vpack.c.b16 %v2956, %v2955
      %v2976 = vpack.c.b16 %v2958, %v2957
      %v2996 = vsel %vm1845, %v2813, 0
      %v2999 = vsel %vm1845, %v2816, 0
      %v3002 = vsel %vm1845, %v2819, 0
      %v3005 = vsel %vm1845, %v2822, 0
      %v3008 = vsel %vm1845, %v2825, 0
      %v3011 = vsel %vm1845, %v2828, 0
      %v3014 = vsel %vm1845, %v2831, 0
      %v3017 = vsel %vm1845, %v2834, 0
      %v3020 = vsel %vm1845, %v2837, 0
      %v3023 = vsel %vm1845, %v2840, 0
      %v3026 = vsel %vm1845, %v2843, 0
      %v3029 = vsel %vm1845, %v2846, 0
      %3031 = vmatpush.bf16.msra.mxu0 %v2966
      %3032 = vmatpush.bf16.msra.mxu0 %v2965
      %3033 = vmatpush.bf16.msra.mxu0 %v2964
      %3034 = vmatpush.bf16.msra.mxu0 %v2963
      %3035 = vmatpush.bf16.msra.mxu0 %v2962
      %3036 = vmatpush.bf16.msra.mxu0 %v2961
      %3037 = vmatpush.bf16.msra.mxu0 %v2960
      %3038 = vmatpush.bf16.msra.mxu0 %v2959
      %3039 = vmatmul.bf16.gmra.mxu0 %v2811
      %v3040 = vpop.f32.mrf.mxu0
      %v3041 = vadd.f32 %v2885, %v3040
      %v3042 = vpop.f32.mrf.mxu0
      %v3043 = vadd.f32 %v2885, %v3042
      %3044 = vmatmul.bf16.gmra.mxu0 %v2814
      %v3045 = vpop.f32.mrf.mxu0
      %v3046 = vadd.f32 %v2885, %v3045
      %v3047 = vpop.f32.mrf.mxu0
      %v3048 = vadd.f32 %v2885, %v3047
      %3049 = vmatmul.bf16.gmra.mxu0 %v2817
      %v3050 = vpop.f32.mrf.mxu0
      %v3051 = vadd.f32 %v2885, %v3050
      %v3052 = vpop.f32.mrf.mxu0
      %v3053 = vadd.f32 %v2885, %v3052
      %3054 = vmatmul.bf16.gmra.mxu0 %v2820
      %v3055 = vpop.f32.mrf.mxu0
      %v3056 = vadd.f32 %v2885, %v3055
      %v3057 = vpop.f32.mrf.mxu0
      %v3058 = vadd.f32 %v2885, %v3057
      %3059 = vmatmul.bf16.gmra.mxu0 %v2823
      %v3060 = vpop.f32.mrf.mxu0
      %v3061 = vadd.f32 %v2885, %v3060
      %v3062 = vpop.f32.mrf.mxu0
      %v3063 = vadd.f32 %v2885, %v3062
      %3064 = vmatmul.bf16.gmra.mxu0 %v2826
      %v3065 = vpop.f32.mrf.mxu0
      %v3066 = vadd.f32 %v2885, %v3065
      %v3067 = vpop.f32.mrf.mxu0
      %v3068 = vadd.f32 %v2885, %v3067
      %3069 = vmatmul.bf16.gmra.mxu0 %v2829
      %v3070 = vpop.f32.mrf.mxu0
      %v3071 = vadd.f32 %v2885, %v3070
      %v3072 = vpop.f32.mrf.mxu0
      %v3073 = vadd.f32 %v2885, %v3072
      %3074 = vmatmul.bf16.gmra.mxu0 %v2832
      %v3075 = vpop.f32.mrf.mxu0
      %v3076 = vadd.f32 %v2885, %v3075
      %v3077 = vpop.f32.mrf.mxu0
      %v3078 = vadd.f32 %v2885, %v3077
      %3079 = vmatmul.bf16.gmra.mxu0 %v2835
      %v3080 = vpop.f32.mrf.mxu0
      %v3081 = vadd.f32 %v2885, %v3080
      %v3082 = vpop.f32.mrf.mxu0
      %v3083 = vadd.f32 %v2885, %v3082
      %3084 = vmatmul.bf16.gmra.mxu0 %v2838
      %v3085 = vpop.f32.mrf.mxu0
      %v3086 = vadd.f32 %v2885, %v3085
      %v3087 = vpop.f32.mrf.mxu0
      %v3088 = vadd.f32 %v2885, %v3087
      %3089 = vmatmul.bf16.gmra.mxu0 %v2841
      %v3090 = vpop.f32.mrf.mxu0
      %v3091 = vadd.f32 %v2885, %v3090
      %v3092 = vpop.f32.mrf.mxu0
      %v3093 = vadd.f32 %v2885, %v3092
      %3094 = vmatmul.bf16.gmra.mxu0 %v2844
      %v3095 = vpop.f32.mrf.mxu0
      %v3096 = vadd.f32 %v2885, %v3095
      %v3097 = vpop.f32.mrf.mxu0
      %3098 = vdwg.mxu0
      %3099 = vmatpush.bf16.msra.mxu0 %v2974
      %3100 = vmatpush.bf16.msra.mxu0 %v2973
      %3101 = vmatpush.bf16.msra.mxu0 %v2972
      %3102 = vmatpush.bf16.msra.mxu0 %v2971
      %3103 = vmatpush.bf16.msra.mxu0 %v2970
      %3104 = vmatpush.bf16.msra.mxu0 %v2969
      %3105 = vmatpush.bf16.msra.mxu0 %v2968
      %3106 = vmatpush.bf16.msra.mxu0 %v2967
      %3107 = vmatmul.bf16.gmra.mxu0 %v2812
      %v3108 = vpop.f32.mrf.mxu0
      %v3109 = vadd.f32 %v3041, %v3108
      %v3110 = vpop.f32.mrf.mxu0
      %v3111 = vadd.f32 %v3043, %v3110
      %3112 = vmatmul.bf16.gmra.mxu0 %v2815
      %v3113 = vpop.f32.mrf.mxu0
      %v3114 = vadd.f32 %v3046, %v3113
      %v3115 = vpop.f32.mrf.mxu0
      %v3116 = vadd.f32 %v3048, %v3115
      %3117 = vmatmul.bf16.gmra.mxu0 %v2818
      %v3118 = vpop.f32.mrf.mxu0
      %v3119 = vadd.f32 %v3051, %v3118
      %v3120 = vpop.f32.mrf.mxu0
      %v3121 = vadd.f32 %v3053, %v3120
      %3122 = vmatmul.bf16.gmra.mxu0 %v2821
      %v3123 = vpop.f32.mrf.mxu0
      %v3124 = vadd.f32 %v3056, %v3123
      %v3125 = vpop.f32.mrf.mxu0
      %v3126 = vadd.f32 %v3058, %v3125
      %3127 = vmatmul.bf16.gmra.mxu0 %v2824
      %v3128 = vpop.f32.mrf.mxu0
      %v3129 = vadd.f32 %v3061, %v3128
      %v3130 = vpop.f32.mrf.mxu0
      %v3131 = vadd.f32 %v3063, %v3130
      %3132 = vmatmul.bf16.gmra.mxu0 %v2827
      %v3133 = vpop.f32.mrf.mxu0
      %v3134 = vadd.f32 %v3066, %v3133
      %v3135 = vpop.f32.mrf.mxu0
      %v3136 = vadd.f32 %v3068, %v3135
      %3137 = vmatmul.bf16.gmra.mxu0 %v2830
      %v3138 = vpop.f32.mrf.mxu0
      %v3139 = vadd.f32 %v3071, %v3138
      %v3140 = vpop.f32.mrf.mxu0
      %v3141 = vadd.f32 %v3073, %v3140
      %3142 = vmatmul.bf16.gmra.mxu0 %v2833
      %v3143 = vpop.f32.mrf.mxu0
      %v3144 = vadd.f32 %v3076, %v3143
      %v3145 = vpop.f32.mrf.mxu0
      %v3146 = vadd.f32 %v3078, %v3145
      %3147 = vmatmul.bf16.gmra.mxu0 %v2836
      %v3148 = vpop.f32.mrf.mxu0
      %v3149 = vadd.f32 %v3081, %v3148
      %v3150 = vpop.f32.mrf.mxu0
      %v3151 = vadd.f32 %v3083, %v3150
      %3152 = vmatmul.bf16.gmra.mxu0 %v2839
      %v3153 = vpop.f32.mrf.mxu0
      %v3154 = vadd.f32 %v3086, %v3153
      %v3155 = vpop.f32.mrf.mxu0
      %v3156 = vadd.f32 %v3088, %v3155
      %3157 = vmatmul.bf16.gmra.mxu0 %v2842
      %v3158 = vpop.f32.mrf.mxu0
      %v3159 = vadd.f32 %v3091, %v3158
      %v3160 = vpop.f32.mrf.mxu0
      %v3161 = vadd.f32 %v3093, %v3160
      %3162 = vmatmul.bf16.gmra.mxu0 %v2845
      %v3163 = vpop.f32.mrf.mxu0
      %v3164 = vadd.f32 %v3096, %v3163
      %v3165 = vpop.f32.mrf.mxu0
      %3166 = vdwg.mxu0
      %3167 = vmatpush.bf16.msra.mxu0 0
      %3168 = vmatpush.bf16.msra.mxu0 0
      %3169 = vmatpush.bf16.msra.mxu0 0
      %3170 = vmatpush.bf16.msra.mxu0 0
      %3171 = vmatpush.bf16.msra.mxu0 0
      %3172 = vmatpush.bf16.msra.mxu0 0
      %3173 = vmatpush.bf16.msra.mxu0 %v2976
      %3174 = vmatpush.bf16.msra.mxu0 %v2975
      %3175 = vmatmul.bf16.gmra.mxu0 %v2996
      %v3176 = vpop.f32.mrf.mxu0
      %v3177 = vadd.f32 %v3109, %v3176
      %v3178 = vpop.f32.mrf.mxu0
      %v3179 = vadd.f32 %v3111, %v3178
      %3180 = vmatmul.bf16.gmra.mxu0 %v2999
      %v3181 = vpop.f32.mrf.mxu0
      %v3182 = vadd.f32 %v3114, %v3181
      %v3183 = vpop.f32.mrf.mxu0
      %v3184 = vadd.f32 %v3116, %v3183
      %3185 = vmatmul.bf16.gmra.mxu0 %v3002
      %v3186 = vpop.f32.mrf.mxu0
      %v3187 = vadd.f32 %v3119, %v3186
      %v3188 = vpop.f32.mrf.mxu0
      %v3189 = vadd.f32 %v3121, %v3188
      %3190 = vmatmul.bf16.gmra.mxu0 %v3005
      %v3191 = vpop.f32.mrf.mxu0
      %v3192 = vadd.f32 %v3124, %v3191
      %v3193 = vpop.f32.mrf.mxu0
      %v3194 = vadd.f32 %v3126, %v3193
      %3195 = vmatmul.bf16.gmra.mxu0 %v3008
      %v3196 = vpop.f32.mrf.mxu0
      %v3197 = vadd.f32 %v3129, %v3196
      %v3198 = vpop.f32.mrf.mxu0
      %v3199 = vadd.f32 %v3131, %v3198
      %3200 = vmatmul.bf16.gmra.mxu0 %v3011
      %v3201 = vpop.f32.mrf.mxu0
      %v3202 = vadd.f32 %v3134, %v3201
      %v3203 = vpop.f32.mrf.mxu0
      %v3204 = vadd.f32 %v3136, %v3203
      %3205 = vmatmul.bf16.gmra.mxu0 %v3014
      %v3206 = vpop.f32.mrf.mxu0
      %v3207 = vadd.f32 %v3139, %v3206
      %v3208 = vpop.f32.mrf.mxu0
      %v3209 = vadd.f32 %v3141, %v3208
      %3210 = vmatmul.bf16.gmra.mxu0 %v3017
      %v3211 = vpop.f32.mrf.mxu0
      %v3212 = vadd.f32 %v3144, %v3211
      %v3213 = vpop.f32.mrf.mxu0
      %v3214 = vadd.f32 %v3146, %v3213
      %3215 = vmatmul.bf16.gmra.mxu0 %v3020
      %v3216 = vpop.f32.mrf.mxu0
      %v3217 = vadd.f32 %v3149, %v3216
      %v3218 = vpop.f32.mrf.mxu0
      %v3219 = vadd.f32 %v3151, %v3218
      %3220 = vmatmul.bf16.gmra.mxu0 %v3023
      %v3221 = vpop.f32.mrf.mxu0
      %v3222 = vadd.f32 %v3154, %v3221
      %v3223 = vpop.f32.mrf.mxu0
      %v3224 = vadd.f32 %v3156, %v3223
      %3225 = vmatmul.bf16.gmra.mxu0 %v3026
      %v3226 = vpop.f32.mrf.mxu0
      %v3227 = vadd.f32 %v3159, %v3226
      %v3228 = vpop.f32.mrf.mxu0
      %v3229 = vadd.f32 %v3161, %v3228
      %3230 = vmatmul.bf16.gmra.mxu0 %v3029
      %v3231 = vpop.f32.mrf.mxu0
      %v3232 = vadd.f32 %v3164, %v3231
      %v3233 = vpop.f32.mrf.mxu0
      %3234 = vdwg.mxu0
      %v3235 = vmax.f32 %v3177, 0.0
      %v3236 = vmax.f32 %v3179, 0.0
      %v3237 = vmax.f32 %v3182, 0.0
      %v3238 = vmax.f32 %v3184, 0.0
      %v3239 = vmax.f32 %v3187, 0.0
      %v3240 = vmax.f32 %v3189, 0.0
      %v3241 = vmax.f32 %v3192, 0.0
      %v3242 = vmax.f32 %v3194, 0.0
      %v3243 = vmax.f32 %v3197, 0.0
      %v3244 = vmax.f32 %v3199, 0.0
      %v3245 = vmax.f32 %v3202, 0.0
      %v3246 = vmax.f32 %v3204, 0.0
      %v3247 = vmax.f32 %v3207, 0.0
      %v3248 = vmax.f32 %v3209, 0.0
      %v3249 = vmax.f32 %v3212, 0.0
      %v3250 = vmax.f32 %v3214, 0.0
      %v3251 = vmax.f32 %v3217, 0.0
      %v3252 = vmax.f32 %v3219, 0.0
      %v3253 = vmax.f32 %v3222, 0.0
      %v3254 = vmax.f32 %v3224, 0.0
      %v3255 = vmax.f32 %v3227, 0.0
      %v3256 = vmax.f32 %v3229, 0.0
      %v3257 = vmax.f32 %v3232, 0.0
      %v3280 = vrot.slane %v3236, 2
      %v3281 = vrot.slane %v3237, 2
      %v3282 = vsel %vm1125, %v3280, %v3281
      %v3283 = vrot.slane %v3238, 2
      %v3284 = vsel %vm1125, %v3281, %v3283
      %v3285 = vrot.slane %v3239, 2
      %v3286 = vsel %vm1125, %v3283, %v3285
      %v3287 = vrot.slane %v3240, 2
      %v3288 = vsel %vm1125, %v3285, %v3287
      %v3289 = vrot.slane %v3241, 2
      %v3290 = vsel %vm1125, %v3287, %v3289
      %v3291 = vrot.slane %v3242, 2
      %v3292 = vsel %vm1125, %v3289, %v3291
      %v3293 = vrot.slane %v3243, 2
      %v3294 = vsel %vm1125, %v3291, %v3293
      %v3295 = vrot.slane %v3244, 2
      %v3296 = vsel %vm1125, %v3293, %v3295
      %v3297 = vrot.slane %v3245, 2
      %v3298 = vsel %vm1125, %v3295, %v3297
      %v3299 = vrot.slane %v3246, 2
      %v3300 = vsel %vm1125, %v3297, %v3299
      %v3301 = vrot.slane %v3247, 2
      %v3302 = vsel %vm1125, %v3299, %v3301
      %v3303 = vrot.slane %v3248, 2
      %v3304 = vsel %vm1125, %v3301, %v3303
      %v3305 = vrot.slane %v3249, 2
      %v3306 = vsel %vm1125, %v3303, %v3305
      %v3307 = vrot.slane %v3250, 2
      %v3308 = vsel %vm1125, %v3305, %v3307
      %v3309 = vrot.slane %v3251, 2
      %v3310 = vsel %vm1125, %v3307, %v3309
      %v3311 = vrot.slane %v3252, 2
      %v3312 = vsel %vm1125, %v3309, %v3311
      %v3313 = vrot.slane %v3253, 2
      %v3314 = vsel %vm1125, %v3311, %v3313
      %v3315 = vrot.slane %v3254, 2
      %v3316 = vsel %vm1125, %v3313, %v3315
      %v3317 = vrot.slane %v3255, 2
      %v3318 = vsel %vm1125, %v3315, %v3317
      %v3319 = vrot.slane %v3256, 2
      %v3320 = vsel %vm1125, %v3317, %v3319
      %v3321 = vrot.slane %v3257, 2
      %v3322 = vsel %vm1125, %v3319, %v3321
      %v3345 = vmax.f32 %v3235, %v3282
      %v3346 = vmax.f32 %v3236, %v3284
      %v3347 = vmax.f32 %v3237, %v3286
      %v3348 = vmax.f32 %v3238, %v3288
      %v3349 = vmax.f32 %v3239, %v3290
      %v3350 = vmax.f32 %v3240, %v3292
      %v3351 = vmax.f32 %v3241, %v3294
      %v3352 = vmax.f32 %v3242, %v3296
      %v3353 = vmax.f32 %v3243, %v3298
      %v3354 = vmax.f32 %v3244, %v3300
      %v3355 = vmax.f32 %v3245, %v3302
      %v3356 = vmax.f32 %v3246, %v3304
      %v3357 = vmax.f32 %v3247, %v3306
      %v3358 = vmax.f32 %v3248, %v3308
      %v3359 = vmax.f32 %v3249, %v3310
      %v3360 = vmax.f32 %v3250, %v3312
      %v3361 = vmax.f32 %v3251, %v3314
      %v3362 = vmax.f32 %v3252, %v3316
      %v3363 = vmax.f32 %v3253, %v3318
      %v3364 = vmax.f32 %v3254, %v3320
      %v3365 = vmax.f32 %v3255, %v3322
      %v3366 = vmax.f32 %v3256, %v3321
      %v3389 = vrot.slane %v3345, 1
      %v3390 = vrot.slane %v3346, 1
      %v3391 = vsel %vm1525, %v3389, %v3390
      %v3392 = vrot.slane %v3347, 1
      %v3393 = vsel %vm1525, %v3390, %v3392
      %v3394 = vrot.slane %v3348, 1
      %v3395 = vsel %vm1525, %v3392, %v3394
      %v3396 = vrot.slane %v3349, 1
      %v3397 = vsel %vm1525, %v3394, %v3396
      %v3398 = vrot.slane %v3350, 1
      %v3399 = vsel %vm1525, %v3396, %v3398
      %v3400 = vrot.slane %v3351, 1
      %v3401 = vsel %vm1525, %v3398, %v3400
      %v3402 = vrot.slane %v3352, 1
      %v3403 = vsel %vm1525, %v3400, %v3402
      %v3404 = vrot.slane %v3353, 1
      %v3405 = vsel %vm1525, %v3402, %v3404
      %v3406 = vrot.slane %v3354, 1
      %v3407 = vsel %vm1525, %v3404, %v3406
      %v3408 = vrot.slane %v3355, 1
      %v3409 = vsel %vm1525, %v3406, %v3408
      %v3410 = vrot.slane %v3356, 1
      %v3411 = vsel %vm1525, %v3408, %v3410
      %v3412 = vrot.slane %v3357, 1
      %v3413 = vsel %vm1525, %v3410, %v3412
      %v3414 = vrot.slane %v3358, 1
      %v3415 = vsel %vm1525, %v3412, %v3414
      %v3416 = vrot.slane %v3359, 1
      %v3417 = vsel %vm1525, %v3414, %v3416
      %v3418 = vrot.slane %v3360, 1
      %v3419 = vsel %vm1525, %v3416, %v3418
      %v3420 = vrot.slane %v3361, 1
      %v3421 = vsel %vm1525, %v3418, %v3420
      %v3422 = vrot.slane %v3362, 1
      %v3423 = vsel %vm1525, %v3420, %v3422
      %v3424 = vrot.slane %v3363, 1
      %v3425 = vsel %vm1525, %v3422, %v3424
      %v3426 = vrot.slane %v3364, 1
      %v3427 = vsel %vm1525, %v3424, %v3426
      %v3428 = vrot.slane %v3365, 1
      %v3429 = vsel %vm1525, %v3426, %v3428
      %v3430 = vrot.slane %v3366, 1
      %v3431 = vsel %vm1525, %v3428, %v3430
      %v3454 = vmax.f32 %v3345, %v3391
      %v3455 = vmax.f32 %v3346, %v3393
      %v3456 = vmax.f32 %v3347, %v3395
      %v3457 = vmax.f32 %v3348, %v3397
      %v3458 = vmax.f32 %v3349, %v3399
      %v3459 = vmax.f32 %v3350, %v3401
      %v3460 = vmax.f32 %v3351, %v3403
      %v3461 = vmax.f32 %v3352, %v3405
      %v3462 = vmax.f32 %v3353, %v3407
      %v3463 = vmax.f32 %v3354, %v3409
      %v3464 = vmax.f32 %v3355, %v3411
      %v3465 = vmax.f32 %v3356, %v3413
      %v3466 = vmax.f32 %v3357, %v3415
      %v3467 = vmax.f32 %v3358, %v3417
      %v3468 = vmax.f32 %v3359, %v3419
      %v3469 = vmax.f32 %v3360, %v3421
      %v3470 = vmax.f32 %v3361, %v3423
      %v3471 = vmax.f32 %v3362, %v3425
      %v3472 = vmax.f32 %v3363, %v3427
      %v3473 = vmax.f32 %v3364, %v3429
      %v3474 = vmax.f32 %v3365, %v3431
      %v3475 = vmax.f32 %v3366, %v3430
      %3476 = vst.msk [vmem:[#allocation5] sm:$0xff] %vm2694, %v3454
      %3477 = vst.msk [vmem:[#allocation5 + $0x8] sm:$0xff] %vm2694, %v3455
      %3478 = vst.msk [vmem:[#allocation5 + $0x10] sm:$0xff] %vm2694, %v3456
      %3479 = vst.msk [vmem:[#allocation5 + $0x18] sm:$0xff] %vm2694, %v3457
      %3480 = vst.msk [vmem:[#allocation5 + $0x20] sm:$0xff] %vm2694, %v3458
      %3481 = vst.msk [vmem:[#allocation5 + $0x28] sm:$0xff] %vm2694, %v3459
      %3482 = vst.msk [vmem:[#allocation5 + $0x30] sm:$0xff] %vm2694, %v3460
      %3483 = vst.msk [vmem:[#allocation5 + $0x38] sm:$0xff] %vm2694, %v3461
      %3484 = vst.msk [vmem:[#allocation5 + $0x40] sm:$0xff] %vm2694, %v3462
      %3485 = vst.msk [vmem:[#allocation5 + $0x48] sm:$0xff] %vm2694, %v3463
      %3486 = vst.msk [vmem:[#allocation5 + $0x50] sm:$0xff] %vm2694, %v3464
      %3487 = vst.msk [vmem:[#allocation5 + $0x58] sm:$0xff] %vm2694, %v3465
      %3488 = vst.msk [vmem:[#allocation5 + $0x60] sm:$0xff] %vm2694, %v3466
      %3489 = vst.msk [vmem:[#allocation5 + $0x68] sm:$0xff] %vm2694, %v3467
      %3490 = vst.msk [vmem:[#allocation5 + $0x70] sm:$0xff] %vm2694, %v3468
      %3491 = vst.msk [vmem:[#allocation5 + $0x78] sm:$0xff] %vm2694, %v3469
      %3492 = vst.msk [vmem:[#allocation5 + $0x80] sm:$0xff] %vm2694, %v3470
      %3493 = vst.msk [vmem:[#allocation5 + $0x88] sm:$0xff] %vm2694, %v3471
      %3494 = vst.msk [vmem:[#allocation5 + $0x90] sm:$0xff] %vm2694, %v3472
      %3495 = vst.msk [vmem:[#allocation5 + $0x98] sm:$0xff] %vm2694, %v3473
      %3496 = vst.msk [vmem:[#allocation5 + $0xa0] sm:$0xff] %vm2694, %v3474
      %vm3497 = vcmask 520192
      %3498 = vst.msk [vmem:[#allocation5 + $0xa8] sm:$0x1f] %vm3497, %v3475
      %3499 = vst.msk [vmem:[#allocation3] sm:$0xff] %vm2694, 0.0
      %3500 = vst.msk [vmem:[#allocation3 + $0x8] sm:$0xff] %vm2694, 0.0
      %3501 = vst.msk [vmem:[#allocation3 + $0x10] sm:$0xff] %vm2694, 0.0
      %3502 = vst.msk [vmem:[#allocation3 + $0x18] sm:$0xff] %vm2694, 0.0
      %3503 = vst.msk [vmem:[#allocation3 + $0x20] sm:$0xff] %vm2694, 0.0
      %3504 = vst.msk [vmem:[#allocation3 + $0x28] sm:$0xff] %vm2694, 0.0
      %3505 = vst.msk [vmem:[#allocation3 + $0x30] sm:$0xff] %vm2694, 0.0
      %3506 = vst.msk [vmem:[#allocation3 + $0x38] sm:$0xff] %vm2694, 0.0
      %3507 = vst.msk [vmem:[#allocation3 + $0x40] sm:$0xff] %vm2694, 0.0
      %3508 = vst.msk [vmem:[#allocation3 + $0x48] sm:$0xff] %vm2694, 0.0
      %v3509 = vld [vmem:[#allocation5] ss:$2 sm:$0xf]
      %vm3510 = vcmask 519168
      %3511 = vst.msk [vmem:[#allocation3 + $0x7] sm:$0xf] %vm3510, %v3509
      %s3512 = scalar_lea.vmem [#allocation5], 20
      %v3513 = vld [vmem:[%s3512] ss:$2 sm:$0xf]
      %3514 = vst.msk [vmem:[#allocation3 + $0xd] sm:$0xf] %vm3510, %v3513
      %s3515 = scalar_lea.vmem [#allocation5], 40
      %v3516 = vld [vmem:[%s3515] ss:$2 sm:$0xf]
      %3517 = vst.msk [vmem:[#allocation3 + $0x13] sm:$0xf] %vm3510, %v3516
      %s3518 = scalar_lea.vmem [#allocation5], 60
      %v3519 = vld [vmem:[%s3518] ss:$2 sm:$0xf]
      %3520 = vst.msk [vmem:[#allocation3 + $0x19] sm:$0xf] %vm3510, %v3519
      %s3521 = scalar_lea.vmem [#allocation5], 104
      %v3522 = vld [vmem:[%s3521] ss:$2 sm:$0xf]
      %3523 = vst.msk [vmem:[#allocation3 + $0x2f] sm:$0xf] %vm3510, %v3522
      %s3524 = scalar_lea.vmem [#allocation5], 124
      %v3525 = vld [vmem:[%s3524] ss:$2 sm:$0xf]
      %3526 = vst.msk [vmem:[#allocation3 + $0x35] sm:$0xf] %vm3510, %v3525
      %s3527 = scalar_lea.vmem [#allocation5], 144
      %v3528 = vld [vmem:[%s3527] ss:$2 sm:$0xf]
      %3529 = vst.msk [vmem:[#allocation3 + $0x3b] sm:$0xf] %vm3510, %v3528
      %s3530 = scalar_lea.vmem [#allocation5], 164
      %v3531 = vld [vmem:[%s3530] ss:$2 sm:$0xf]
      %3532 = vst.msk [vmem:[#allocation3 + $0x41] sm:$0xf] %vm3510, %v3531
      %v3533 = vld [vmem:[#allocation3] sm:$0xff]
      %v3534 = vld [vmem:[#allocation3 + $0x8] sm:$0xff]
      %v3535 = vld [vmem:[#allocation3 + $0x10] sm:$0xff]
      %v3536 = vld [vmem:[#allocation3 + $0x18] sm:$0xff]
      %v3537 = vld [vmem:[#allocation3 + $0x20] sm:$0xff]
      %v3538 = vld [vmem:[#allocation3 + $0x28] sm:$0xff]
      %v3539 = vld [vmem:[#allocation3 + $0x30] sm:$0xff]
      %v3540 = vld [vmem:[#allocation3 + $0x38] sm:$0xff]
      %v3541 = vld [vmem:[#allocation3 + $0x1] sm:$0xff]
      %v3542 = vld [vmem:[#allocation3 + $0x9] sm:$0xff]
      %v3543 = vld [vmem:[#allocation3 + $0x11] sm:$0xff]
      %v3544 = vld [vmem:[#allocation3 + $0x19] sm:$0xff]
      %v3545 = vld [vmem:[#allocation3 + $0x21] sm:$0xff]
      %v3546 = vld [vmem:[#allocation3 + $0x29] sm:$0xff]
      %v3547 = vld [vmem:[#allocation3 + $0x31] sm:$0xff]
      %v3548 = vld [vmem:[#allocation3 + $0x39] sm:$0xff]
      %v3549 = vld [vmem:[#allocation3 + $0x2] sm:$0xff]
      %v3550 = vld [vmem:[#allocation3 + $0xa] sm:$0xff]
      %v3551 = vld [vmem:[#allocation3 + $0x12] sm:$0xff]
      %v3552 = vld [vmem:[#allocation3 + $0x1a] sm:$0xff]
      %v3553 = vld [vmem:[#allocation3 + $0x22] sm:$0xff]
      %v3554 = vld [vmem:[#allocation3 + $0x2a] sm:$0xff]
      %v3555 = vld [vmem:[#allocation3 + $0x32] sm:$0xff]
      %v3556 = vld [vmem:[#allocation3 + $0x3a] sm:$0xff]
      %v3557 = vld [vmem:[#allocation3 + $0x6] sm:$0xff]
      %v3558 = vld [vmem:[#allocation3 + $0xe] sm:$0xff]
      %v3559 = vld [vmem:[#allocation3 + $0x16] sm:$0xff]
      %v3560 = vld [vmem:[#allocation3 + $0x1e] sm:$0xff]
      %v3561 = vld [vmem:[#allocation3 + $0x26] sm:$0xff]
      %v3562 = vld [vmem:[#allocation3 + $0x2e] sm:$0xff]
      %v3563 = vld [vmem:[#allocation3 + $0x36] sm:$0xff]
      %v3564 = vld [vmem:[#allocation3 + $0x3e] sm:$0xff]
      %v3565 = vld [vmem:[#allocation3 + $0x7] sm:$0xff]
      %v3566 = vld [vmem:[#allocation3 + $0xf] sm:$0xff]
      %v3567 = vld [vmem:[#allocation3 + $0x17] sm:$0xff]
      %v3568 = vld [vmem:[#allocation3 + $0x1f] sm:$0xff]
      %v3569 = vld [vmem:[#allocation3 + $0x27] sm:$0xff]
      %v3570 = vld [vmem:[#allocation3 + $0x2f] sm:$0xff]
      %v3571 = vld [vmem:[#allocation3 + $0x37] sm:$0xff]
      %v3572 = vld [vmem:[#allocation3 + $0x3f] sm:$0xff]
      %v3573 = vld [vmem:[#allocation3 + $0x40] sm:$0xff]
      %v3574 = vld [vmem:[#allocation3 + $0xc] sm:$0xff]
      %v3575 = vld [vmem:[#allocation3 + $0x14] sm:$0xff]
      %v3576 = vld [vmem:[#allocation3 + $0x1c] sm:$0xff]
      %v3577 = vld [vmem:[#allocation3 + $0x24] sm:$0xff]
      %v3578 = vld [vmem:[#allocation3 + $0x2c] sm:$0xff]
      %v3579 = vld [vmem:[#allocation3 + $0x34] sm:$0xff]
      %v3580 = vld [vmem:[#allocation3 + $0x3c] sm:$0xff]
      %v3581 = vld [vmem:[#allocation3 + $0x44] sm:$0xff]
      %v3582 = vld [vmem:[#allocation3 + $0xd] sm:$0xff]
      %v3583 = vld [vmem:[#allocation3 + $0x15] sm:$0xff]
      %v3584 = vld [vmem:[#allocation3 + $0x1d] sm:$0xff]
      %v3585 = vld [vmem:[#allocation3 + $0x25] sm:$0xff]
      %v3586 = vld [vmem:[#allocation3 + $0x2d] sm:$0xff]
      %v3587 = vld [vmem:[#allocation3 + $0x35] sm:$0xff]
      %v3588 = vld [vmem:[#allocation3 + $0x3d] sm:$0xff]
      %v3589 = vld [vmem:[#allocation3 + $0x45] sm:$0xff]
      %v3590 = vld [vmem:[#allocation3 + $0x46] sm:$0xff]
      %3599 = vrot.lane.b32.xlu0 %v3541, 64
      %v3600 = vpop.permute.xlu0 %3599
      %3601 = vrot.lane.b32.xlu0 %v3542, 64
      %v3602 = vpop.permute.xlu0 %3601
      %3603 = vrot.lane.b32.xlu0 %v3543, 64
      %v3604 = vpop.permute.xlu0 %3603
      %3605 = vrot.lane.b32.xlu0 %v3544, 64
      %v3606 = vpop.permute.xlu0 %3605
      %3607 = vrot.lane.b32.xlu0 %v3545, 64
      %v3608 = vpop.permute.xlu0 %3607
      %3609 = vrot.lane.b32.xlu0 %v3546, 64
      %v3610 = vpop.permute.xlu0 %3609
      %3611 = vrot.lane.b32.xlu0 %v3547, 64
      %v3612 = vpop.permute.xlu0 %3611
      %3613 = vrot.lane.b32.xlu0 %v3548, 64
      %v3614 = vpop.permute.xlu0 %3613
      %3631 = vrot.lane.b32.xlu0 %v3557, 64
      %v3632 = vpop.permute.xlu0 %3631
      %3633 = vrot.lane.b32.xlu0 %v3558, 64
      %v3634 = vpop.permute.xlu0 %3633
      %3635 = vrot.lane.b32.xlu0 %v3559, 64
      %v3636 = vpop.permute.xlu0 %3635
      %3637 = vrot.lane.b32.xlu0 %v3560, 64
      %v3638 = vpop.permute.xlu0 %3637
      %3639 = vrot.lane.b32.xlu0 %v3561, 64
      %v3640 = vpop.permute.xlu0 %3639
      %3641 = vrot.lane.b32.xlu0 %v3562, 64
      %v3642 = vpop.permute.xlu0 %3641
      %3643 = vrot.lane.b32.xlu0 %v3563, 64
      %v3644 = vpop.permute.xlu0 %3643
      %3645 = vrot.lane.b32.xlu0 %v3564, 64
      %v3646 = vpop.permute.xlu0 %3645
      %3663 = vrot.lane.b32.xlu0 %v3534, 64
      %v3664 = vpop.permute.xlu0 %3663
      %3665 = vrot.lane.b32.xlu0 %v3535, 64
      %v3666 = vpop.permute.xlu0 %3665
      %3667 = vrot.lane.b32.xlu0 %v3536, 64
      %v3668 = vpop.permute.xlu0 %3667
      %3669 = vrot.lane.b32.xlu0 %v3537, 64
      %v3670 = vpop.permute.xlu0 %3669
      %3671 = vrot.lane.b32.xlu0 %v3538, 64
      %v3672 = vpop.permute.xlu0 %3671
      %3673 = vrot.lane.b32.xlu0 %v3539, 64
      %v3674 = vpop.permute.xlu0 %3673
      %3675 = vrot.lane.b32.xlu0 %v3540, 64
      %v3676 = vpop.permute.xlu0 %3675
      %3677 = vrot.lane.b32.xlu0 %v3573, 64
      %v3678 = vpop.permute.xlu0 %3677
      %3695 = vrot.lane.b32.xlu0 %v3582, 64
      %v3696 = vpop.permute.xlu0 %3695
      %3697 = vrot.lane.b32.xlu0 %v3583, 64
      %v3698 = vpop.permute.xlu0 %3697
      %3699 = vrot.lane.b32.xlu0 %v3584, 64
      %v3700 = vpop.permute.xlu0 %3699
      %3701 = vrot.lane.b32.xlu0 %v3585, 64
      %v3702 = vpop.permute.xlu0 %3701
      %3703 = vrot.lane.b32.xlu0 %v3586, 64
      %v3704 = vpop.permute.xlu0 %3703
      %3705 = vrot.lane.b32.xlu0 %v3587, 64
      %v3706 = vpop.permute.xlu0 %3705
      %3707 = vrot.lane.b32.xlu0 %v3588, 64
      %v3708 = vpop.permute.xlu0 %3707
      %3709 = vrot.lane.b32.xlu0 %v3589, 64
      %v3710 = vpop.permute.xlu0 %3709
      %v3719 = vsel %vm2694, %v3533, %v3600
      %v3720 = vsel %vm2694, %v3534, %v3602
      %v3721 = vsel %vm2694, %v3535, %v3604
      %v3722 = vsel %vm2694, %v3536, %v3606
      %v3723 = vsel %vm2694, %v3537, %v3608
      %v3724 = vsel %vm2694, %v3538, %v3610
      %v3725 = vsel %vm2694, %v3539, %v3612
      %v3726 = vsel %vm2694, %v3540, %v3614
      %v3727 = vsel %vm2694, %v3549, %v3632
      %v3728 = vsel %vm2694, %v3550, %v3634
      %v3729 = vsel %vm2694, %v3551, %v3636
      %v3730 = vsel %vm2694, %v3552, %v3638
      %v3731 = vsel %vm2694, %v3553, %v3640
      %v3732 = vsel %vm2694, %v3554, %v3642
      %v3733 = vsel %vm2694, %v3555, %v3644
      %v3734 = vsel %vm2694, %v3556, %v3646
      %v3735 = vsel %vm2694, %v3565, %v3664
      %v3736 = vsel %vm2694, %v3566, %v3666
      %v3737 = vsel %vm2694, %v3567, %v3668
      %v3738 = vsel %vm2694, %v3568, %v3670
      %v3739 = vsel %vm2694, %v3569, %v3672
      %v3740 = vsel %vm2694, %v3570, %v3674
      %v3741 = vsel %vm2694, %v3571, %v3676
      %v3742 = vsel %vm2694, %v3572, %v3678
      %v3743 = vsel %vm2694, %v3574, %v3696
      %v3744 = vsel %vm2694, %v3575, %v3698
      %v3745 = vsel %vm2694, %v3576, %v3700
      %v3746 = vsel %vm2694, %v3577, %v3702
      %v3747 = vsel %vm2694, %v3578, %v3704
      %v3748 = vsel %vm2694, %v3579, %v3706
      %v3749 = vsel %vm2694, %v3580, %v3708
      %v3750 = vsel %vm2694, %v3581, %v3710
      %v3751 = vpack.c.bf16 %v3720, %v3719
      %v3752 = vpack.c.bf16 %v3728, %v3727
      %v3753 = vpack.c.bf16 %v3736, %v3735
      %v3754 = vpack.c.bf16 %v3744, %v3743
      %v3755 = vpack.c.bf16 %v3559, %v3558
      %v3756 = vpack.c.bf16 %v3722, %v3721
      %v3757 = vpack.c.bf16 %v3730, %v3729
      %v3758 = vpack.c.bf16 %v3738, %v3737
      %v3759 = vpack.c.bf16 %v3746, %v3745
      %v3760 = vpack.c.bf16 %v3561, %v3560
      %v3761 = vpack.c.bf16 %v3724, %v3723
      %v3762 = vpack.c.bf16 %v3732, %v3731
      %v3763 = vpack.c.bf16 %v3740, %v3739
      %v3764 = vpack.c.bf16 %v3748, %v3747
      %v3765 = vpack.c.bf16 %v3563, %v3562
      %v3766 = vpack.c.bf16 %v3726, %v3725
      %v3767 = vpack.c.bf16 %v3734, %v3733
      %v3768 = vpack.c.bf16 %v3742, %v3741
      %v3769 = vpack.c.bf16 %v3750, %v3749
      %v3770 = vpack.c.bf16 %v3590, %v3564
      %v3771 = vld [vmem:[%s5] sm:$0xf]
      %v3772 = vld [vmem:[%s5 + $0x4] sm:$0xf]
      %v3773 = vld [vmem:[%s5 + $0x8] sm:$0xf]
      %v3774 = vld [vmem:[%s5 + $0xc] sm:$0xf]
      %v3775 = vld [vmem:[%s5 + $0x10] sm:$0xf]
      %v3776 = vld [vmem:[%s5 + $0x14] sm:$0xf]
      %v3777 = vld [vmem:[%s5 + $0x18] sm:$0xf]
      %v3778 = vld [vmem:[%s5 + $0x1c] sm:$0xf]
      %v3779 = vld [vmem:[%s5 + $0x20] sm:$0xf]
      %v3780 = vld [vmem:[%s5 + $0x24] sm:$0xf]
      %v3781 = vld [vmem:[%s5 + $0x28] sm:$0xf]
      %v3782 = vld [vmem:[%s5 + $0x2c] sm:$0xf]
      %v3783 = vld [vmem:[%s5 + $0x30] sm:$0xf]
      %v3784 = vld [vmem:[%s5 + $0x34] sm:$0xf]
      %v3785 = vld [vmem:[%s5 + $0x38] sm:$0xf]
      %v3786 = vld [vmem:[%s5 + $0x3c] sm:$0xf]
      %v3787 = vld [vmem:[%s5 + $0x40] sm:$0xf]
      %v3788 = vld [vmem:[%s5 + $0x44] sm:$0xf]
      %v3789 = vld [vmem:[%s5 + $0x48] sm:$0xf]
      %v3790 = vld [vmem:[%s5 + $0x4c] sm:$0xf]
      %v3791 = vld [vmem:[%s5 + $0x50] sm:$0xf]
      %v3792 = vld [vmem:[%s5 + $0x54] sm:$0xf]
      %v3793 = vld [vmem:[%s5 + $0x58] sm:$0xf]
      %v3794 = vld [vmem:[%s5 + $0x5c] sm:$0xf]
      %v3795 = vld [vmem:[%s5 + $0x60] sm:$0xf]
      %v3796 = vld [vmem:[%s5 + $0x64] sm:$0xf]
      %v3797 = vld [vmem:[%s5 + $0x68] sm:$0xf]
      %v3798 = vld [vmem:[%s5 + $0x6c] sm:$0xf]
      %v3799 = vld [vmem:[%s5 + $0x70] sm:$0xf]
      %v3800 = vld [vmem:[%s5 + $0x74] sm:$0xf]
      %v3801 = vld [vmem:[%s5 + $0x78] sm:$0xf]
      %v3802 = vld [vmem:[%s5 + $0x7c] sm:$0xf]
      %v3803 = vld [vmem:[%s5 + $0x80] sm:$0xf]
      %v3804 = vld [vmem:[%s5 + $0x84] sm:$0xf]
      %v3805 = vld [vmem:[%s5 + $0x88] sm:$0xf]
      %v3806 = vld [vmem:[%s5 + $0x8c] sm:$0xf]
      %v3807 = vld [vmem:[%s5 + $0x90] sm:$0xf]
      %v3808 = vld [vmem:[%s5 + $0x94] sm:$0xf]
      %v3809 = vld [vmem:[%s5 + $0x98] sm:$0xf]
      %v3810 = vld [vmem:[%s5 + $0x9c] sm:$0xf]
      %v3811 = vld [vmem:[%s5 + $0xa0] sm:$0xf]
      %v3812 = vld [vmem:[%s5 + $0xa4] sm:$0xf]
      %v3813 = vld [vmem:[%s5 + $0xa8] sm:$0xf]
      %v3814 = vld [vmem:[%s5 + $0xac] sm:$0xf]
      %v3815 = vld [vmem:[%s5 + $0xb0] sm:$0xf]
      %v3816 = vld [vmem:[%s5 + $0xb4] sm:$0xf]
      %v3817 = vld [vmem:[%s5 + $0xb8] sm:$0xf]
      %v3818 = vld [vmem:[%s5 + $0xbc] sm:$0xf]
      %v3819 = vld [vmem:[%s5 + $0xc0] sm:$0xf]
      %v3820 = vld [vmem:[%s5 + $0xc4] sm:$0xf]
      %v3821 = vld [vmem:[%s5 + $0xc8] sm:$0xf]
      %v3822 = vld [vmem:[%s5 + $0xcc] sm:$0xf]
      %v3823 = vld [vmem:[%s5 + $0xd0] sm:$0xf]
      %v3824 = vld [vmem:[%s5 + $0xd4] sm:$0xf]
      %v3825 = vld [vmem:[%s5 + $0xd8] sm:$0xf]
      %v3826 = vld [vmem:[%s5 + $0xdc] sm:$0xf]
      %v3827 = vld [vmem:[%s5 + $0xe0] sm:$0xf]
      %v3828 = vld [vmem:[%s5 + $0xe4] sm:$0xf]
      %v3829 = vld [vmem:[%s5 + $0xe8] sm:$0xf]
      %v3830 = vld [vmem:[%s5 + $0xec] sm:$0xf]
      %v3831 = vld [vmem:[%s5 + $0xf0] sm:$0xf]
      %v3832 = vld [vmem:[%s5 + $0xf4] sm:$0xf]
      %v3833 = vld [vmem:[%s5 + $0xf8] sm:$0xf]
      %v3834 = vld [vmem:[%s5 + $0xfc] sm:$0xf]
      %v3835 = vld [vmem:[%s5 + $0x100] sm:$0xf]
      %v3836 = vld [vmem:[%s5 + $0x104] sm:$0xf]
      %v3837 = vld [vmem:[%s5 + $0x108] sm:$0xf]
      %v3838 = vld [vmem:[%s5 + $0x10c] sm:$0xf]
      %v3839 = vld [vmem:[%s5 + $0x110] sm:$0xf]
      %v3840 = vld [vmem:[%s5 + $0x114] sm:$0xf]
      %v3841 = vld [vmem:[%s5 + $0x118] sm:$0xf]
      %v3842 = vld [vmem:[%s5 + $0x11c] sm:$0xf]
      %v3843 = vld [vmem:[%s6] sm:$0x1]
      %v3845 = vperm.slane %v3843, 0
      %v3919 = vunpack.c.l.b16 %v3771
      %v3920 = vunpack.c.l.b16 %v3772
      %v3921 = vunpack.c.l.b16 %v3773
      %v3922 = vunpack.c.l.b16 %v3774
      %v3923 = vunpack.c.l.b16 %v3775
      %v3924 = vunpack.c.l.b16 %v3776
      %v3925 = vunpack.c.l.b16 %v3777
      %v3926 = vunpack.c.l.b16 %v3778
      %v3927 = vunpack.c.l.b16 %v3779
      %v3928 = vunpack.c.l.b16 %v3780
      %v3929 = vunpack.c.l.b16 %v3781
      %v3930 = vunpack.c.l.b16 %v3782
      %v3931 = vunpack.c.l.b16 %v3783
      %v3932 = vunpack.c.l.b16 %v3784
      %v3933 = vunpack.c.l.b16 %v3785
      %v3934 = vunpack.c.l.b16 %v3786
      %v3935 = vunpack.c.l.b16 %v3787
      %v3936 = vunpack.c.l.b16 %v3788
      %v3937 = vunpack.c.l.b16 %v3789
      %v3938 = vunpack.c.l.b16 %v3790
      %v3939 = vunpack.c.l.b16 %v3791
      %v3940 = vunpack.c.l.b16 %v3792
      %v3941 = vunpack.c.l.b16 %v3793
      %v3942 = vunpack.c.l.b16 %v3794
      %v3943 = vunpack.c.l.b16 %v3795
      %v3944 = vunpack.c.l.b16 %v3796
      %v3945 = vunpack.c.l.b16 %v3797
      %v3946 = vunpack.c.l.b16 %v3798
      %v3947 = vunpack.c.l.b16 %v3799
      %v3948 = vunpack.c.l.b16 %v3800
      %v3949 = vunpack.c.l.b16 %v3801
      %v3950 = vunpack.c.l.b16 %v3802
      %v3951 = vunpack.c.l.b16 %v3803
      %v3952 = vunpack.c.l.b16 %v3804
      %v3953 = vunpack.c.l.b16 %v3805
      %v3954 = vunpack.c.l.b16 %v3806
      %v3955 = vunpack.c.l.b16 %v3807
      %v3956 = vunpack.c.l.b16 %v3808
      %v3957 = vunpack.c.l.b16 %v3809
      %v3958 = vunpack.c.l.b16 %v3810
      %v3959 = vunpack.c.l.b16 %v3811
      %v3960 = vunpack.c.l.b16 %v3812
      %v3961 = vunpack.c.l.b16 %v3813
      %v3962 = vunpack.c.l.b16 %v3814
      %v3963 = vunpack.c.l.b16 %v3815
      %v3964 = vunpack.c.l.b16 %v3816
      %v3965 = vunpack.c.l.b16 %v3817
      %v3966 = vunpack.c.l.b16 %v3818
      %v3967 = vunpack.c.l.b16 %v3819
      %v3968 = vunpack.c.l.b16 %v3820
      %v3969 = vunpack.c.l.b16 %v3821
      %v3970 = vunpack.c.l.b16 %v3822
      %v3971 = vunpack.c.l.b16 %v3823
      %v3972 = vunpack.c.l.b16 %v3824
      %v3973 = vunpack.c.l.b16 %v3825
      %v3974 = vunpack.c.l.b16 %v3826
      %v3975 = vunpack.c.l.b16 %v3827
      %v3976 = vunpack.c.l.b16 %v3828
      %v3977 = vunpack.c.l.b16 %v3829
      %v3978 = vunpack.c.l.b16 %v3830
      %v3979 = vunpack.c.l.b16 %v3831
      %v3980 = vunpack.c.l.b16 %v3832
      %v3981 = vunpack.c.l.b16 %v3833
      %v3982 = vunpack.c.l.b16 %v3834
      %v3983 = vunpack.c.l.b16 %v3835
      %v3984 = vunpack.c.l.b16 %v3836
      %v3985 = vunpack.c.l.b16 %v3837
      %v3986 = vunpack.c.l.b16 %v3838
      %v3987 = vunpack.c.l.b16 %v3839
      %v3988 = vunpack.c.l.b16 %v3840
      %v3989 = vunpack.c.l.b16 %v3841
      %v3990 = vunpack.c.l.b16 %v3842
      %v3991 = vpack.c.b16 %v3920, %v3919
      %v3992 = vpack.c.b16 %v3922, %v3921
      %v3993 = vpack.c.b16 %v3924, %v3923
      %v3994 = vpack.c.b16 %v3926, %v3925
      %v3995 = vpack.c.b16 %v3928, %v3927
      %v3996 = vpack.c.b16 %v3930, %v3929
      %v3997 = vpack.c.b16 %v3932, %v3931
      %v3998 = vpack.c.b16 %v3934, %v3933
      %v3999 = vpack.c.b16 %v3936, %v3935
      %v4000 = vpack.c.b16 %v3938, %v3937
      %v4001 = vpack.c.b16 %v3940, %v3939
      %v4002 = vpack.c.b16 %v3942, %v3941
      %v4003 = vpack.c.b16 %v3944, %v3943
      %v4004 = vpack.c.b16 %v3946, %v3945
      %v4005 = vpack.c.b16 %v3948, %v3947
      %v4006 = vpack.c.b16 %v3950, %v3949
      %v4007 = vpack.c.b16 %v3952, %v3951
      %v4008 = vpack.c.b16 %v3954, %v3953
      %v4009 = vpack.c.b16 %v3956, %v3955
      %v4010 = vpack.c.b16 %v3958, %v3957
      %v4011 = vpack.c.b16 %v3960, %v3959
      %v4012 = vpack.c.b16 %v3962, %v3961
      %v4013 = vpack.c.b16 %v3964, %v3963
      %v4014 = vpack.c.b16 %v3966, %v3965
      %v4015 = vpack.c.b16 %v3968, %v3967
      %v4016 = vpack.c.b16 %v3970, %v3969
      %v4017 = vpack.c.b16 %v3972, %v3971
      %v4018 = vpack.c.b16 %v3974, %v3973
      %v4019 = vpack.c.b16 %v3976, %v3975
      %v4020 = vpack.c.b16 %v3978, %v3977
      %v4021 = vpack.c.b16 %v3980, %v3979
      %v4022 = vpack.c.b16 %v3982, %v3981
      %v4023 = vpack.c.b16 %v3984, %v3983
      %v4024 = vpack.c.b16 %v3986, %v3985
      %v4025 = vpack.c.b16 %v3988, %v3987
      %v4026 = vpack.c.b16 %v3990, %v3989
      %v4064 = vsel %vm2694, %v3755, 0
      %v4067 = vsel %vm2694, %v3760, 0
      %v4070 = vsel %vm2694, %v3765, 0
      %v4073 = vsel %vm2694, %v3770, 0
      %4075 = vmatpush.bf16.msra.mxu0 %v3998
      %4076 = vmatpush.bf16.msra.mxu0 %v3997
      %4077 = vmatpush.bf16.msra.mxu0 %v3996
      %4078 = vmatpush.bf16.msra.mxu0 %v3995
      %4079 = vmatpush.bf16.msra.mxu0 %v3994
      %4080 = vmatpush.bf16.msra.mxu0 %v3993
      %4081 = vmatpush.bf16.msra.mxu0 %v3992
      %4082 = vmatpush.bf16.msra.mxu0 %v3991
      %4083 = vmatmul.bf16.gmra.mxu0 %v3751
      %v4084 = vpop.f32.mrf.mxu0
      %v4085 = vadd.f32 %v3845, %v4084
      %v4086 = vpop.f32.mrf.mxu0
      %v4087 = vadd.f32 %v3845, %v4086
      %4088 = vmatmul.bf16.gmra.mxu0 %v3756
      %v4089 = vpop.f32.mrf.mxu0
      %v4090 = vadd.f32 %v3845, %v4089
      %v4091 = vpop.f32.mrf.mxu0
      %v4092 = vadd.f32 %v3845, %v4091
      %4093 = vmatmul.bf16.gmra.mxu0 %v3761
      %v4094 = vpop.f32.mrf.mxu0
      %v4095 = vadd.f32 %v3845, %v4094
      %v4096 = vpop.f32.mrf.mxu0
      %v4097 = vadd.f32 %v3845, %v4096
      %4098 = vmatmul.bf16.gmra.mxu0 %v3766
      %v4099 = vpop.f32.mrf.mxu0
      %v4100 = vadd.f32 %v3845, %v4099
      %v4101 = vpop.f32.mrf.mxu0
      %v4102 = vadd.f32 %v3845, %v4101
      %4103 = vdwg.mxu0
      %4104 = vmatpush.bf16.msra.mxu0 %v4006
      %4105 = vmatpush.bf16.msra.mxu0 %v4005
      %4106 = vmatpush.bf16.msra.mxu0 %v4004
      %4107 = vmatpush.bf16.msra.mxu0 %v4003
      %4108 = vmatpush.bf16.msra.mxu0 %v4002
      %4109 = vmatpush.bf16.msra.mxu0 %v4001
      %4110 = vmatpush.bf16.msra.mxu0 %v4000
      %4111 = vmatpush.bf16.msra.mxu0 %v3999
      %4112 = vmatmul.bf16.gmra.mxu0 %v3752
      %v4113 = vpop.f32.mrf.mxu0
      %v4114 = vadd.f32 %v4085, %v4113
      %v4115 = vpop.f32.mrf.mxu0
      %v4116 = vadd.f32 %v4087, %v4115
      %4117 = vmatmul.bf16.gmra.mxu0 %v3757
      %v4118 = vpop.f32.mrf.mxu0
      %v4119 = vadd.f32 %v4090, %v4118
      %v4120 = vpop.f32.mrf.mxu0
      %v4121 = vadd.f32 %v4092, %v4120
      %4122 = vmatmul.bf16.gmra.mxu0 %v3762
      %v4123 = vpop.f32.mrf.mxu0
      %v4124 = vadd.f32 %v4095, %v4123
      %v4125 = vpop.f32.mrf.mxu0
      %v4126 = vadd.f32 %v4097, %v4125
      %4127 = vmatmul.bf16.gmra.mxu0 %v3767
      %v4128 = vpop.f32.mrf.mxu0
      %v4129 = vadd.f32 %v4100, %v4128
      %v4130 = vpop.f32.mrf.mxu0
      %v4131 = vadd.f32 %v4102, %v4130
      %4132 = vdwg.mxu0
      %4133 = vmatpush.bf16.msra.mxu0 %v4014
      %4134 = vmatpush.bf16.msra.mxu0 %v4013
      %4135 = vmatpush.bf16.msra.mxu0 %v4012
      %4136 = vmatpush.bf16.msra.mxu0 %v4011
      %4137 = vmatpush.bf16.msra.mxu0 %v4010
      %4138 = vmatpush.bf16.msra.mxu0 %v4009
      %4139 = vmatpush.bf16.msra.mxu0 %v4008
      %4140 = vmatpush.bf16.msra.mxu0 %v4007
      %4141 = vmatmul.bf16.gmra.mxu0 %v3753
      %v4142 = vpop.f32.mrf.mxu0
      %v4143 = vadd.f32 %v4114, %v4142
      %v4144 = vpop.f32.mrf.mxu0
      %v4145 = vadd.f32 %v4116, %v4144
      %4146 = vmatmul.bf16.gmra.mxu0 %v3758
      %v4147 = vpop.f32.mrf.mxu0
      %v4148 = vadd.f32 %v4119, %v4147
      %v4149 = vpop.f32.mrf.mxu0
      %v4150 = vadd.f32 %v4121, %v4149
      %4151 = vmatmul.bf16.gmra.mxu0 %v3763
      %v4152 = vpop.f32.mrf.mxu0
      %v4153 = vadd.f32 %v4124, %v4152
      %v4154 = vpop.f32.mrf.mxu0
      %v4155 = vadd.f32 %v4126, %v4154
      %4156 = vmatmul.bf16.gmra.mxu0 %v3768
      %v4157 = vpop.f32.mrf.mxu0
      %v4158 = vadd.f32 %v4129, %v4157
      %v4159 = vpop.f32.mrf.mxu0
      %v4160 = vadd.f32 %v4131, %v4159
      %4161 = vdwg.mxu0
      %4162 = vmatpush.bf16.msra.mxu0 %v4022
      %4163 = vmatpush.bf16.msra.mxu0 %v4021
      %4164 = vmatpush.bf16.msra.mxu0 %v4020
      %4165 = vmatpush.bf16.msra.mxu0 %v4019
      %4166 = vmatpush.bf16.msra.mxu0 %v4018
      %4167 = vmatpush.bf16.msra.mxu0 %v4017
      %4168 = vmatpush.bf16.msra.mxu0 %v4016
      %4169 = vmatpush.bf16.msra.mxu0 %v4015
      %4170 = vmatmul.bf16.gmra.mxu0 %v3754
      %v4171 = vpop.f32.mrf.mxu0
      %v4172 = vadd.f32 %v4143, %v4171
      %v4173 = vpop.f32.mrf.mxu0
      %v4174 = vadd.f32 %v4145, %v4173
      %4175 = vmatmul.bf16.gmra.mxu0 %v3759
      %v4176 = vpop.f32.mrf.mxu0
      %v4177 = vadd.f32 %v4148, %v4176
      %v4178 = vpop.f32.mrf.mxu0
      %v4179 = vadd.f32 %v4150, %v4178
      %4180 = vmatmul.bf16.gmra.mxu0 %v3764
      %v4181 = vpop.f32.mrf.mxu0
      %v4182 = vadd.f32 %v4153, %v4181
      %v4183 = vpop.f32.mrf.mxu0
      %v4184 = vadd.f32 %v4155, %v4183
      %4185 = vmatmul.bf16.gmra.mxu0 %v3769
      %v4186 = vpop.f32.mrf.mxu0
      %v4187 = vadd.f32 %v4158, %v4186
      %v4188 = vpop.f32.mrf.mxu0
      %v4189 = vadd.f32 %v4160, %v4188
      %4190 = vdwg.mxu0
      %4191 = vmatpush.bf16.msra.mxu0 0
      %4192 = vmatpush.bf16.msra.mxu0 0
      %4193 = vmatpush.bf16.msra.mxu0 0
      %4194 = vmatpush.bf16.msra.mxu0 0
      %4195 = vmatpush.bf16.msra.mxu0 %v4026
      %4196 = vmatpush.bf16.msra.mxu0 %v4025
      %4197 = vmatpush.bf16.msra.mxu0 %v4024
      %4198 = vmatpush.bf16.msra.mxu0 %v4023
      %4199 = vmatmul.bf16.gmra.mxu0 %v4064
      %v4200 = vpop.f32.mrf.mxu0
      %v4201 = vadd.f32 %v4172, %v4200
      %v4202 = vpop.f32.mrf.mxu0
      %v4203 = vadd.f32 %v4174, %v4202
      %4204 = vmatmul.bf16.gmra.mxu0 %v4067
      %v4205 = vpop.f32.mrf.mxu0
      %v4206 = vadd.f32 %v4177, %v4205
      %v4207 = vpop.f32.mrf.mxu0
      %v4208 = vadd.f32 %v4179, %v4207
      %4209 = vmatmul.bf16.gmra.mxu0 %v4070
      %v4210 = vpop.f32.mrf.mxu0
      %v4211 = vadd.f32 %v4182, %v4210
      %v4212 = vpop.f32.mrf.mxu0
      %v4213 = vadd.f32 %v4184, %v4212
      %4214 = vmatmul.bf16.gmra.mxu0 %v4073
      %v4215 = vpop.f32.mrf.mxu0
      %v4216 = vadd.f32 %v4187, %v4215
      %v4217 = vpop.f32.mrf.mxu0
      %v4218 = vadd.f32 %v4189, %v4217
      %4219 = vdwg.mxu0
      %v4220 = vmax.f32 %v4201, 0.0
      %v4221 = vmax.f32 %v4203, 0.0
      %v4222 = vmax.f32 %v4206, 0.0
      %v4223 = vmax.f32 %v4208, 0.0
      %v4224 = vmax.f32 %v4211, 0.0
      %v4225 = vmax.f32 %v4213, 0.0
      %v4226 = vmax.f32 %v4216, 0.0
      %v4227 = vmax.f32 %v4218, 0.0
      %v4228 = vld [vmem:[%s7] sm:$0x3]
      %v4230 = vsel %vm2694, %v4228, 0
      %4232 = vmatpush.msra.mxu0 0.0
      %4233 = vmatpush.msra.mxu0 0.0
      %4234 = vmatpush.msra.mxu0 0.0
      %4235 = vmatpush.msra.mxu0 0.0
      %4236 = vmatpush.msra.mxu0 0.0
      %4237 = vmatpush.msra.mxu0 0.0
      %4238 = vmatpush.msra.mxu0 0.0
      %4239 = vmatpush.msra.mxu0 0.0
      %4240 = vmatpush.msra.mxu0 %v4227
      %4241 = vmatpush.msra.mxu0 %v4226
      %4242 = vmatpush.msra.mxu0 %v4225
      %4243 = vmatpush.msra.mxu0 %v4224
      %4244 = vmatpush.msra.mxu0 %v4223
      %4245 = vmatpush.msra.mxu0 %v4222
      %4246 = vmatpush.msra.mxu0 %v4221
      %4247 = vmatpush.msra.mxu0 %v4220
      %4248 = vmatmul.f32.gmra.mxu0 %v4230
      %v4249 = vpop.f32.mrf.mxu0
      %v4250 = vadd.f32 0.0, %v4249
      %4251 = vdwg.mxu0
      %v4252 = vld [vmem:[%s8] sm:$0xff]
      %v4253 = vld [vmem:[%s8 + $0x8] sm:$0xff]
      %v4254 = vld [vmem:[%s8 + $0x10] sm:$0xff]
      %v4255 = vld [vmem:[%s8 + $0x18] sm:$0xff]
      %v4256 = vld [vmem:[%s8 + $0x20] sm:$0xff]
      %v4257 = vld [vmem:[%s8 + $0x28] sm:$0xff]
      %v4258 = vld [vmem:[%s8 + $0x30] sm:$0xff]
      %v4259 = vld [vmem:[%s8 + $0x38] sm:$0xff]
      %v4260 = vld [vmem:[%s8 + $0x40] sm:$0xff]
      %v4261 = vld [vmem:[%s8 + $0x48] sm:$0xff]
      %v4262 = vld [vmem:[%s8 + $0x50] sm:$0xff]
      %v4263 = vld [vmem:[%s8 + $0x58] sm:$0xff]
      %v4264 = vld [vmem:[%s8 + $0x60] sm:$0xff]
      %v4265 = vld [vmem:[%s8 + $0x68] sm:$0xff]
      %v4266 = vld [vmem:[%s8 + $0x70] sm:$0xff]
      %v4267 = vld [vmem:[%s8 + $0x78] sm:$0xff]
      %v4268 = vld [vmem:[%s9] sm:$0x1]
      %v4270 = vperm.slane %v4268, 0
      %4272 = vmatpush.msra.mxu0 %v4267
      %4273 = vmatpush.msra.mxu0 %v4266
      %4274 = vmatpush.msra.mxu0 %v4265
      %4275 = vmatpush.msra.mxu0 %v4264
      %4276 = vmatpush.msra.mxu0 %v4263
      %4277 = vmatpush.msra.mxu0 %v4262
      %4278 = vmatpush.msra.mxu0 %v4261
      %4279 = vmatpush.msra.mxu0 %v4260
      %4280 = vmatpush.msra.mxu0 %v4259
      %4281 = vmatpush.msra.mxu0 %v4258
      %4282 = vmatpush.msra.mxu0 %v4257
      %4283 = vmatpush.msra.mxu0 %v4256
      %4284 = vmatpush.msra.mxu0 %v4255
      %4285 = vmatpush.msra.mxu0 %v4254
      %4286 = vmatpush.msra.mxu0 %v4253
      %4287 = vmatpush.msra.mxu0 %v4252
      %4288 = vmatmul.f32.gmra.mxu0 %v4250
      %v4289 = vpop.f32.mrf.mxu0
      %v4290 = vadd.f32 %v4270, %v4289
      %4291 = vdwg.mxu0
      %4292 = vst [vmem:[%s359] sm:$0x3] %v4290
      %p4293 = scmp.lt.s32.totalorder %s21, 1
      %s4294 = scalar_select %p4293, %s21, 1
      %s4295 = smul.addr %s4294, 2
      %s4296 = scalar_lea.vmem %s10, %s4295
      // Predicated region
      $region61: #{mfcc_binary_cnn_forward.1} parent=59 // pred_check
        %p4297 = pneg %p254
      $region62: #{mfcc_binary_cnn_forward.1} parent=59 // pred_check_branch
        %4299 = sbr.rel (%p4297) target = $region64
      $region63: #{mfcc_binary_cnn_forward.1} parent=59 // pred_region
        _
      $region64: #{mfcc_binary_cnn_forward.1} parent=59 // pred_fallthru
        _
    $region60: #{mfcc_binary_cnn_forward.1} parent=5 // pred_fallthru
      _
    %p4300 = scmp.le.s32.totalorder 2, %s16
    // Predicated region
    $region65: #{mfcc_binary_cnn_forward.1} parent=5 // pred_check
      %p4301 = pneg %p4300
    $region66: #{mfcc_binary_cnn_forward.1} parent=5 // pred_check_branch
      %4303 = sbr.rel (%p4301) target = $region68
    $region67: #{mfcc_binary_cnn_forward.1} parent=5 // pred_region
      %s4304 = ssub.s32 %s16, 2
      // Predicated region
      $region69: #{mfcc_binary_cnn_forward.1} parent=67 // pred_check
        %p4305 = pneg %p260
      $region70: #{mfcc_binary_cnn_forward.1} parent=67 // pred_check_branch
        %4307 = sbr.rel (%p4305) target = $region72
      $region71: #{mfcc_binary_cnn_forward.1} parent=67 // pred_region
        %p4308 = scmp.lt.s32.totalorder %s22, 1
        %s4309 = scalar_select %p4308, %s22, 1
        %s4310 = smul.addr %s4309, 2
        %s4311 = scalar_lea.vmem %s10, %s4310
      $region72: #{mfcc_binary_cnn_forward.1} parent=67 // pred_fallthru
        _
    $region68: #{mfcc_binary_cnn_forward.1} parent=5 // pred_fallthru
      _
  $region6: #{mfcc_binary_cnn_forward.1} parent=0 // loop_footer
    %s20 = sadd.s32 1, %s16
  $region7: #{mfcc_binary_cnn_forward.1} parent=0 // loop_footer_branch
    %15 = sbr.rel target = $region3
  $region8: #{mfcc_binary_cnn_forward.1} parent=0 // loop_exit
    _

</llo_original>
